<compile_context>
chip_gen: v5e
topology: v5e:2x2
jax: 0.10.0
libtpu: 0.0.40
codegen_flags: <defaults>
</compile_context>

<pallas_src>
import jax
import jax.numpy as jnp
from jax.experimental import pallas as pl
from jax.experimental.pallas import tpu as pltpu

_MIB = 1024 * 1024


def _round_up(x, m):
    return ((x + m - 1) // m) * m


def _vmem_capacity_bytes():
    try:
        return int(pltpu.get_tpu_info().vmem_capacity_bytes)
    except Exception:
        return 64 * _MIB  # conservative fallback (v7x per-TC VMEM)


def ffwd_kernel(x_ref, w1_ref, b1_ref, w2_ref, b2_ref, o_ref, acc_ref):
    # Grid axes: i = row tile (parallel), j = output-column tile (parallel),
    #            k = hidden-dimension tile (reduction, innermost).
    k = pl.program_id(2)

    @pl.when(k == 0)
    def _init():
        acc_ref[...] = jnp.zeros_like(acc_ref)

    # First matmul on this hidden slice: (tm, n_embd) @ (n_embd, tk) -> f32.
    h = jnp.dot(x_ref[...], w1_ref[...], preferred_element_type=jnp.float32)
    h = jnp.maximum(h + b1_ref[...], 0.0)  # bias + ReLU for this hidden slice only

    # Partial second matmul: (tm, tk) @ (tk, tn), f32 accumulate in VMEM scratch.
    acc_ref[...] += jnp.dot(h.astype(w2_ref.dtype), w2_ref[...],
                            preferred_element_type=jnp.float32)

    @pl.when(k == pl.num_programs(2) - 1)
    def _finalize():
        # Add second bias once in the epilogue; Dropout == identity at inference.
        o_ref[...] = (acc_ref[...] + b2_ref[...]).astype(o_ref.dtype)


def feed_forward(x, w1, b1, w2, b2, *, tm=None, tk_hidden=None, tn_cols=None,
                 compute_dtype=jnp.bfloat16):
    """x: (B, T, n_embd). w1: (n_embd, 4*n_embd), w2: (4*n_embd, n_embd).

    Returns (B, T, n_embd) in x.dtype. MXU inputs are cast to `compute_dtype`
    (bf16 by default); accumulation is f32.
    """
    B, T, n_embd = x.shape
    hidden = w1.shape[1]
    assert w1.shape == (n_embd, hidden) and w2.shape == (hidden, n_embd)
    assert b1.shape == (hidden,) and b2.shape == (n_embd,)
    out_dtype = x.dtype
    M = B * T

    isz = jnp.dtype(compute_dtype).itemsize
    osz = jnp.dtype(out_dtype).itemsize

    # ---- Generation-aware budgets --------------------------------------------
    cap = _vmem_capacity_bytes()
    big_vmem = cap >= 96 * _MIB                     # v5e / v6e: 128 MiB physical
    vmem_ceiling = (100 * _MIB) if big_vmem else (56 * _MIB)   # v7x: 64 MiB per TC

    # Row tile: the arithmetic-intensity knob (intensity ~ tm FLOP per weight byte).
    # Keep it MXU-aligned and rely on row padding; never emit odd partial tiles.
    if tm is None:
        tm = 1024 if big_vmem else 512
        # Small-M (decode-like): one aligned tile; avoids pointless weight re-streaming.
        tm = min(tm, _round_up(M, 256))
    tm = max(8, _round_up(tm, 8))

    # Hidden tile: cancels out of the intensity; only amortizes per-step overhead.
    # Shrink it on v7x to spend the VMEM on tm instead.
    if tk_hidden is None:
        tk_hidden = 512 if big_vmem else 256
    tk = max(128, min(_round_up(tk_hidden, 128), _round_up(hidden, 128)))

    # Output-column tile: bounds the f32 accumulator / resident out block for big n_embd.
    if tn_cols is None:
        tn_cols = 2048 if big_vmem else 1024
    tn = tn_cols if (n_embd > tn_cols and n_embd % tn_cols == 0) else n_embd

    def vmem_est(tm_, tk_, tn_):
        return (2 * tm_ * n_embd * isz      # x tile (double-buffered, j/k-invariant)
                + 2 * n_embd * tk_ * isz    # W1 slice (x2)
                + 2 * tk_ * tn_ * isz       # W2 slice (x2)
                + 2 * (tk_ + tn_) * 4       # biases (x2)
                + 2 * tm_ * tn_ * osz       # out tile (x2), real output dtype
                + tm_ * tn_ * 4             # f32 accumulator scratch
                + tm_ * tk_ * 4)            # h intermediate

    # Auto-shrink tiles if the estimate blows the per-generation budget.
    while vmem_est(tm, tk, tn) > vmem_ceiling and tm > 256:
        tm //= 2
    while vmem_est(tm, tk, tn) > vmem_ceiling and tk > 128:
        tk //= 2

    vmem_limit = int(min(max(32 * _MIB, 2 * vmem_est(tm, tk, tn)), vmem_ceiling))

    # ---- Padding ---------------------------------------------------------------
    M_pad = _round_up(M, tm)
    hidden_pad = _round_up(hidden, tk)

    x2d = x.reshape(M, n_embd).astype(compute_dtype)
    if M_pad != M:
        x2d = jnp.pad(x2d, ((0, M_pad - M), (0, 0)))

    w1c = w1.astype(compute_dtype)
    w2c = w2.astype(compute_dtype)
    b1_2d = b1.reshape(1, hidden).astype(jnp.float32)
    b2_2d = b2.reshape(1, n_embd).astype(jnp.float32)
    if hidden_pad != hidden:
        # Zero-padded hidden units contribute relu(x@0 + 0) @ 0 == 0: exact no-op.
        w1c = jnp.pad(w1c, ((0, 0), (0, hidden_pad - hidden)))
        b1_2d = jnp.pad(b1_2d, ((0, 0), (0, hidden_pad - hidden)))
        w2c = jnp.pad(w2c, ((0, hidden_pad - hidden), (0, 0)))

    grid = (M_pad // tm, n_embd // tn, hidden_pad // tk)

    out2d = pl.pallas_call(
        ffwd_kernel,
        out_shape=jax.ShapeDtypeStruct((M_pad, n_embd), out_dtype),
        grid_spec=pltpu.PrefetchScalarGridSpec(
            num_scalar_prefetch=0,
            grid=grid,
            in_specs=[
                # x rows: invariant in j and k (reused across the whole reduction).
                # TODO(synk): pipeline_mode=pl.Buffered(1) here could reclaim one x
                # buffer of VMEM; left at the default pending on-chip measurement.
                pl.BlockSpec((tm, n_embd), lambda i, j, k: (i, 0)),
                pl.BlockSpec((n_embd, tk), lambda i, j, k: (0, k)),   # W1 hidden slice
                pl.BlockSpec((1, tk),      lambda i, j, k: (0, k)),   # b1 hidden slice
                pl.BlockSpec((tk, tn),     lambda i, j, k: (k, j)),   # W2 slice
                pl.BlockSpec((1, tn),      lambda i, j, k: (0, j)),   # b2 column slice
            ],
            out_specs=pl.BlockSpec((tm, tn), lambda i, j, k: (i, j)),
            scratch_shapes=[pltpu.VMEM((tm, tn), jnp.float32)],
        ),
        compiler_params=pltpu.CompilerParams(
            dimension_semantics=("parallel", "parallel", "arbitrary"),
            vmem_limit_bytes=vmem_limit),
    )(x2d, w1c, b1_2d, w2c, b2_2d)

    return out2d[:M].reshape(B, T, n_embd)


def init_params(key, n_embd):
    """PyTorch-style Linear init: U(-1/sqrt(fan_in), 1/sqrt(fan_in))."""
    hidden = 4 * n_embd
    k1, k2, k3, k4 = jax.random.split(key, 4)
    bound1 = 1.0 / (n_embd ** 0.5)
    bound2 = 1.0 / (hidden ** 0.5)
    w1 = jax.random.uniform(k1, (n_embd, hidden), jnp.float32, -bound1, bound1)
    b1 = jax.random.uniform(k2, (hidden,), jnp.float32, -bound1, bound1)
    w2 = jax.random.uniform(k3, (hidden, n_embd), jnp.float32, -bound2, bound2)
    b2 = jax.random.uniform(k4, (n_embd,), jnp.float32, -bound2, bound2)
    return w1, b1, w2, b2


def _reference(x, w1, b1, w2, b2, compute_dtype=jnp.bfloat16):
    """Plain-JAX reference with the same bf16-input / f32-accumulate recipe."""
    B, T, n_embd = x.shape
    xb = x.reshape(-1, n_embd).astype(compute_dtype)
    h = jnp.dot(xb, w1.astype(compute_dtype), preferred_element_type=jnp.float32)
    h = jnp.maximum(h + b1.astype(jnp.float32), 0.0)
    y = jnp.dot(h.astype(compute_dtype), w2.astype(compute_dtype),
                preferred_element_type=jnp.float32) + b2.astype(jnp.float32)
    return y.astype(x.dtype).reshape(B, T, n_embd)


if __name__ == "__main__":
    # Small but lane-dense shapes: n_embd multiple of 128 so stores are unmasked.
    B, T, n_embd = 2, 192, 256          # M = 384 rows, hidden = 1024
    key = jax.random.PRNGKey(0)
    kx, kp = jax.random.split(key)

    x = jax.random.normal(kx, (B, T, n_embd), jnp.float32)
    w1, b1, w2, b2 = init_params(kp, n_embd)

    ref = _reference(x, w1, b1, w2, b2)

    # 1) Auto (generation-aware) tiling.
    out = jax.block_until_ready(feed_forward(x, w1, b1, w2, b2))
    assert out.shape == (B, T, n_embd)
    assert jnp.allclose(out, ref, atol=2e-3, rtol=2e-3), "mismatch (auto tiling)"

    # 2) Explicit small MXU-aligned tiles: exercises multiple row tiles, the
    #    hidden-reduction axis with the f32 accumulator, and output-column tiling.
    out2 = jax.block_until_ready(
        feed_forward(x, w1, b1, w2, b2, tm=128, tk_hidden=256, tn_cols=128))
    assert jnp.allclose(out2, ref, atol=2e-3, rtol=2e-3), "mismatch (explicit tiling)"

    print("KERNEL_OK")
</pallas_src>

<mosaic_0001>
module attributes {stable_mosaic.version = 11 : i64} {
  func.func @ffwd_kernel(%arg0: i32, %arg1: i32, %arg2: i32, %arg3: memref<512x256xbf16, #tpu.memory_space<vmem>>, %arg4: memref<256x256xbf16, #tpu.memory_space<vmem>>, %arg5: memref<1x256xf32, #tpu.memory_space<vmem>>, %arg6: memref<256x256xbf16, #tpu.memory_space<vmem>>, %arg7: memref<1x256xf32, #tpu.memory_space<vmem>>, %arg8: memref<512x256xf32, #tpu.memory_space<vmem>>, %arg9: memref<512x256xf32, #tpu.memory_space<vmem>>) attributes {dimension_semantics = [#tpu.dimension_semantics<parallel>, #tpu.dimension_semantics<parallel>, #tpu.dimension_semantics<arbitrary>], iteration_bounds = array<i64: 1, 1, 4>, scalar_prefetch = 0 : i64, scratch_operands = 1 : i64, tpu.core_type = #tpu.core_type<tc>, window_params = [{transform_indices = @transform_0, window_bounds = array<i64: 512, 256>}, {transform_indices = @transform_1, window_bounds = array<i64: 256, 256>}, {transform_indices = @transform_2, window_bounds = array<i64: 1, 256>}, {transform_indices = @transform_3, window_bounds = array<i64: 256, 256>}, {transform_indices = @transform_4, window_bounds = array<i64: 1, 256>}, {transform_indices = @transform_5, window_bounds = array<i64: 512, 256>}]} {
    %c0_i32 = arith.constant 0 : i32
    %0 = arith.cmpi eq, %arg2, %c0_i32 : i32
    %1 = arith.extui %0 : i1 to i32
    %c0_i32_0 = arith.constant 0 : i32
    %2 = arith.cmpi ne, %1, %c0_i32_0 : i32
    scf.if %2 {
      %cst_15 = arith.constant 0.000000e+00 : f32
      %20 = vector.broadcast %cst_15 : f32 to vector<512x256xf32>
      %c0_16 = arith.constant 0 : index
      %c0_17 = arith.constant 0 : index
      %21 = vector.load %arg9[%c0_16, %c0_17] : memref<512x256xf32, #tpu.memory_space<vmem>>, vector<512x256xf32>
      tpu.vector_store %arg9[%c0_16, %c0_17], %20 {strides = array<i32>} : memref<512x256xf32, #tpu.memory_space<vmem>>, vector<512x256xf32>,
    } else {
    }
    %c0 = arith.constant 0 : index
    %c0_1 = arith.constant 0 : index
    %3 = vector.load %arg3[%c0, %c0_1] : memref<512x256xbf16, #tpu.memory_space<vmem>>, vector<512x256xbf16>
    %c0_2 = arith.constant 0 : index
    %c0_3 = arith.constant 0 : index
    %4 = vector.load %arg4[%c0_2, %c0_3] : memref<256x256xbf16, #tpu.memory_space<vmem>>, vector<256x256xbf16>
    %cst = arith.constant dense<0.000000e+00> : vector<512x256xf32>
    %5 = tpu.matmul %3, %4, %cst {dimension_numbers = #tpu.dot_dimension_numbers<[1], [0], [0], [1], [0, 0, 1, 1], [], []>} : vector<512x256xbf16>, vector<256x256xbf16>, vector<512x256xf32> -> vector<512x256xf32>
    %c0_4 = arith.constant 0 : index
    %c0_5 = arith.constant 0 : index
    %6 = vector.load %arg5[%c0_4, %c0_5] : memref<1x256xf32, #tpu.memory_space<vmem>>, vector<1x256xf32>
    %7 = vector.broadcast %6 : vector<1x256xf32> to vector<512x256xf32>
    %8 = arith.addf %5, %7 : vector<512x256xf32>
    %cst_6 = arith.constant 0.000000e+00 : f32
    %9 = vector.broadcast %cst_6 : f32 to vector<512x256xf32>
    %10 = arith.maximumf %8, %9 : vector<512x256xf32>
    %c0_7 = arith.constant 0 : index
    %c0_8 = arith.constant 0 : index
    %11 = vector.load %arg9[%c0_7, %c0_8] : memref<512x256xf32, #tpu.memory_space<vmem>>, vector<512x256xf32>
    %12 = arith.truncf %10 : vector<512x256xf32> to vector<512x256xbf16>
    %c0_9 = arith.constant 0 : index
    %c0_10 = arith.constant 0 : index
    %13 = vector.load %arg6[%c0_9, %c0_10] : memref<256x256xbf16, #tpu.memory_space<vmem>>, vector<256x256xbf16>
    %cst_11 = arith.constant dense<0.000000e+00> : vector<512x256xf32>
    %14 = tpu.matmul %12, %13, %cst_11 {dimension_numbers = #tpu.dot_dimension_numbers<[1], [0], [0], [1], [0, 0, 1, 1], [], []>} : vector<512x256xbf16>, vector<256x256xbf16>, vector<512x256xf32> -> vector<512x256xf32>
    %15 = arith.addf %11, %14 : vector<512x256xf32>
    %c0_12 = arith.constant 0 : index
    %c0_13 = arith.constant 0 : index
    %16 = vector.load %arg9[%c0_12, %c0_13] : memref<512x256xf32, #tpu.memory_space<vmem>>, vector<512x256xf32>
    tpu.vector_store %arg9[%c0_12, %c0_13], %15 {strides = array<i32>} : memref<512x256xf32, #tpu.memory_space<vmem>>, vector<512x256xf32>,
    %c3_i32 = arith.constant 3 : i32
    %17 = arith.cmpi eq, %arg2, %c3_i32 : i32
    %18 = arith.extui %17 : i1 to i32
    %c0_i32_14 = arith.constant 0 : i32
    %19 = arith.cmpi ne, %18, %c0_i32_14 : i32
    scf.if %19 {
      %c0_15 = arith.constant 0 : index
      %c0_16 = arith.constant 0 : index
      %20 = vector.load %arg9[%c0_15, %c0_16] : memref<512x256xf32, #tpu.memory_space<vmem>>, vector<512x256xf32>
      %c0_17 = arith.constant 0 : index
      %c0_18 = arith.constant 0 : index
      %21 = vector.load %arg7[%c0_17, %c0_18] : memref<1x256xf32, #tpu.memory_space<vmem>>, vector<1x256xf32>
      %22 = vector.broadcast %21 : vector<1x256xf32> to vector<512x256xf32>
      %23 = arith.addf %20, %22 : vector<512x256xf32>
      %c0_19 = arith.constant 0 : index
      %c0_20 = arith.constant 0 : index
      %24 = vector.load %arg8[%c0_19, %c0_20] : memref<512x256xf32, #tpu.memory_space<vmem>>, vector<512x256xf32>
      tpu.vector_store %arg8[%c0_19, %c0_20], %23 {strides = array<i32>} : memref<512x256xf32, #tpu.memory_space<vmem>>, vector<512x256xf32>,
    } else {
    }
    return
  }
  func.func @transform_0(%arg0: i32, %arg1: i32, %arg2: i32) -> (i32, i32) {
    %c0_i32 = arith.constant 0 : i32
    %c0_i32_0 = arith.constant 0 : i32
    return %arg0, %c0_i32 : i32, i32
  }
  func.func @transform_1(%arg0: i32, %arg1: i32, %arg2: i32) -> (i32, i32) {
    %c0_i32 = arith.constant 0 : i32
    %c0_i32_0 = arith.constant 0 : i32
    return %c0_i32, %arg2 : i32, i32
  }
  func.func @transform_2(%arg0: i32, %arg1: i32, %arg2: i32) -> (i32, i32) {
    %c0_i32 = arith.constant 0 : i32
    %c0_i32_0 = arith.constant 0 : i32
    return %c0_i32, %arg2 : i32, i32
  }
  func.func @transform_3(%arg0: i32, %arg1: i32, %arg2: i32) -> (i32, i32) {
    %c0_i32 = arith.constant 0 : i32
    return %arg2, %arg1 : i32, i32
  }
  func.func @transform_4(%arg0: i32, %arg1: i32, %arg2: i32) -> (i32, i32) {
    %c0_i32 = arith.constant 0 : i32
    %c0_i32_0 = arith.constant 0 : i32
    return %c0_i32, %arg1 : i32, i32
  }
  func.func @transform_5(%arg0: i32, %arg1: i32, %arg2: i32) -> (i32, i32) {
    %c0_i32 = arith.constant 0 : i32
    return %arg0, %arg1 : i32, i32
  }
}

</mosaic_0001>

<llo_original>
// kernel: tpu_custom_call.1
$region0: #{tpu_custom_call.1}
  #allocation0 [shape = 'u32[]', space=smem, size = 0x4, offset = 0x4, fixed_abs, tag = 'smem constant byte address 0x4 - core index']
  #allocation1 [shape = 'u32[72,128]{1,0:T(1,128)}', space=vmem, size = 0x9000, scoped, tag = 'internal scratch']
  #allocation2 [shape = 'f32[512,256]{1,0:T(8,128)}', space=vmem, size = 0x80000, scoped, tag = 'scratch operand']
  %s0 = inlined_call_operand.hbm [shape: bf16[512,256], index: 0, kind: input, shape index: {}]
  %s1 = inlined_call_operand.hbm [shape: bf16[256,1024], index: 1, kind: input, shape index: {}]
  %s2 = inlined_call_operand.hbm [shape: f32[1,1024], index: 2, kind: input, shape index: {}]
  %s3 = inlined_call_operand.hbm [shape: bf16[1024,256], index: 3, kind: input, shape index: {}]
  %s4 = inlined_call_operand.vmem [shape: f32[1,256], index: 4, kind: input, shape index: {}]
  %s5 = inlined_call_operand.hbm [shape: f32[512,256], index: 5, kind: output, shape index: {}]
  %s6 = sld [smem:[#allocation0]]
  $region77: #{tpu_custom_call.1} parent=0
    _
  %s8 = ssub.s32 1, %s6
  %s9 = scalar_select 0, %s8, %s6
  $region1: #{tpu_custom_call.1} parent=0
    #allocation3 [shape = 'u8[262144]{0}', space=vmem, size = 0x40000, scoped, tag = 'input window, operand 0, single buffered']
    #allocation4 [shape = 's32[2]{0}', space=sflag, size = 0x8, scoped, tag = 'scoped memory for tpu_custom_call.1']
    #allocation5 [shape = 's32[2]{0}', space=sflag, size = 0x8, scoped, tag = 'scoped memory for tpu_custom_call.1']
    #allocation6 [shape = 'u8[262144]{0}', space=vmem, size = 0x40000, scoped, tag = 'input window, operand 1']
    #allocation7 [shape = 's32[2]{0}', space=sflag, size = 0x8, scoped, tag = 'scoped memory for tpu_custom_call.1']
    #allocation8 [shape = 'u8[2048]{0}', space=vmem, size = 0x800, scoped, tag = 'input window, operand 2']
    #allocation9 [shape = 'u8[262144]{0}', space=vmem, size = 0x40000, scoped, tag = 'input window, operand 3']
    #allocation10 [shape = 's32[2]{0}', space=sflag, size = 0x8, scoped, tag = 'scoped memory for tpu_custom_call.1']
    #allocation11 [shape = 'u8[524288]{0}', space=vmem, size = 0x80000, scoped, tag = 'output window, operand 0, single buffered']
    %10 = vsyncpa [#allocation4], 0
    %11 = vsyncpa [#allocation7], 0
    %s12 = scalar_lea.sflag [#allocation7], 1
    %13 = vsyncpa %s12, 0
    %14 = vsyncpa [#allocation10], 0
    %s15 = scalar_lea.sflag [#allocation10], 1
    %16 = vsyncpa %s15, 0
    %17 = vsyncpa [#allocation5], 0
    loop: start=0, step=1, limit=6
    $region2: #{tpu_custom_call.1} parent=1 // loop_pre_header
      _
    $region3: #{tpu_custom_call.1} parent=1 // loop_header
      %s19 = sphi 0, %s23
      %p20 = scmp.ge.s32.totalorder %s19, 6
      %s26 = sphi 0, %s45
      %s27 = sphi 0, %s41
      %s28 = sphi 0, %s37
      %s29 = sphi 0, %s26
      %s30 = sphi 0, %s27
      %s31 = sphi 0, %s28
      %s32 = sphi 0, %s29
      %s33 = sphi 0, %s30
      %s34 = sphi 0, %s31
      %s48 = sphi 0, %s50
      %s51 = sphi 0, %s48
      %s52 = sphi 0, %s51
      %s68 = sphi 0, %s52
      %s74 = sphi 0, %s76
      %s77 = sphi 0, %s74
      %s78 = sphi 0, %s77
      %s94 = sphi 0, %s78
      %s100 = sphi 0, %s102
      %s103 = sphi 0, %s100
      %s104 = sphi 0, %s103
      %s120 = sphi 0, %s104
      %s128 = sphi 0, %s130
      %s131 = sphi 0, %s128
      %s132 = sphi 0, %s131
      %s148 = sphi 0, %s132
      %s154 = sphi 0, %s156
      %s157 = sphi 0, %s154
      %s158 = sphi 0, %s157
      %s174 = sphi 0, %s158
      %s182 = sphi 0, %s184
      %s185 = sphi 0, %s182
      %s186 = sphi 0, %s185
      %s202 = sphi 0, %s186
    $region4: #{tpu_custom_call.1} parent=1 // loop_header_branch
      %22 = sbr.rel (%p20) target = $region8
    $region5: #{tpu_custom_call.1} parent=1 // loop_body
      %s24 = ssub.s32 %s19, 1
      %s25 = ssub.s32 %s19, 2
      %s35 = sadd.s32 1, %s28
      %p36 = scmp.ge.s32.totalorder %s35, 4
      %s37 = scalar_select %p36, 0, %s35
      %s38 = sadd.s32 1, %s27
      %s39 = scalar_select %p36, %s38, %s27
      %p40 = scmp.ge.s32.totalorder %s39, 1
      %s41 = scalar_select %p40, 0, %s39
      %s42 = sadd.s32 1, %s26
      %s43 = scalar_select %p40, %s42, %s26
      %p44 = scmp.ge.s32.totalorder %s43, 1
      %s45 = scalar_select %p44, 0, %s43
      %s46 = ssub.s32 %s26, %s45
      %p47 = scmp.eq.s32.totalorder %s46, 0
      %s49 = sadd.s32 %s48, 1
      %s50 = scalar_select %p47, %s48, %s49
      %p53 = pneg %p47
      %p54 = scmp.eq.s32.totalorder %s19, 3
      %p55 = por %p53, %p54
      %p56 = scmp.ne.s32.totalorder %s48, %s51
      %p57 = scmp.eq.s32.totalorder %s19, 0
      %p58 = por %p56, %p57
      %p59 = scmp.ne.s32.totalorder %s48, %s51
      %p60 = scmp.eq.s32.totalorder %s24, 3
      %p61 = por %p59, %p60
      %p62 = scmp.ne.s32.totalorder %s51, %s52
      %p63 = scmp.eq.s32.totalorder %s24, 0
      %p64 = por %p62, %p63
      %p65 = scmp.ne.s32.totalorder %s51, %s52
      %p66 = scmp.eq.s32.totalorder %s25, 3
      %p67 = por %p65, %p66
      %p69 = scmp.ne.s32.totalorder %s52, %s68
      %p70 = scmp.eq.s32.totalorder %s25, 0
      %p71 = por %p69, %p70
      %s72 = ssub.s32 %s28, %s37
      %p73 = scmp.eq.s32.totalorder %s72, 0
      %s75 = sadd.s32 %s74, 1
      %s76 = scalar_select %p73, %s74, %s75
      %p79 = pneg %p73
      %p80 = scmp.eq.s32.totalorder %s19, 3
      %p81 = por %p79, %p80
      %p82 = scmp.ne.s32.totalorder %s74, %s77
      %p83 = scmp.eq.s32.totalorder %s19, 0
      %p84 = por %p82, %p83
      %p85 = scmp.ne.s32.totalorder %s74, %s77
      %p86 = scmp.eq.s32.totalorder %s24, 3
      %p87 = por %p85, %p86
      %p88 = scmp.ne.s32.totalorder %s77, %s78
      %p89 = scmp.eq.s32.totalorder %s24, 0
      %p90 = por %p88, %p89
      %p91 = scmp.ne.s32.totalorder %s77, %s78
      %p92 = scmp.eq.s32.totalorder %s25, 3
      %p93 = por %p91, %p92
      %p95 = scmp.ne.s32.totalorder %s78, %s94
      %p96 = scmp.eq.s32.totalorder %s25, 0
      %p97 = por %p95, %p96
      %s98 = ssub.s32 %s28, %s37
      %p99 = scmp.eq.s32.totalorder %s98, 0
      %s101 = sadd.s32 %s100, 1
      %s102 = scalar_select %p99, %s100, %s101
      %p105 = pneg %p99
      %p106 = scmp.eq.s32.totalorder %s19, 3
      %p107 = por %p105, %p106
      %p108 = scmp.ne.s32.totalorder %s100, %s103
      %p109 = scmp.eq.s32.totalorder %s19, 0
      %p110 = por %p108, %p109
      %p111 = scmp.ne.s32.totalorder %s100, %s103
      %p112 = scmp.eq.s32.totalorder %s24, 3
      %p113 = por %p111, %p112
      %p114 = scmp.ne.s32.totalorder %s103, %s104
      %p115 = scmp.eq.s32.totalorder %s24, 0
      %p116 = por %p114, %p115
      %p117 = scmp.ne.s32.totalorder %s103, %s104
      %p118 = scmp.eq.s32.totalorder %s25, 3
      %p119 = por %p117, %p118
      %p121 = scmp.ne.s32.totalorder %s104, %s120
      %p122 = scmp.eq.s32.totalorder %s25, 0
      %p123 = por %p121, %p122
      %s124 = ssub.s32 %s28, %s37
      %s125 = ssub.s32 %s27, %s41
      %s126 = sor.u32 %s124, %s125
      %p127 = scmp.eq.s32.totalorder %s126, 0
      %s129 = sadd.s32 %s128, 1
      %s130 = scalar_select %p127, %s128, %s129
      %p133 = pneg %p127
      %p134 = scmp.eq.s32.totalorder %s19, 3
      %p135 = por %p133, %p134
      %p136 = scmp.ne.s32.totalorder %s128, %s131
      %p137 = scmp.eq.s32.totalorder %s19, 0
      %p138 = por %p136, %p137
      %p139 = scmp.ne.s32.totalorder %s128, %s131
      %p140 = scmp.eq.s32.totalorder %s24, 3
      %p141 = por %p139, %p140
      %p142 = scmp.ne.s32.totalorder %s131, %s132
      %p143 = scmp.eq.s32.totalorder %s24, 0
      %p144 = por %p142, %p143
      %p145 = scmp.ne.s32.totalorder %s131, %s132
      %p146 = scmp.eq.s32.totalorder %s25, 3
      %p147 = por %p145, %p146
      %p149 = scmp.ne.s32.totalorder %s132, %s148
      %p150 = scmp.eq.s32.totalorder %s25, 0
      %p151 = por %p149, %p150
      %s152 = ssub.s32 %s27, %s41
      %p153 = scmp.eq.s32.totalorder %s152, 0
      %s155 = sadd.s32 %s154, 1
      %s156 = scalar_select %p153, %s154, %s155
      %p159 = pneg %p153
      %p160 = scmp.eq.s32.totalorder %s19, 3
      %p161 = por %p159, %p160
      %p162 = scmp.ne.s32.totalorder %s154, %s157
      %p163 = scmp.eq.s32.totalorder %s19, 0
      %p164 = por %p162, %p163
      %p165 = scmp.ne.s32.totalorder %s154, %s157
      %p166 = scmp.eq.s32.totalorder %s24, 3
      %p167 = por %p165, %p166
      %p168 = scmp.ne.s32.totalorder %s157, %s158
      %p169 = scmp.eq.s32.totalorder %s24, 0
      %p170 = por %p168, %p169
      %p171 = scmp.ne.s32.totalorder %s157, %s158
      %p172 = scmp.eq.s32.totalorder %s25, 3
      %p173 = por %p171, %p172
      %p175 = scmp.ne.s32.totalorder %s158, %s174
      %p176 = scmp.eq.s32.totalorder %s25, 0
      %p177 = por %p175, %p176
      %s178 = ssub.s32 %s26, %s45
      %s179 = ssub.s32 %s27, %s41
      %s180 = sor.u32 %s178, %s179
      %p181 = scmp.eq.s32.totalorder %s180, 0
      %s183 = sadd.s32 %s182, 1
      %s184 = scalar_select %p181, %s182, %s183
      %p187 = pneg %p181
      %p188 = scmp.eq.s32.totalorder %s19, 3
      %p189 = por %p187, %p188
      %p190 = scmp.ne.s32.totalorder %s182, %s185
      %p191 = scmp.eq.s32.totalorder %s19, 0
      %p192 = por %p190, %p191
      %p193 = scmp.ne.s32.totalorder %s182, %s185
      %p194 = scmp.eq.s32.totalorder %s24, 3
      %p195 = por %p193, %p194
      %p196 = scmp.ne.s32.totalorder %s185, %s186
      %p197 = scmp.eq.s32.totalorder %s24, 0
      %p198 = por %p196, %p197
      %p199 = scmp.ne.s32.totalorder %s185, %s186
      %p200 = scmp.eq.s32.totalorder %s25, 3
      %p201 = por %p199, %p200
      %p203 = scmp.ne.s32.totalorder %s186, %s202
      %p204 = scmp.eq.s32.totalorder %s25, 0
      %p205 = por %p203, %p204
      %p206 = scmp.le.s32.totalorder 1, %s19
      %p207 = scmp.lt.s32.totalorder %s19, 5
      %p208 = pnand %p206, %p207
      %p209 = pneg %p208
      // Predicated region
      $region9: #{tpu_custom_call.1} parent=5 // pred_check
        _
      $region10: #{tpu_custom_call.1} parent=5 // pred_check_branch
        %211 = sbr.rel (%p208) target = $region12
      $region11: #{tpu_custom_call.1} parent=5 // pred_region
        %s212 = ssub.s32 %s19, 1
        // Predicated region
        $region13: #{tpu_custom_call.1} parent=11 // pred_check
          %p213 = pneg %p64
        $region14: #{tpu_custom_call.1} parent=11 // pred_check_branch
          %215 = sbr.rel (%p213) target = $region16
        $region15: #{tpu_custom_call.1} parent=11 // pred_region
          %s216 = smul.u32 64, %s29
          %218 = vsyncadd [#allocation4], 0
          %s219 = smul.addr %s216, 2
          %s220 = smul.addr %s219, 4
          %s221 = scalar_lea.hbm %s0, %s220
          %s222 = sshll.u32 %s221, 4
          %s223 = int_to_ptr.hbm [resolvable:$true] %s222
          %s224 = sshll.u32 [#allocation3], 4
          %s225 = int_to_ptr.vmem [resolvable:$true] %s224
          %230 = dma.hbm_to_vmem [thread:$0]  %s223, 8192, %s225, [#allocation4], 128, 128, 8
        $region16: #{tpu_custom_call.1} parent=11 // pred_fallthru
          _
        // Predicated region
        $region17: #{tpu_custom_call.1} parent=11 // pred_check
          %p231 = pneg %p170
        $region18: #{tpu_custom_call.1} parent=11 // pred_check_branch
          %233 = sbr.rel (%p231) target = $region20
        $region19: #{tpu_custom_call.1} parent=11 // pred_region
          %s234 = smul.u32 2, %s30
          %p235 = scmp.lt.s32.totalorder %s234, 1
          %s236 = scalar_select %p235, %s234, 1
          %s237 = scalar_lea.vmem %s4, %s236
          %s238 = smul.u32 2, %s30
        $region20: #{tpu_custom_call.1} parent=11 // pred_fallthru
          _
      $region12: #{tpu_custom_call.1} parent=5 // pred_fallthru
        _
      %p239 = scmp.lt.s32.totalorder %s19, 4
      // Predicated region
      $region21: #{tpu_custom_call.1} parent=5 // pred_check
        %p240 = pneg %p239
      $region22: #{tpu_custom_call.1} parent=5 // pred_check_branch
        %242 = sbr.rel (%p240) target = $region24
      $region23: #{tpu_custom_call.1} parent=5 // pred_region
        // Predicated region
        $region25: #{tpu_custom_call.1} parent=23 // pred_check
          %p243 = pneg %p84
        $region26: #{tpu_custom_call.1} parent=23 // pred_check_branch
          %245 = sbr.rel (%p243) target = $region28
        $region27: #{tpu_custom_call.1} parent=23 // pred_region
          %s246 = sand.u32 %s19, 1
          %s247 = scalar_lea.sflag [#allocation7], %s246
          %s248 = sand.u32 %s74, 1
          %s249 = smul.addr %s248, 256
          %s250 = scalar_lea.vmem [#allocation6], %s249
          %s251 = smul.u32 2, %s28
          %253 = vsyncadd %s247, 0
          %s254 = smul.addr %s251, 4
          %s255 = scalar_lea.hbm %s1, %s254
          %s256 = sshll.u32 %s255, 4
          %s257 = int_to_ptr.hbm [resolvable:$true] %s256
          %s258 = sshll.u32 %s250, 4
          %s259 = int_to_ptr.vmem [resolvable:$true] %s258
          %264 = dma.hbm_to_vmem [thread:$0]  %s257, 4096, %s259, %s247, 512, 128, 8
        $region28: #{tpu_custom_call.1} parent=23 // pred_fallthru
          _
        // Predicated region
        $region29: #{tpu_custom_call.1} parent=23 // pred_check
          %p265 = pneg %p110
        $region30: #{tpu_custom_call.1} parent=23 // pred_check_branch
          %267 = sbr.rel (%p265) target = $region32
        $region31: #{tpu_custom_call.1} parent=23 // pred_region
          %s268 = sand.u32 %s19, 1
          %s269 = scalar_lea.sflag [#allocation7], %s268
          %s270 = sand.u32 %s100, 1
          %s271 = smul.addr %s270, 2
          %s272 = scalar_lea.vmem [#allocation8], %s271
          %s273 = smul.u32 2, %s28
          %275 = vsyncadd %s269, 0
          %s276 = scalar_lea.hbm %s2, %s273
          %s278 = sshll.u32 %s276, 4
          %s279 = int_to_ptr.hbm [resolvable:$true] %s278
          %s280 = sshll.u32 %s272, 4
          %s281 = int_to_ptr.vmem [resolvable:$true] %s280
          %283 = dma.hbm_to_vmem [thread:$0]  %s279, 32, %s281, %s269
        $region32: #{tpu_custom_call.1} parent=23 // pred_fallthru
          _
        // Predicated region
        $region33: #{tpu_custom_call.1} parent=23 // pred_check
          %p284 = pneg %p138
        $region34: #{tpu_custom_call.1} parent=23 // pred_check_branch
          %286 = sbr.rel (%p284) target = $region36
        $region35: #{tpu_custom_call.1} parent=23 // pred_region
          %s287 = sand.u32 %s128, 1
          %s288 = scalar_lea.sflag [#allocation10], %s287
          %s289 = sand.u32 %s128, 1
          %s290 = smul.addr %s289, 256
          %s291 = scalar_lea.vmem [#allocation9], %s290
          %s292 = smul.u32 32, %s28
          %s293 = smul.u32 2, %s27
          %295 = vsyncadd %s288, 0
          %s296 = smul.addr %s292, 2
          %s297 = sadd.s32 %s293, %s296
          %s298 = smul.addr %s297, 4
          %s299 = scalar_lea.hbm %s3, %s298
          %s300 = sshll.u32 %s299, 4
          %s301 = int_to_ptr.hbm [resolvable:$true] %s300
          %s302 = sshll.u32 %s291, 4
          %s303 = int_to_ptr.vmem [resolvable:$true] %s302
          %308 = dma.hbm_to_vmem [thread:$0]  %s301, 4096, %s303, %s288, 128, 128, 8
        $region36: #{tpu_custom_call.1} parent=23 // pred_fallthru
          _
      $region24: #{tpu_custom_call.1} parent=5 // pred_fallthru
        _
      %p309 = scmp.le.s32.totalorder 1, %s19
      %p310 = scmp.lt.s32.totalorder %s19, 5
      %p311 = pnand %p309, %p310
      %p312 = pneg %p311
      // Predicated region
      $region37: #{tpu_custom_call.1} parent=5 // pred_check
        _
      $region38: #{tpu_custom_call.1} parent=5 // pred_check_branch
        %314 = sbr.rel (%p311) target = $region40
      $region39: #{tpu_custom_call.1} parent=5 // pred_region
        %s315 = ssub.s32 %s19, 1
        // Predicated region
        $region41: #{tpu_custom_call.1} parent=39 // pred_check
          %p316 = pneg %p64
        $region42: #{tpu_custom_call.1} parent=39 // pred_check_branch
          %318 = sbr.rel (%p316) target = $region44
        $region43: #{tpu_custom_call.1} parent=39 // pred_region
          %320 = dma.done [#allocation4], 8192
        $region44: #{tpu_custom_call.1} parent=39 // pred_fallthru
          _
        %s321 = sand.u32 %s24, 1
        %s322 = scalar_lea.sflag [#allocation7], %s321
        %s323 = sand.u32 %s77, 1
        %s324 = smul.addr %s323, 256
        %s325 = scalar_lea.vmem [#allocation6], %s324
        // Predicated region
        $region45: #{tpu_custom_call.1} parent=39 // pred_check
          %p326 = pneg %p90
        $region46: #{tpu_custom_call.1} parent=39 // pred_check_branch
          %328 = sbr.rel (%p326) target = $region48
        $region47: #{tpu_custom_call.1} parent=39 // pred_region
          %330 = dma.done %s322, 4096
        $region48: #{tpu_custom_call.1} parent=39 // pred_fallthru
          _
        %s331 = sand.u32 %s24, 1
        %s332 = scalar_lea.sflag [#allocation7], %s331
        %s333 = sand.u32 %s103, 1
        %s334 = smul.addr %s333, 2
        %s335 = scalar_lea.vmem [#allocation8], %s334
        // Predicated region
        $region49: #{tpu_custom_call.1} parent=39 // pred_check
          %p336 = pneg %p116
        $region50: #{tpu_custom_call.1} parent=39 // pred_check_branch
          %338 = sbr.rel (%p336) target = $region52
        $region51: #{tpu_custom_call.1} parent=39 // pred_region
          %340 = dma.done %s332, 32
        $region52: #{tpu_custom_call.1} parent=39 // pred_fallthru
          _
        %s341 = sand.u32 %s131, 1
        %s342 = scalar_lea.sflag [#allocation10], %s341
        %s343 = sand.u32 %s131, 1
        %s344 = smul.addr %s343, 256
        %s345 = scalar_lea.vmem [#allocation9], %s344
        // Predicated region
        $region53: #{tpu_custom_call.1} parent=39 // pred_check
          %p346 = pneg %p144
        $region54: #{tpu_custom_call.1} parent=39 // pred_check_branch
          %348 = sbr.rel (%p346) target = $region56
        $region55: #{tpu_custom_call.1} parent=39 // pred_region
          %350 = dma.done %s342, 4096
        $region56: #{tpu_custom_call.1} parent=39 // pred_fallthru
          _
        %p351 = pneg %p64
        %p352 = pneg %p61
        %s353 = sand.u32 %s24, 1
        %s354 = scalar_lea.sflag [#allocation7], %s353
        %s355 = sand.u32 %s77, 1
        %s356 = smul.addr %s355, 256
        %s357 = scalar_lea.vmem [#allocation6], %s356
        %p358 = pneg %p90
        %p359 = pneg %p87
        %s360 = sand.u32 %s24, 1
        %s361 = scalar_lea.sflag [#allocation7], %s360
        %s362 = sand.u32 %s103, 1
        %s363 = smul.addr %s362, 2
        %s364 = scalar_lea.vmem [#allocation8], %s363
        %p365 = pneg %p116
        %p366 = pneg %p113
        %s367 = sand.u32 %s131, 1
        %s368 = scalar_lea.sflag [#allocation10], %s367
        %s369 = sand.u32 %s131, 1
        %s370 = smul.addr %s369, 256
        %s371 = scalar_lea.vmem [#allocation9], %s370
        %p372 = pneg %p144
        %p373 = pneg %p141
        %s374 = smul.u32 2, %s30
        %p375 = scmp.lt.s32.totalorder %s374, 1
        %s376 = scalar_select %p375, %s374, 1
        %s377 = scalar_lea.vmem %s4, %s376
        %p378 = pneg %p170
        %p379 = pneg %p167
        %p380 = pneg %p198
        %p381 = pneg %p195
        %s382 = smul.u32 64, %s29
        %s383 = smul.u32 2, %s31
        %s384 = smul.u32 2, %s31
        %s385 = smul.u32 32, %s31
        %s386 = smul.u32 2, %s30
        %s387 = smul.u32 2, %s30
        %p388 = scmp.lt.s32.totalorder %s387, 1
        %s389 = scalar_select %p388, %s387, 1
        %s390 = scalar_lea.vmem %s4, %s389
        %s391 = smul.u32 2, %s30
        %s392 = smul.u32 64, %s29
        %s393 = smul.u32 2, %s30
        %p394 = scmp.eq.s32.totalorder %s31, 0
        // Predicated region
        $region57: #{tpu_custom_call.1} parent=39 // pred_check
          %p395 = pneg %p394
        $region58: #{tpu_custom_call.1} parent=39 // pred_check_branch
          %397 = sbr.rel (%p395) target = $region60
        $region59: #{tpu_custom_call.1} parent=39 // pred_region
          %398 = vst [vmem:[#allocation2] sm:$0xff] 0.0
          %399 = vst [vmem:[#allocation2 + $0x8] sm:$0xff] 0.0
          %400 = vst [vmem:[#allocation2 + $0x10] sm:$0xff] 0.0
          %401 = vst [vmem:[#allocation2 + $0x18] sm:$0xff] 0.0
          %402 = vst [vmem:[#allocation2 + $0x20] sm:$0xff] 0.0
          %403 = vst [vmem:[#allocation2 + $0x28] sm:$0xff] 0.0
          %404 = vst [vmem:[#allocation2 + $0x30] sm:$0xff] 0.0
          %405 = vst [vmem:[#allocation2 + $0x38] sm:$0xff] 0.0
          %406 = vst [vmem:[#allocation2 + $0x40] sm:$0xff] 0.0
          %407 = vst [vmem:[#allocation2 + $0x48] sm:$0xff] 0.0
          %408 = vst [vmem:[#allocation2 + $0x50] sm:$0xff] 0.0
          %409 = vst [vmem:[#allocation2 + $0x58] sm:$0xff] 0.0
          %410 = vst [vmem:[#allocation2 + $0x60] sm:$0xff] 0.0
          %411 = vst [vmem:[#allocation2 + $0x68] sm:$0xff] 0.0
          %412 = vst [vmem:[#allocation2 + $0x70] sm:$0xff] 0.0
          %413 = vst [vmem:[#allocation2 + $0x78] sm:$0xff] 0.0
          %414 = vst [vmem:[#allocation2 + $0x80] sm:$0xff] 0.0
          %415 = vst [vmem:[#allocation2 + $0x88] sm:$0xff] 0.0
          %416 = vst [vmem:[#allocation2 + $0x90] sm:$0xff] 0.0
          %417 = vst [vmem:[#allocation2 + $0x98] sm:$0xff] 0.0
          %418 = vst [vmem:[#allocation2 + $0xa0] sm:$0xff] 0.0
          %419 = vst [vmem:[#allocation2 + $0xa8] sm:$0xff] 0.0
          %420 = vst [vmem:[#allocation2 + $0xb0] sm:$0xff] 0.0
          %421 = vst [vmem:[#allocation2 + $0xb8] sm:$0xff] 0.0
          %422 = vst [vmem:[#allocation2 + $0xc0] sm:$0xff] 0.0
          %423 = vst [vmem:[#allocation2 + $0xc8] sm:$0xff] 0.0
          %424 = vst [vmem:[#allocation2 + $0xd0] sm:$0xff] 0.0
          %425 = vst [vmem:[#allocation2 + $0xd8] sm:$0xff] 0.0
          %426 = vst [vmem:[#allocation2 + $0xe0] sm:$0xff] 0.0
          %427 = vst [vmem:[#allocation2 + $0xe8] sm:$0xff] 0.0
          %428 = vst [vmem:[#allocation2 + $0xf0] sm:$0xff] 0.0
          %429 = vst [vmem:[#allocation2 + $0xf8] sm:$0xff] 0.0
          %430 = vst [vmem:[#allocation2 + $0x100] sm:$0xff] 0.0
          %431 = vst [vmem:[#allocation2 + $0x108] sm:$0xff] 0.0
          %432 = vst [vmem:[#allocation2 + $0x110] sm:$0xff] 0.0
          %433 = vst [vmem:[#allocation2 + $0x118] sm:$0xff] 0.0
          %434 = vst [vmem:[#allocation2 + $0x120] sm:$0xff] 0.0
          %435 = vst [vmem:[#allocation2 + $0x128] sm:$0xff] 0.0
          %436 = vst [vmem:[#allocation2 + $0x130] sm:$0xff] 0.0
          %437 = vst [vmem:[#allocation2 + $0x138] sm:$0xff] 0.0
          %438 = vst [vmem:[#allocation2 + $0x140] sm:$0xff] 0.0
          %439 = vst [vmem:[#allocation2 + $0x148] sm:$0xff] 0.0
          %440 = vst [vmem:[#allocation2 + $0x150] sm:$0xff] 0.0
          %441 = vst [vmem:[#allocation2 + $0x158] sm:$0xff] 0.0
          %442 = vst [vmem:[#allocation2 + $0x160] sm:$0xff] 0.0
          %443 = vst [vmem:[#allocation2 + $0x168] sm:$0xff] 0.0
          %444 = vst [vmem:[#allocation2 + $0x170] sm:$0xff] 0.0
          %445 = vst [vmem:[#allocation2 + $0x178] sm:$0xff] 0.0
          %446 = vst [vmem:[#allocation2 + $0x180] sm:$0xff] 0.0
          %447 = vst [vmem:[#allocation2 + $0x188] sm:$0xff] 0.0
          %448 = vst [vmem:[#allocation2 + $0x190] sm:$0xff] 0.0
          %449 = vst [vmem:[#allocation2 + $0x198] sm:$0xff] 0.0
          %450 = vst [vmem:[#allocation2 + $0x1a0] sm:$0xff] 0.0
          %451 = vst [vmem:[#allocation2 + $0x1a8] sm:$0xff] 0.0
          %452 = vst [vmem:[#allocation2 + $0x1b0] sm:$0xff] 0.0
          %453 = vst [vmem:[#allocation2 + $0x1b8] sm:$0xff] 0.0
          %454 = vst [vmem:[#allocation2 + $0x1c0] sm:$0xff] 0.0
          %455 = vst [vmem:[#allocation2 + $0x1c8] sm:$0xff] 0.0
          %456 = vst [vmem:[#allocation2 + $0x1d0] sm:$0xff] 0.0
          %457 = vst [vmem:[#allocation2 + $0x1d8] sm:$0xff] 0.0
          %458 = vst [vmem:[#allocation2 + $0x1e0] sm:$0xff] 0.0
          %459 = vst [vmem:[#allocation2 + $0x1e8] sm:$0xff] 0.0
          %460 = vst [vmem:[#allocation2 + $0x1f0] sm:$0xff] 0.0
          %461 = vst [vmem:[#allocation2 + $0x1f8] sm:$0xff] 0.0
          %462 = vst [vmem:[#allocation2 + $0x200] sm:$0xff] 0.0
          %463 = vst [vmem:[#allocation2 + $0x208] sm:$0xff] 0.0
          %464 = vst [vmem:[#allocation2 + $0x210] sm:$0xff] 0.0
          %465 = vst [vmem:[#allocation2 + $0x218] sm:$0xff] 0.0
          %466 = vst [vmem:[#allocation2 + $0x220] sm:$0xff] 0.0
          %467 = vst [vmem:[#allocation2 + $0x228] sm:$0xff] 0.0
          %468 = vst [vmem:[#allocation2 + $0x230] sm:$0xff] 0.0
          %469 = vst [vmem:[#allocation2 + $0x238] sm:$0xff] 0.0
          %470 = vst [vmem:[#allocation2 + $0x240] sm:$0xff] 0.0
          %471 = vst [vmem:[#allocation2 + $0x248] sm:$0xff] 0.0
          %472 = vst [vmem:[#allocation2 + $0x250] sm:$0xff] 0.0
          %473 = vst [vmem:[#allocation2 + $0x258] sm:$0xff] 0.0
          %474 = vst [vmem:[#allocation2 + $0x260] sm:$0xff] 0.0
          %475 = vst [vmem:[#allocation2 + $0x268] sm:$0xff] 0.0
          %476 = vst [vmem:[#allocation2 + $0x270] sm:$0xff] 0.0
          %477 = vst [vmem:[#allocation2 + $0x278] sm:$0xff] 0.0
          %478 = vst [vmem:[#allocation2 + $0x280] sm:$0xff] 0.0
          %479 = vst [vmem:[#allocation2 + $0x288] sm:$0xff] 0.0
          %480 = vst [vmem:[#allocation2 + $0x290] sm:$0xff] 0.0
          %481 = vst [vmem:[#allocation2 + $0x298] sm:$0xff] 0.0
          %482 = vst [vmem:[#allocation2 + $0x2a0] sm:$0xff] 0.0
          %483 = vst [vmem:[#allocation2 + $0x2a8] sm:$0xff] 0.0
          %484 = vst [vmem:[#allocation2 + $0x2b0] sm:$0xff] 0.0
          %485 = vst [vmem:[#allocation2 + $0x2b8] sm:$0xff] 0.0
          %486 = vst [vmem:[#allocation2 + $0x2c0] sm:$0xff] 0.0
          %487 = vst [vmem:[#allocation2 + $0x2c8] sm:$0xff] 0.0
          %488 = vst [vmem:[#allocation2 + $0x2d0] sm:$0xff] 0.0
          %489 = vst [vmem:[#allocation2 + $0x2d8] sm:$0xff] 0.0
          %490 = vst [vmem:[#allocation2 + $0x2e0] sm:$0xff] 0.0
          %491 = vst [vmem:[#allocation2 + $0x2e8] sm:$0xff] 0.0
          %492 = vst [vmem:[#allocation2 + $0x2f0] sm:$0xff] 0.0
          %493 = vst [vmem:[#allocation2 + $0x2f8] sm:$0xff] 0.0
          %494 = vst [vmem:[#allocation2 + $0x300] sm:$0xff] 0.0
          %495 = vst [vmem:[#allocation2 + $0x308] sm:$0xff] 0.0
          %496 = vst [vmem:[#allocation2 + $0x310] sm:$0xff] 0.0
          %497 = vst [vmem:[#allocation2 + $0x318] sm:$0xff] 0.0
          %498 = vst [vmem:[#allocation2 + $0x320] sm:$0xff] 0.0
          %499 = vst [vmem:[#allocation2 + $0x328] sm:$0xff] 0.0
          %500 = vst [vmem:[#allocation2 + $0x330] sm:$0xff] 0.0
          %501 = vst [vmem:[#allocation2 + $0x338] sm:$0xff] 0.0
          %502 = vst [vmem:[#allocation2 + $0x340] sm:$0xff] 0.0
          %503 = vst [vmem:[#allocation2 + $0x348] sm:$0xff] 0.0
          %504 = vst [vmem:[#allocation2 + $0x350] sm:$0xff] 0.0
          %505 = vst [vmem:[#allocation2 + $0x358] sm:$0xff] 0.0
          %506 = vst [vmem:[#allocation2 + $0x360] sm:$0xff] 0.0
          %507 = vst [vmem:[#allocation2 + $0x368] sm:$0xff] 0.0
          %508 = vst [vmem:[#allocation2 + $0x370] sm:$0xff] 0.0
          %509 = vst [vmem:[#allocation2 + $0x378] sm:$0xff] 0.0
          %510 = vst [vmem:[#allocation2 + $0x380] sm:$0xff] 0.0
          %511 = vst [vmem:[#allocation2 + $0x388] sm:$0xff] 0.0
          %512 = vst [vmem:[#allocation2 + $0x390] sm:$0xff] 0.0
          %513 = vst [vmem:[#allocation2 + $0x398] sm:$0xff] 0.0
          %514 = vst [vmem:[#allocation2 + $0x3a0] sm:$0xff] 0.0
          %515 = vst [vmem:[#allocation2 + $0x3a8] sm:$0xff] 0.0
          %516 = vst [vmem:[#allocation2 + $0x3b0] sm:$0xff] 0.0
          %517 = vst [vmem:[#allocation2 + $0x3b8] sm:$0xff] 0.0
          %518 = vst [vmem:[#allocation2 + $0x3c0] sm:$0xff] 0.0
          %519 = vst [vmem:[#allocation2 + $0x3c8] sm:$0xff] 0.0
          %520 = vst [vmem:[#allocation2 + $0x3d0] sm:$0xff] 0.0
          %521 = vst [vmem:[#allocation2 + $0x3d8] sm:$0xff] 0.0
          %522 = vst [vmem:[#allocation2 + $0x3e0] sm:$0xff] 0.0
          %523 = vst [vmem:[#allocation2 + $0x3e8] sm:$0xff] 0.0
          %524 = vst [vmem:[#allocation2 + $0x3f0] sm:$0xff] 0.0
          %525 = vst [vmem:[#allocation2 + $0x3f8] sm:$0xff] 0.0
        $region60: #{tpu_custom_call.1} parent=39 // pred_fallthru
          _
        %v526 = vld [vmem:[#allocation3] sm:$0xff]
        %v527 = vld [vmem:[#allocation3 + $0x8] sm:$0xff]
        %v528 = vld [vmem:[#allocation3 + $0x10] sm:$0xff]
        %v529 = vld [vmem:[#allocation3 + $0x18] sm:$0xff]
        %v530 = vld [vmem:[#allocation3 + $0x20] sm:$0xff]
        %v531 = vld [vmem:[#allocation3 + $0x28] sm:$0xff]
        %v532 = vld [vmem:[#allocation3 + $0x30] sm:$0xff]
        %v533 = vld [vmem:[#allocation3 + $0x38] sm:$0xff]
        %v534 = vld [vmem:[#allocation3 + $0x40] sm:$0xff]
        %v535 = vld [vmem:[#allocation3 + $0x48] sm:$0xff]
        %v536 = vld [vmem:[#allocation3 + $0x50] sm:$0xff]
        %v537 = vld [vmem:[#allocation3 + $0x58] sm:$0xff]
        %v538 = vld [vmem:[#allocation3 + $0x60] sm:$0xff]
        %v539 = vld [vmem:[#allocation3 + $0x68] sm:$0xff]
        %v540 = vld [vmem:[#allocation3 + $0x70] sm:$0xff]
        %v541 = vld [vmem:[#allocation3 + $0x78] sm:$0xff]
        %v542 = vld [vmem:[#allocation3 + $0x80] sm:$0xff]
        %v543 = vld [vmem:[#allocation3 + $0x88] sm:$0xff]
        %v544 = vld [vmem:[#allocation3 + $0x90] sm:$0xff]
        %v545 = vld [vmem:[#allocation3 + $0x98] sm:$0xff]
        %v546 = vld [vmem:[#allocation3 + $0xa0] sm:$0xff]
        %v547 = vld [vmem:[#allocation3 + $0xa8] sm:$0xff]
        %v548 = vld [vmem:[#allocation3 + $0xb0] sm:$0xff]
        %v549 = vld [vmem:[#allocation3 + $0xb8] sm:$0xff]
        %v550 = vld [vmem:[#allocation3 + $0xc0] sm:$0xff]
        %v551 = vld [vmem:[#allocation3 + $0xc8] sm:$0xff]
        %v552 = vld [vmem:[#allocation3 + $0xd0] sm:$0xff]
        %v553 = vld [vmem:[#allocation3 + $0xd8] sm:$0xff]
        %v554 = vld [vmem:[#allocation3 + $0xe0] sm:$0xff]
        %v555 = vld [vmem:[#allocation3 + $0xe8] sm:$0xff]
        %v556 = vld [vmem:[#allocation3 + $0xf0] sm:$0xff]
        %v557 = vld [vmem:[#allocation3 + $0xf8] sm:$0xff]
        %v558 = vld [vmem:[#allocation3 + $0x100] sm:$0xff]
        %v559 = vld [vmem:[#allocation3 + $0x108] sm:$0xff]
        %v560 = vld [vmem:[#allocation3 + $0x110] sm:$0xff]
        %v561 = vld [vmem:[#allocation3 + $0x118] sm:$0xff]
        %v562 = vld [vmem:[#allocation3 + $0x120] sm:$0xff]
        %v563 = vld [vmem:[#allocation3 + $0x128] sm:$0xff]
        %v564 = vld [vmem:[#allocation3 + $0x130] sm:$0xff]
        %v565 = vld [vmem:[#allocation3 + $0x138] sm:$0xff]
        %v566 = vld [vmem:[#allocation3 + $0x140] sm:$0xff]
        %v567 = vld [vmem:[#allocation3 + $0x148] sm:$0xff]
        %v568 = vld [vmem:[#allocation3 + $0x150] sm:$0xff]
        %v569 = vld [vmem:[#allocation3 + $0x158] sm:$0xff]
        %v570 = vld [vmem:[#allocation3 + $0x160] sm:$0xff]
        %v571 = vld [vmem:[#allocation3 + $0x168] sm:$0xff]
        %v572 = vld [vmem:[#allocation3 + $0x170] sm:$0xff]
        %v573 = vld [vmem:[#allocation3 + $0x178] sm:$0xff]
        %v574 = vld [vmem:[#allocation3 + $0x180] sm:$0xff]
        %v575 = vld [vmem:[#allocation3 + $0x188] sm:$0xff]
        %v576 = vld [vmem:[#allocation3 + $0x190] sm:$0xff]
        %v577 = vld [vmem:[#allocation3 + $0x198] sm:$0xff]
        %v578 = vld [vmem:[#allocation3 + $0x1a0] sm:$0xff]
        %v579 = vld [vmem:[#allocation3 + $0x1a8] sm:$0xff]
        %v580 = vld [vmem:[#allocation3 + $0x1b0] sm:$0xff]
        %v581 = vld [vmem:[#allocation3 + $0x1b8] sm:$0xff]
        %v582 = vld [vmem:[#allocation3 + $0x1c0] sm:$0xff]
        %v583 = vld [vmem:[#allocation3 + $0x1c8] sm:$0xff]
        %v584 = vld [vmem:[#allocation3 + $0x1d0] sm:$0xff]
        %v585 = vld [vmem:[#allocation3 + $0x1d8] sm:$0xff]
        %v586 = vld [vmem:[#allocation3 + $0x1e0] sm:$0xff]
        %v587 = vld [vmem:[#allocation3 + $0x1e8] sm:$0xff]
        %v588 = vld [vmem:[#allocation3 + $0x1f0] sm:$0xff]
        %v589 = vld [vmem:[#allocation3 + $0x1f8] sm:$0xff]
        %v590 = vld [vmem:[%s325] sm:$0xff]
        %v591 = vld [vmem:[%s325 + $0x8] sm:$0xff]
        %v592 = vld [vmem:[%s325 + $0x10] sm:$0xff]
        %v593 = vld [vmem:[%s325 + $0x18] sm:$0xff]
        %v594 = vld [vmem:[%s325 + $0x20] sm:$0xff]
        %v595 = vld [vmem:[%s325 + $0x28] sm:$0xff]
        %v596 = vld [vmem:[%s325 + $0x30] sm:$0xff]
        %v597 = vld [vmem:[%s325 + $0x38] sm:$0xff]
        %v598 = vld [vmem:[%s325 + $0x40] sm:$0xff]
        %v599 = vld [vmem:[%s325 + $0x48] sm:$0xff]
        %v600 = vld [vmem:[%s325 + $0x50] sm:$0xff]
        %v601 = vld [vmem:[%s325 + $0x58] sm:$0xff]
        %v602 = vld [vmem:[%s325 + $0x60] sm:$0xff]
        %v603 = vld [vmem:[%s325 + $0x68] sm:$0xff]
        %v604 = vld [vmem:[%s325 + $0x70] sm:$0xff]
        %v605 = vld [vmem:[%s325 + $0x78] sm:$0xff]
        %v606 = vld [vmem:[%s325 + $0x80] sm:$0xff]
        %v607 = vld [vmem:[%s325 + $0x88] sm:$0xff]
        %v608 = vld [vmem:[%s325 + $0x90] sm:$0xff]
        %v609 = vld [vmem:[%s325 + $0x98] sm:$0xff]
        %v610 = vld [vmem:[%s325 + $0xa0] sm:$0xff]
        %v611 = vld [vmem:[%s325 + $0xa8] sm:$0xff]
        %v612 = vld [vmem:[%s325 + $0xb0] sm:$0xff]
        %v613 = vld [vmem:[%s325 + $0xb8] sm:$0xff]
        %v614 = vld [vmem:[%s325 + $0xc0] sm:$0xff]
        %v615 = vld [vmem:[%s325 + $0xc8] sm:$0xff]
        %v616 = vld [vmem:[%s325 + $0xd0] sm:$0xff]
        %v617 = vld [vmem:[%s325 + $0xd8] sm:$0xff]
        %v618 = vld [vmem:[%s325 + $0xe0] sm:$0xff]
        %v619 = vld [vmem:[%s325 + $0xe8] sm:$0xff]
        %v620 = vld [vmem:[%s325 + $0xf0] sm:$0xff]
        %v621 = vld [vmem:[%s325 + $0xf8] sm:$0xff]
        %v622 = vld [vmem:[%s335] sm:$0x3]
        %v624 = vperm.slane %v622, 0
        %v625 = vperm.slane %v622, 1
        %v692 = vunpack.c.l.b16 %v526
        %v693 = vunpack.c.h.b16 %v526
        %v694 = vunpack.c.l.b16 %v527
        %v695 = vunpack.c.h.b16 %v527
        %v696 = vunpack.c.l.b16 %v528
        %v697 = vunpack.c.h.b16 %v528
        %v698 = vunpack.c.l.b16 %v529
        %v699 = vunpack.c.h.b16 %v529
        %v700 = vunpack.c.l.b16 %v530
        %v701 = vunpack.c.h.b16 %v530
        %v702 = vunpack.c.l.b16 %v531
        %v703 = vunpack.c.h.b16 %v531
        %v704 = vunpack.c.l.b16 %v532
        %v705 = vunpack.c.h.b16 %v532
        %v706 = vunpack.c.l.b16 %v533
        %v707 = vunpack.c.h.b16 %v533
        %v708 = vunpack.c.l.b16 %v534
        %v709 = vunpack.c.h.b16 %v534
        %v710 = vunpack.c.l.b16 %v535
        %v711 = vunpack.c.h.b16 %v535
        %v712 = vunpack.c.l.b16 %v536
        %v713 = vunpack.c.h.b16 %v536
        %v714 = vunpack.c.l.b16 %v537
        %v715 = vunpack.c.h.b16 %v537
        %v716 = vunpack.c.l.b16 %v538
        %v717 = vunpack.c.h.b16 %v538
        %v718 = vunpack.c.l.b16 %v539
        %v719 = vunpack.c.h.b16 %v539
        %v720 = vunpack.c.l.b16 %v540
        %v721 = vunpack.c.h.b16 %v540
        %v722 = vunpack.c.l.b16 %v541
        %v723 = vunpack.c.h.b16 %v541
        %v724 = vunpack.c.l.b16 %v542
        %v725 = vunpack.c.h.b16 %v542
        %v726 = vunpack.c.l.b16 %v543
        %v727 = vunpack.c.h.b16 %v543
        %v728 = vunpack.c.l.b16 %v544
        %v729 = vunpack.c.h.b16 %v544
        %v730 = vunpack.c.l.b16 %v545
        %v731 = vunpack.c.h.b16 %v545
        %v732 = vunpack.c.l.b16 %v546
        %v733 = vunpack.c.h.b16 %v546
        %v734 = vunpack.c.l.b16 %v547
        %v735 = vunpack.c.h.b16 %v547
        %v736 = vunpack.c.l.b16 %v548
        %v737 = vunpack.c.h.b16 %v548
        %v738 = vunpack.c.l.b16 %v549
        %v739 = vunpack.c.h.b16 %v549
        %v740 = vunpack.c.l.b16 %v550
        %v741 = vunpack.c.h.b16 %v550
        %v742 = vunpack.c.l.b16 %v551
        %v743 = vunpack.c.h.b16 %v551
        %v744 = vunpack.c.l.b16 %v552
        %v745 = vunpack.c.h.b16 %v552
        %v746 = vunpack.c.l.b16 %v553
        %v747 = vunpack.c.h.b16 %v553
        %v748 = vunpack.c.l.b16 %v554
        %v749 = vunpack.c.h.b16 %v554
        %v750 = vunpack.c.l.b16 %v555
        %v751 = vunpack.c.h.b16 %v555
        %v752 = vunpack.c.l.b16 %v556
        %v753 = vunpack.c.h.b16 %v556
        %v754 = vunpack.c.l.b16 %v557
        %v755 = vunpack.c.h.b16 %v557
        %v756 = vunpack.c.l.b16 %v558
        %v757 = vunpack.c.h.b16 %v558
        %v758 = vunpack.c.l.b16 %v559
        %v759 = vunpack.c.h.b16 %v559
        %v760 = vunpack.c.l.b16 %v560
        %v761 = vunpack.c.h.b16 %v560
        %v762 = vunpack.c.l.b16 %v561
        %v763 = vunpack.c.h.b16 %v561
        %v764 = vunpack.c.l.b16 %v562
        %v765 = vunpack.c.h.b16 %v562
        %v766 = vunpack.c.l.b16 %v563
        %v767 = vunpack.c.h.b16 %v563
        %v768 = vunpack.c.l.b16 %v564
        %v769 = vunpack.c.h.b16 %v564
        %v770 = vunpack.c.l.b16 %v565
        %v771 = vunpack.c.h.b16 %v565
        %v772 = vunpack.c.l.b16 %v566
        %v773 = vunpack.c.h.b16 %v566
        %v774 = vunpack.c.l.b16 %v567
        %v775 = vunpack.c.h.b16 %v567
        %v776 = vunpack.c.l.b16 %v568
        %v777 = vunpack.c.h.b16 %v568
        %v778 = vunpack.c.l.b16 %v569
        %v779 = vunpack.c.h.b16 %v569
        %v780 = vunpack.c.l.b16 %v570
        %v781 = vunpack.c.h.b16 %v570
        %v782 = vunpack.c.l.b16 %v571
        %v783 = vunpack.c.h.b16 %v571
        %v784 = vunpack.c.l.b16 %v572
        %v785 = vunpack.c.h.b16 %v572
        %v786 = vunpack.c.l.b16 %v573
        %v787 = vunpack.c.h.b16 %v573
        %v788 = vunpack.c.l.b16 %v574
        %v789 = vunpack.c.h.b16 %v574
        %v790 = vunpack.c.l.b16 %v575
        %v791 = vunpack.c.h.b16 %v575
        %v792 = vunpack.c.l.b16 %v576
        %v793 = vunpack.c.h.b16 %v576
        %v794 = vunpack.c.l.b16 %v577
        %v795 = vunpack.c.h.b16 %v577
        %v796 = vunpack.c.l.b16 %v578
        %v797 = vunpack.c.h.b16 %v578
        %v798 = vunpack.c.l.b16 %v579
        %v799 = vunpack.c.h.b16 %v579
        %v800 = vunpack.c.l.b16 %v580
        %v801 = vunpack.c.h.b16 %v580
        %v802 = vunpack.c.l.b16 %v581
        %v803 = vunpack.c.h.b16 %v581
        %v804 = vunpack.c.l.b16 %v582
        %v805 = vunpack.c.h.b16 %v582
        %v806 = vunpack.c.l.b16 %v583
        %v807 = vunpack.c.h.b16 %v583
        %v808 = vunpack.c.l.b16 %v584
        %v809 = vunpack.c.h.b16 %v584
        %v810 = vunpack.c.l.b16 %v585
        %v811 = vunpack.c.h.b16 %v585
        %v812 = vunpack.c.l.b16 %v586
        %v813 = vunpack.c.h.b16 %v586
        %v814 = vunpack.c.l.b16 %v587
        %v815 = vunpack.c.h.b16 %v587
        %v816 = vunpack.c.l.b16 %v588
        %v817 = vunpack.c.h.b16 %v588
        %v818 = vunpack.c.l.b16 %v589
        %v819 = vunpack.c.h.b16 %v589
        %v820 = vpack.c.b16 %v694, %v692
        %v821 = vpack.c.b16 %v695, %v693
        %v822 = vpack.c.b16 %v698, %v696
        %v823 = vpack.c.b16 %v699, %v697
        %v824 = vpack.c.b16 %v702, %v700
        %v825 = vpack.c.b16 %v703, %v701
        %v826 = vpack.c.b16 %v706, %v704
        %v827 = vpack.c.b16 %v707, %v705
        %v828 = vpack.c.b16 %v710, %v708
        %v829 = vpack.c.b16 %v711, %v709
        %v830 = vpack.c.b16 %v714, %v712
        %v831 = vpack.c.b16 %v715, %v713
        %v832 = vpack.c.b16 %v718, %v716
        %v833 = vpack.c.b16 %v719, %v717
        %v834 = vpack.c.b16 %v722, %v720
        %v835 = vpack.c.b16 %v723, %v721
        %v836 = vpack.c.b16 %v726, %v724
        %v837 = vpack.c.b16 %v727, %v725
        %v838 = vpack.c.b16 %v730, %v728
        %v839 = vpack.c.b16 %v731, %v729
        %v840 = vpack.c.b16 %v734, %v732
        %v841 = vpack.c.b16 %v735, %v733
        %v842 = vpack.c.b16 %v738, %v736
        %v843 = vpack.c.b16 %v739, %v737
        %v844 = vpack.c.b16 %v742, %v740
        %v845 = vpack.c.b16 %v743, %v741
        %v846 = vpack.c.b16 %v746, %v744
        %v847 = vpack.c.b16 %v747, %v745
        %v848 = vpack.c.b16 %v750, %v748
        %v849 = vpack.c.b16 %v751, %v749
        %v850 = vpack.c.b16 %v754, %v752
        %v851 = vpack.c.b16 %v755, %v753
        %v852 = vpack.c.b16 %v758, %v756
        %v853 = vpack.c.b16 %v759, %v757
        %v854 = vpack.c.b16 %v762, %v760
        %v855 = vpack.c.b16 %v763, %v761
        %v856 = vpack.c.b16 %v766, %v764
        %v857 = vpack.c.b16 %v767, %v765
        %v858 = vpack.c.b16 %v770, %v768
        %v859 = vpack.c.b16 %v771, %v769
        %v860 = vpack.c.b16 %v774, %v772
        %v861 = vpack.c.b16 %v775, %v773
        %v862 = vpack.c.b16 %v778, %v776
        %v863 = vpack.c.b16 %v779, %v777
        %v864 = vpack.c.b16 %v782, %v780
        %v865 = vpack.c.b16 %v783, %v781
        %v866 = vpack.c.b16 %v786, %v784
        %v867 = vpack.c.b16 %v787, %v785
        %v868 = vpack.c.b16 %v790, %v788
        %v869 = vpack.c.b16 %v791, %v789
        %v870 = vpack.c.b16 %v794, %v792
        %v871 = vpack.c.b16 %v795, %v793
        %v872 = vpack.c.b16 %v798, %v796
        %v873 = vpack.c.b16 %v799, %v797
        %v874 = vpack.c.b16 %v802, %v800
        %v875 = vpack.c.b16 %v803, %v801
        %v876 = vpack.c.b16 %v806, %v804
        %v877 = vpack.c.b16 %v807, %v805
        %v878 = vpack.c.b16 %v810, %v808
        %v879 = vpack.c.b16 %v811, %v809
        %v880 = vpack.c.b16 %v814, %v812
        %v881 = vpack.c.b16 %v815, %v813
        %v882 = vpack.c.b16 %v818, %v816
        %v883 = vpack.c.b16 %v819, %v817
        %v980 = vunpack.c.l.b16 %v590
        %v981 = vunpack.c.h.b16 %v590
        %v982 = vunpack.c.l.b16 %v591
        %v983 = vunpack.c.h.b16 %v591
        %v984 = vunpack.c.l.b16 %v592
        %v985 = vunpack.c.h.b16 %v592
        %v986 = vunpack.c.l.b16 %v593
        %v987 = vunpack.c.h.b16 %v593
        %v988 = vunpack.c.l.b16 %v594
        %v989 = vunpack.c.h.b16 %v594
        %v990 = vunpack.c.l.b16 %v595
        %v991 = vunpack.c.h.b16 %v595
        %v992 = vunpack.c.l.b16 %v596
        %v993 = vunpack.c.h.b16 %v596
        %v994 = vunpack.c.l.b16 %v597
        %v995 = vunpack.c.h.b16 %v597
        %v996 = vunpack.c.l.b16 %v598
        %v997 = vunpack.c.h.b16 %v598
        %v998 = vunpack.c.l.b16 %v599
        %v999 = vunpack.c.h.b16 %v599
        %v1000 = vunpack.c.l.b16 %v600
        %v1001 = vunpack.c.h.b16 %v600
        %v1002 = vunpack.c.l.b16 %v601
        %v1003 = vunpack.c.h.b16 %v601
        %v1004 = vunpack.c.l.b16 %v602
        %v1005 = vunpack.c.h.b16 %v602
        %v1006 = vunpack.c.l.b16 %v603
        %v1007 = vunpack.c.h.b16 %v603
        %v1008 = vunpack.c.l.b16 %v604
        %v1009 = vunpack.c.h.b16 %v604
        %v1010 = vunpack.c.l.b16 %v605
        %v1011 = vunpack.c.h.b16 %v605
        %v1012 = vunpack.c.l.b16 %v606
        %v1013 = vunpack.c.h.b16 %v606
        %v1014 = vunpack.c.l.b16 %v607
        %v1015 = vunpack.c.h.b16 %v607
        %v1016 = vunpack.c.l.b16 %v608
        %v1017 = vunpack.c.h.b16 %v608
        %v1018 = vunpack.c.l.b16 %v609
        %v1019 = vunpack.c.h.b16 %v609
        %v1020 = vunpack.c.l.b16 %v610
        %v1021 = vunpack.c.h.b16 %v610
        %v1022 = vunpack.c.l.b16 %v611
        %v1023 = vunpack.c.h.b16 %v611
        %v1024 = vunpack.c.l.b16 %v612
        %v1025 = vunpack.c.h.b16 %v612
        %v1026 = vunpack.c.l.b16 %v613
        %v1027 = vunpack.c.h.b16 %v613
        %v1028 = vunpack.c.l.b16 %v614
        %v1029 = vunpack.c.h.b16 %v614
        %v1030 = vunpack.c.l.b16 %v615
        %v1031 = vunpack.c.h.b16 %v615
        %v1032 = vunpack.c.l.b16 %v616
        %v1033 = vunpack.c.h.b16 %v616
        %v1034 = vunpack.c.l.b16 %v617
        %v1035 = vunpack.c.h.b16 %v617
        %v1036 = vunpack.c.l.b16 %v618
        %v1037 = vunpack.c.h.b16 %v618
        %v1038 = vunpack.c.l.b16 %v619
        %v1039 = vunpack.c.h.b16 %v619
        %v1040 = vunpack.c.l.b16 %v620
        %v1041 = vunpack.c.h.b16 %v620
        %v1042 = vunpack.c.l.b16 %v621
        %v1043 = vunpack.c.h.b16 %v621
        %v1044 = vpack.c.b16 %v982, %v980
        %v1045 = vpack.c.b16 %v983, %v981
        %v1046 = vpack.c.b16 %v986, %v984
        %v1047 = vpack.c.b16 %v987, %v985
        %v1048 = vpack.c.b16 %v990, %v988
        %v1049 = vpack.c.b16 %v991, %v989
        %v1050 = vpack.c.b16 %v994, %v992
        %v1051 = vpack.c.b16 %v995, %v993
        %v1052 = vpack.c.b16 %v998, %v996
        %v1053 = vpack.c.b16 %v999, %v997
        %v1054 = vpack.c.b16 %v1002, %v1000
        %v1055 = vpack.c.b16 %v1003, %v1001
        %v1056 = vpack.c.b16 %v1006, %v1004
        %v1057 = vpack.c.b16 %v1007, %v1005
        %v1058 = vpack.c.b16 %v1010, %v1008
        %v1059 = vpack.c.b16 %v1011, %v1009
        %v1060 = vpack.c.b16 %v1014, %v1012
        %v1061 = vpack.c.b16 %v1015, %v1013
        %v1062 = vpack.c.b16 %v1018, %v1016
        %v1063 = vpack.c.b16 %v1019, %v1017
        %v1064 = vpack.c.b16 %v1022, %v1020
        %v1065 = vpack.c.b16 %v1023, %v1021
        %v1066 = vpack.c.b16 %v1026, %v1024
        %v1067 = vpack.c.b16 %v1027, %v1025
        %v1068 = vpack.c.b16 %v1030, %v1028
        %v1069 = vpack.c.b16 %v1031, %v1029
        %v1070 = vpack.c.b16 %v1034, %v1032
        %v1071 = vpack.c.b16 %v1035, %v1033
        %v1072 = vpack.c.b16 %v1038, %v1036
        %v1073 = vpack.c.b16 %v1039, %v1037
        %v1074 = vpack.c.b16 %v1042, %v1040
        %v1075 = vpack.c.b16 %v1043, %v1041
        %1108 = vmatpush.bf16.msra.mxu0 %v1058
        %1109 = vmatpush.bf16.msra.mxu0 %v1056
        %1110 = vmatpush.bf16.msra.mxu0 %v1054
        %1111 = vmatpush.bf16.msra.mxu0 %v1052
        %1112 = vmatpush.bf16.msra.mxu0 %v1050
        %1113 = vmatpush.bf16.msra.mxu0 %v1048
        %1114 = vmatpush.bf16.msra.mxu0 %v1046
        %1115 = vmatpush.bf16.msra.mxu0 %v1044
        %1116 = vmatmul.bf16.gmra.mxu0 %v820
        %v1117 = vpop.f32.mrf.mxu0
        %v1118 = vadd.f32 %v624, %v1117
        %v1119 = vpop.f32.mrf.mxu0
        %v1120 = vadd.f32 %v624, %v1119
        %1121 = vmatmul.bf16.gmra.mxu0 %v822
        %v1122 = vpop.f32.mrf.mxu0
        %v1123 = vadd.f32 %v624, %v1122
        %v1124 = vpop.f32.mrf.mxu0
        %v1125 = vadd.f32 %v624, %v1124
        %1126 = vmatmul.bf16.gmra.mxu0 %v824
        %v1127 = vpop.f32.mrf.mxu0
        %v1128 = vadd.f32 %v624, %v1127
        %v1129 = vpop.f32.mrf.mxu0
        %v1130 = vadd.f32 %v624, %v1129
        %1131 = vmatmul.bf16.gmra.mxu0 %v826
        %v1132 = vpop.f32.mrf.mxu0
        %v1133 = vadd.f32 %v624, %v1132
        %v1134 = vpop.f32.mrf.mxu0
        %v1135 = vadd.f32 %v624, %v1134
        %1136 = vmatmul.bf16.gmra.mxu0 %v828
        %v1137 = vpop.f32.mrf.mxu0
        %v1138 = vadd.f32 %v624, %v1137
        %v1139 = vpop.f32.mrf.mxu0
        %v1140 = vadd.f32 %v624, %v1139
        %1141 = vmatmul.bf16.gmra.mxu0 %v830
        %v1142 = vpop.f32.mrf.mxu0
        %v1143 = vadd.f32 %v624, %v1142
        %v1144 = vpop.f32.mrf.mxu0
        %v1145 = vadd.f32 %v624, %v1144
        %1146 = vmatmul.bf16.gmra.mxu0 %v832
        %v1147 = vpop.f32.mrf.mxu0
        %v1148 = vadd.f32 %v624, %v1147
        %v1149 = vpop.f32.mrf.mxu0
        %v1150 = vadd.f32 %v624, %v1149
        %1151 = vmatmul.bf16.gmra.mxu0 %v834
        %v1152 = vpop.f32.mrf.mxu0
        %v1153 = vadd.f32 %v624, %v1152
        %v1154 = vpop.f32.mrf.mxu0
        %v1155 = vadd.f32 %v624, %v1154
        %1156 = vmatmul.bf16.gmra.mxu0 %v836
        %v1157 = vpop.f32.mrf.mxu0
        %v1158 = vadd.f32 %v624, %v1157
        %v1159 = vpop.f32.mrf.mxu0
        %v1160 = vadd.f32 %v624, %v1159
        %1161 = vmatmul.bf16.gmra.mxu0 %v838
        %v1162 = vpop.f32.mrf.mxu0
        %v1163 = vadd.f32 %v624, %v1162
        %v1164 = vpop.f32.mrf.mxu0
        %v1165 = vadd.f32 %v624, %v1164
        %1166 = vmatmul.bf16.gmra.mxu0 %v840
        %v1167 = vpop.f32.mrf.mxu0
        %v1168 = vadd.f32 %v624, %v1167
        %v1169 = vpop.f32.mrf.mxu0
        %v1170 = vadd.f32 %v624, %v1169
        %1171 = vmatmul.bf16.gmra.mxu0 %v842
        %v1172 = vpop.f32.mrf.mxu0
        %v1173 = vadd.f32 %v624, %v1172
        %v1174 = vpop.f32.mrf.mxu0
        %v1175 = vadd.f32 %v624, %v1174
        %1176 = vmatmul.bf16.gmra.mxu0 %v844
        %v1177 = vpop.f32.mrf.mxu0
        %v1178 = vadd.f32 %v624, %v1177
        %v1179 = vpop.f32.mrf.mxu0
        %v1180 = vadd.f32 %v624, %v1179
        %1181 = vmatmul.bf16.gmra.mxu0 %v846
        %v1182 = vpop.f32.mrf.mxu0
        %v1183 = vadd.f32 %v624, %v1182
        %v1184 = vpop.f32.mrf.mxu0
        %v1185 = vadd.f32 %v624, %v1184
        %1186 = vmatmul.bf16.gmra.mxu0 %v848
        %v1187 = vpop.f32.mrf.mxu0
        %v1188 = vadd.f32 %v624, %v1187
        %v1189 = vpop.f32.mrf.mxu0
        %v1190 = vadd.f32 %v624, %v1189
        %1191 = vmatmul.bf16.gmra.mxu0 %v850
        %v1192 = vpop.f32.mrf.mxu0
        %v1193 = vadd.f32 %v624, %v1192
        %v1194 = vpop.f32.mrf.mxu0
        %v1195 = vadd.f32 %v624, %v1194
        %1196 = vmatmul.bf16.gmra.mxu0 %v852
        %v1197 = vpop.f32.mrf.mxu0
        %v1198 = vadd.f32 %v624, %v1197
        %v1199 = vpop.f32.mrf.mxu0
        %v1200 = vadd.f32 %v624, %v1199
        %1201 = vmatmul.bf16.gmra.mxu0 %v854
        %v1202 = vpop.f32.mrf.mxu0
        %v1203 = vadd.f32 %v624, %v1202
        %v1204 = vpop.f32.mrf.mxu0
        %v1205 = vadd.f32 %v624, %v1204
        %1206 = vmatmul.bf16.gmra.mxu0 %v856
        %v1207 = vpop.f32.mrf.mxu0
        %v1208 = vadd.f32 %v624, %v1207
        %v1209 = vpop.f32.mrf.mxu0
        %v1210 = vadd.f32 %v624, %v1209
        %1211 = vmatmul.bf16.gmra.mxu0 %v858
        %v1212 = vpop.f32.mrf.mxu0
        %v1213 = vadd.f32 %v624, %v1212
        %v1214 = vpop.f32.mrf.mxu0
        %v1215 = vadd.f32 %v624, %v1214
        %1216 = vmatmul.bf16.gmra.mxu0 %v860
        %v1217 = vpop.f32.mrf.mxu0
        %v1218 = vadd.f32 %v624, %v1217
        %v1219 = vpop.f32.mrf.mxu0
        %v1220 = vadd.f32 %v624, %v1219
        %1221 = vmatmul.bf16.gmra.mxu0 %v862
        %v1222 = vpop.f32.mrf.mxu0
        %v1223 = vadd.f32 %v624, %v1222
        %v1224 = vpop.f32.mrf.mxu0
        %v1225 = vadd.f32 %v624, %v1224
        %1226 = vmatmul.bf16.gmra.mxu0 %v864
        %v1227 = vpop.f32.mrf.mxu0
        %v1228 = vadd.f32 %v624, %v1227
        %v1229 = vpop.f32.mrf.mxu0
        %v1230 = vadd.f32 %v624, %v1229
        %1231 = vmatmul.bf16.gmra.mxu0 %v866
        %v1232 = vpop.f32.mrf.mxu0
        %v1233 = vadd.f32 %v624, %v1232
        %v1234 = vpop.f32.mrf.mxu0
        %v1235 = vadd.f32 %v624, %v1234
        %1236 = vmatmul.bf16.gmra.mxu0 %v868
        %v1237 = vpop.f32.mrf.mxu0
        %v1238 = vadd.f32 %v624, %v1237
        %v1239 = vpop.f32.mrf.mxu0
        %v1240 = vadd.f32 %v624, %v1239
        %1241 = vmatmul.bf16.gmra.mxu0 %v870
        %v1242 = vpop.f32.mrf.mxu0
        %v1243 = vadd.f32 %v624, %v1242
        %v1244 = vpop.f32.mrf.mxu0
        %v1245 = vadd.f32 %v624, %v1244
        %1246 = vmatmul.bf16.gmra.mxu0 %v872
        %v1247 = vpop.f32.mrf.mxu0
        %v1248 = vadd.f32 %v624, %v1247
        %v1249 = vpop.f32.mrf.mxu0
        %v1250 = vadd.f32 %v624, %v1249
        %1251 = vmatmul.bf16.gmra.mxu0 %v874
        %v1252 = vpop.f32.mrf.mxu0
        %v1253 = vadd.f32 %v624, %v1252
        %v1254 = vpop.f32.mrf.mxu0
        %v1255 = vadd.f32 %v624, %v1254
        %1256 = vmatmul.bf16.gmra.mxu0 %v876
        %v1257 = vpop.f32.mrf.mxu0
        %v1258 = vadd.f32 %v624, %v1257
        %v1259 = vpop.f32.mrf.mxu0
        %v1260 = vadd.f32 %v624, %v1259
        %1261 = vmatmul.bf16.gmra.mxu0 %v878
        %v1262 = vpop.f32.mrf.mxu0
        %v1263 = vadd.f32 %v624, %v1262
        %v1264 = vpop.f32.mrf.mxu0
        %v1265 = vadd.f32 %v624, %v1264
        %1266 = vmatmul.bf16.gmra.mxu0 %v880
        %v1267 = vpop.f32.mrf.mxu0
        %v1268 = vadd.f32 %v624, %v1267
        %v1269 = vpop.f32.mrf.mxu0
        %v1270 = vadd.f32 %v624, %v1269
        %1271 = vmatmul.bf16.gmra.mxu0 %v882
        %v1272 = vpop.f32.mrf.mxu0
        %v1273 = vadd.f32 %v624, %v1272
        %v1274 = vpop.f32.mrf.mxu0
        %v1275 = vadd.f32 %v624, %v1274
        %1276 = vdwg.mxu0
        %1277 = vmatpush.bf16.msra.mxu0 %v1074
        %1278 = vmatpush.bf16.msra.mxu0 %v1072
        %1279 = vmatpush.bf16.msra.mxu0 %v1070
        %1280 = vmatpush.bf16.msra.mxu0 %v1068
        %1281 = vmatpush.bf16.msra.mxu0 %v1066
        %1282 = vmatpush.bf16.msra.mxu0 %v1064
        %1283 = vmatpush.bf16.msra.mxu0 %v1062
        %1284 = vmatpush.bf16.msra.mxu0 %v1060
        %1285 = vmatmul.bf16.gmra.mxu0 %v821
        %v1286 = vpop.f32.mrf.mxu0
        %v1287 = vadd.f32 %v1118, %v1286
        %v1288 = vpop.f32.mrf.mxu0
        %v1289 = vadd.f32 %v1120, %v1288
        %1290 = vmatmul.bf16.gmra.mxu0 %v823
        %v1291 = vpop.f32.mrf.mxu0
        %v1292 = vadd.f32 %v1123, %v1291
        %v1293 = vpop.f32.mrf.mxu0
        %v1294 = vadd.f32 %v1125, %v1293
        %1295 = vmatmul.bf16.gmra.mxu0 %v825
        %v1296 = vpop.f32.mrf.mxu0
        %v1297 = vadd.f32 %v1128, %v1296
        %v1298 = vpop.f32.mrf.mxu0
        %v1299 = vadd.f32 %v1130, %v1298
        %1300 = vmatmul.bf16.gmra.mxu0 %v827
        %v1301 = vpop.f32.mrf.mxu0
        %v1302 = vadd.f32 %v1133, %v1301
        %v1303 = vpop.f32.mrf.mxu0
        %v1304 = vadd.f32 %v1135, %v1303
        %1305 = vmatmul.bf16.gmra.mxu0 %v829
        %v1306 = vpop.f32.mrf.mxu0
        %v1307 = vadd.f32 %v1138, %v1306
        %v1308 = vpop.f32.mrf.mxu0
        %v1309 = vadd.f32 %v1140, %v1308
        %1310 = vmatmul.bf16.gmra.mxu0 %v831
        %v1311 = vpop.f32.mrf.mxu0
        %v1312 = vadd.f32 %v1143, %v1311
        %v1313 = vpop.f32.mrf.mxu0
        %v1314 = vadd.f32 %v1145, %v1313
        %1315 = vmatmul.bf16.gmra.mxu0 %v833
        %v1316 = vpop.f32.mrf.mxu0
        %v1317 = vadd.f32 %v1148, %v1316
        %v1318 = vpop.f32.mrf.mxu0
        %v1319 = vadd.f32 %v1150, %v1318
        %1320 = vmatmul.bf16.gmra.mxu0 %v835
        %v1321 = vpop.f32.mrf.mxu0
        %v1322 = vadd.f32 %v1153, %v1321
        %v1323 = vpop.f32.mrf.mxu0
        %v1324 = vadd.f32 %v1155, %v1323
        %1325 = vmatmul.bf16.gmra.mxu0 %v837
        %v1326 = vpop.f32.mrf.mxu0
        %v1327 = vadd.f32 %v1158, %v1326
        %v1328 = vpop.f32.mrf.mxu0
        %v1329 = vadd.f32 %v1160, %v1328
        %1330 = vmatmul.bf16.gmra.mxu0 %v839
        %v1331 = vpop.f32.mrf.mxu0
        %v1332 = vadd.f32 %v1163, %v1331
        %v1333 = vpop.f32.mrf.mxu0
        %v1334 = vadd.f32 %v1165, %v1333
        %1335 = vmatmul.bf16.gmra.mxu0 %v841
        %v1336 = vpop.f32.mrf.mxu0
        %v1337 = vadd.f32 %v1168, %v1336
        %v1338 = vpop.f32.mrf.mxu0
        %v1339 = vadd.f32 %v1170, %v1338
        %1340 = vmatmul.bf16.gmra.mxu0 %v843
        %v1341 = vpop.f32.mrf.mxu0
        %v1342 = vadd.f32 %v1173, %v1341
        %v1343 = vpop.f32.mrf.mxu0
        %v1344 = vadd.f32 %v1175, %v1343
        %1345 = vmatmul.bf16.gmra.mxu0 %v845
        %v1346 = vpop.f32.mrf.mxu0
        %v1347 = vadd.f32 %v1178, %v1346
        %v1348 = vpop.f32.mrf.mxu0
        %v1349 = vadd.f32 %v1180, %v1348
        %1350 = vmatmul.bf16.gmra.mxu0 %v847
        %v1351 = vpop.f32.mrf.mxu0
        %v1352 = vadd.f32 %v1183, %v1351
        %v1353 = vpop.f32.mrf.mxu0
        %v1354 = vadd.f32 %v1185, %v1353
        %1355 = vmatmul.bf16.gmra.mxu0 %v849
        %v1356 = vpop.f32.mrf.mxu0
        %v1357 = vadd.f32 %v1188, %v1356
        %v1358 = vpop.f32.mrf.mxu0
        %v1359 = vadd.f32 %v1190, %v1358
        %1360 = vmatmul.bf16.gmra.mxu0 %v851
        %v1361 = vpop.f32.mrf.mxu0
        %v1362 = vadd.f32 %v1193, %v1361
        %v1363 = vpop.f32.mrf.mxu0
        %v1364 = vadd.f32 %v1195, %v1363
        %1365 = vmatmul.bf16.gmra.mxu0 %v853
        %v1366 = vpop.f32.mrf.mxu0
        %v1367 = vadd.f32 %v1198, %v1366
        %v1368 = vpop.f32.mrf.mxu0
        %v1369 = vadd.f32 %v1200, %v1368
        %1370 = vmatmul.bf16.gmra.mxu0 %v855
        %v1371 = vpop.f32.mrf.mxu0
        %v1372 = vadd.f32 %v1203, %v1371
        %v1373 = vpop.f32.mrf.mxu0
        %v1374 = vadd.f32 %v1205, %v1373
        %1375 = vmatmul.bf16.gmra.mxu0 %v857
        %v1376 = vpop.f32.mrf.mxu0
        %v1377 = vadd.f32 %v1208, %v1376
        %v1378 = vpop.f32.mrf.mxu0
        %v1379 = vadd.f32 %v1210, %v1378
        %1380 = vmatmul.bf16.gmra.mxu0 %v859
        %v1381 = vpop.f32.mrf.mxu0
        %v1382 = vadd.f32 %v1213, %v1381
        %v1383 = vpop.f32.mrf.mxu0
        %v1384 = vadd.f32 %v1215, %v1383
        %1385 = vmatmul.bf16.gmra.mxu0 %v861
        %v1386 = vpop.f32.mrf.mxu0
        %v1387 = vadd.f32 %v1218, %v1386
        %v1388 = vpop.f32.mrf.mxu0
        %v1389 = vadd.f32 %v1220, %v1388
        %1390 = vmatmul.bf16.gmra.mxu0 %v863
        %v1391 = vpop.f32.mrf.mxu0
        %v1392 = vadd.f32 %v1223, %v1391
        %v1393 = vpop.f32.mrf.mxu0
        %v1394 = vadd.f32 %v1225, %v1393
        %1395 = vmatmul.bf16.gmra.mxu0 %v865
        %v1396 = vpop.f32.mrf.mxu0
        %v1397 = vadd.f32 %v1228, %v1396
        %v1398 = vpop.f32.mrf.mxu0
        %v1399 = vadd.f32 %v1230, %v1398
        %1400 = vmatmul.bf16.gmra.mxu0 %v867
        %v1401 = vpop.f32.mrf.mxu0
        %v1402 = vadd.f32 %v1233, %v1401
        %v1403 = vpop.f32.mrf.mxu0
        %v1404 = vadd.f32 %v1235, %v1403
        %1405 = vmatmul.bf16.gmra.mxu0 %v869
        %v1406 = vpop.f32.mrf.mxu0
        %v1407 = vadd.f32 %v1238, %v1406
        %v1408 = vpop.f32.mrf.mxu0
        %v1409 = vadd.f32 %v1240, %v1408
        %1410 = vmatmul.bf16.gmra.mxu0 %v871
        %v1411 = vpop.f32.mrf.mxu0
        %v1412 = vadd.f32 %v1243, %v1411
        %v1413 = vpop.f32.mrf.mxu0
        %v1414 = vadd.f32 %v1245, %v1413
        %1415 = vmatmul.bf16.gmra.mxu0 %v873
        %v1416 = vpop.f32.mrf.mxu0
        %v1417 = vadd.f32 %v1248, %v1416
        %v1418 = vpop.f32.mrf.mxu0
        %v1419 = vadd.f32 %v1250, %v1418
        %1420 = vmatmul.bf16.gmra.mxu0 %v875
        %v1421 = vpop.f32.mrf.mxu0
        %v1422 = vadd.f32 %v1253, %v1421
        %v1423 = vpop.f32.mrf.mxu0
        %v1424 = vadd.f32 %v1255, %v1423
        %1425 = vmatmul.bf16.gmra.mxu0 %v877
        %v1426 = vpop.f32.mrf.mxu0
        %v1427 = vadd.f32 %v1258, %v1426
        %v1428 = vpop.f32.mrf.mxu0
        %v1429 = vadd.f32 %v1260, %v1428
        %1430 = vmatmul.bf16.gmra.mxu0 %v879
        %v1431 = vpop.f32.mrf.mxu0
        %v1432 = vadd.f32 %v1263, %v1431
        %v1433 = vpop.f32.mrf.mxu0
        %v1434 = vadd.f32 %v1265, %v1433
        %1435 = vmatmul.bf16.gmra.mxu0 %v881
        %v1436 = vpop.f32.mrf.mxu0
        %v1437 = vadd.f32 %v1268, %v1436
        %v1438 = vpop.f32.mrf.mxu0
        %v1439 = vadd.f32 %v1270, %v1438
        %1440 = vmatmul.bf16.gmra.mxu0 %v883
        %v1441 = vpop.f32.mrf.mxu0
        %v1442 = vadd.f32 %v1273, %v1441
        %v1443 = vpop.f32.mrf.mxu0
        %v1444 = vadd.f32 %v1275, %v1443
        %1445 = vdwg.mxu0
        %1446 = vmatpush.bf16.msra.mxu0 %v1059
        %1447 = vmatpush.bf16.msra.mxu0 %v1057
        %1448 = vmatpush.bf16.msra.mxu0 %v1055
        %1449 = vmatpush.bf16.msra.mxu0 %v1053
        %1450 = vmatpush.bf16.msra.mxu0 %v1051
        %1451 = vmatpush.bf16.msra.mxu0 %v1049
        %1452 = vmatpush.bf16.msra.mxu0 %v1047
        %1453 = vmatpush.bf16.msra.mxu0 %v1045
        %1454 = vmatmul.bf16.gmra.mxu0 %v820
        %v1455 = vpop.f32.mrf.mxu0
        %v1456 = vadd.f32 %v625, %v1455
        %v1457 = vpop.f32.mrf.mxu0
        %v1458 = vadd.f32 %v625, %v1457
        %1459 = vmatmul.bf16.gmra.mxu0 %v822
        %v1460 = vpop.f32.mrf.mxu0
        %v1461 = vadd.f32 %v625, %v1460
        %v1462 = vpop.f32.mrf.mxu0
        %v1463 = vadd.f32 %v625, %v1462
        %1464 = vmatmul.bf16.gmra.mxu0 %v824
        %v1465 = vpop.f32.mrf.mxu0
        %v1466 = vadd.f32 %v625, %v1465
        %v1467 = vpop.f32.mrf.mxu0
        %v1468 = vadd.f32 %v625, %v1467
        %1469 = vmatmul.bf16.gmra.mxu0 %v826
        %v1470 = vpop.f32.mrf.mxu0
        %v1471 = vadd.f32 %v625, %v1470
        %v1472 = vpop.f32.mrf.mxu0
        %v1473 = vadd.f32 %v625, %v1472
        %1474 = vmatmul.bf16.gmra.mxu0 %v828
        %v1475 = vpop.f32.mrf.mxu0
        %v1476 = vadd.f32 %v625, %v1475
        %v1477 = vpop.f32.mrf.mxu0
        %v1478 = vadd.f32 %v625, %v1477
        %1479 = vmatmul.bf16.gmra.mxu0 %v830
        %v1480 = vpop.f32.mrf.mxu0
        %v1481 = vadd.f32 %v625, %v1480
        %v1482 = vpop.f32.mrf.mxu0
        %v1483 = vadd.f32 %v625, %v1482
        %1484 = vmatmul.bf16.gmra.mxu0 %v832
        %v1485 = vpop.f32.mrf.mxu0
        %v1486 = vadd.f32 %v625, %v1485
        %v1487 = vpop.f32.mrf.mxu0
        %v1488 = vadd.f32 %v625, %v1487
        %1489 = vmatmul.bf16.gmra.mxu0 %v834
        %v1490 = vpop.f32.mrf.mxu0
        %v1491 = vadd.f32 %v625, %v1490
        %v1492 = vpop.f32.mrf.mxu0
        %v1493 = vadd.f32 %v625, %v1492
        %1494 = vmatmul.bf16.gmra.mxu0 %v836
        %v1495 = vpop.f32.mrf.mxu0
        %v1496 = vadd.f32 %v625, %v1495
        %v1497 = vpop.f32.mrf.mxu0
        %v1498 = vadd.f32 %v625, %v1497
        %1499 = vmatmul.bf16.gmra.mxu0 %v838
        %v1500 = vpop.f32.mrf.mxu0
        %v1501 = vadd.f32 %v625, %v1500
        %v1502 = vpop.f32.mrf.mxu0
        %v1503 = vadd.f32 %v625, %v1502
        %1504 = vmatmul.bf16.gmra.mxu0 %v840
        %v1505 = vpop.f32.mrf.mxu0
        %v1506 = vadd.f32 %v625, %v1505
        %v1507 = vpop.f32.mrf.mxu0
        %v1508 = vadd.f32 %v625, %v1507
        %1509 = vmatmul.bf16.gmra.mxu0 %v842
        %v1510 = vpop.f32.mrf.mxu0
        %v1511 = vadd.f32 %v625, %v1510
        %v1512 = vpop.f32.mrf.mxu0
        %v1513 = vadd.f32 %v625, %v1512
        %1514 = vmatmul.bf16.gmra.mxu0 %v844
        %v1515 = vpop.f32.mrf.mxu0
        %v1516 = vadd.f32 %v625, %v1515
        %v1517 = vpop.f32.mrf.mxu0
        %v1518 = vadd.f32 %v625, %v1517
        %1519 = vmatmul.bf16.gmra.mxu0 %v846
        %v1520 = vpop.f32.mrf.mxu0
        %v1521 = vadd.f32 %v625, %v1520
        %v1522 = vpop.f32.mrf.mxu0
        %v1523 = vadd.f32 %v625, %v1522
        %1524 = vmatmul.bf16.gmra.mxu0 %v848
        %v1525 = vpop.f32.mrf.mxu0
        %v1526 = vadd.f32 %v625, %v1525
        %v1527 = vpop.f32.mrf.mxu0
        %v1528 = vadd.f32 %v625, %v1527
        %1529 = vmatmul.bf16.gmra.mxu0 %v850
        %v1530 = vpop.f32.mrf.mxu0
        %v1531 = vadd.f32 %v625, %v1530
        %v1532 = vpop.f32.mrf.mxu0
        %v1533 = vadd.f32 %v625, %v1532
        %1534 = vmatmul.bf16.gmra.mxu0 %v852
        %v1535 = vpop.f32.mrf.mxu0
        %v1536 = vadd.f32 %v625, %v1535
        %v1537 = vpop.f32.mrf.mxu0
        %v1538 = vadd.f32 %v625, %v1537
        %1539 = vmatmul.bf16.gmra.mxu0 %v854
        %v1540 = vpop.f32.mrf.mxu0
        %v1541 = vadd.f32 %v625, %v1540
        %v1542 = vpop.f32.mrf.mxu0
        %v1543 = vadd.f32 %v625, %v1542
        %1544 = vmatmul.bf16.gmra.mxu0 %v856
        %v1545 = vpop.f32.mrf.mxu0
        %v1546 = vadd.f32 %v625, %v1545
        %v1547 = vpop.f32.mrf.mxu0
        %v1548 = vadd.f32 %v625, %v1547
        %1549 = vmatmul.bf16.gmra.mxu0 %v858
        %v1550 = vpop.f32.mrf.mxu0
        %v1551 = vadd.f32 %v625, %v1550
        %v1552 = vpop.f32.mrf.mxu0
        %v1553 = vadd.f32 %v625, %v1552
        %1554 = vmatmul.bf16.gmra.mxu0 %v860
        %v1555 = vpop.f32.mrf.mxu0
        %v1556 = vadd.f32 %v625, %v1555
        %v1557 = vpop.f32.mrf.mxu0
        %v1558 = vadd.f32 %v625, %v1557
        %1559 = vmatmul.bf16.gmra.mxu0 %v862
        %v1560 = vpop.f32.mrf.mxu0
        %v1561 = vadd.f32 %v625, %v1560
        %v1562 = vpop.f32.mrf.mxu0
        %v1563 = vadd.f32 %v625, %v1562
        %1564 = vmatmul.bf16.gmra.mxu0 %v864
        %v1565 = vpop.f32.mrf.mxu0
        %v1566 = vadd.f32 %v625, %v1565
        %v1567 = vpop.f32.mrf.mxu0
        %v1568 = vadd.f32 %v625, %v1567
        %1569 = vmatmul.bf16.gmra.mxu0 %v866
        %v1570 = vpop.f32.mrf.mxu0
        %v1571 = vadd.f32 %v625, %v1570
        %v1572 = vpop.f32.mrf.mxu0
        %v1573 = vadd.f32 %v625, %v1572
        %1574 = vmatmul.bf16.gmra.mxu0 %v868
        %v1575 = vpop.f32.mrf.mxu0
        %v1576 = vadd.f32 %v625, %v1575
        %v1577 = vpop.f32.mrf.mxu0
        %v1578 = vadd.f32 %v625, %v1577
        %1579 = vmatmul.bf16.gmra.mxu0 %v870
        %v1580 = vpop.f32.mrf.mxu0
        %v1581 = vadd.f32 %v625, %v1580
        %v1582 = vpop.f32.mrf.mxu0
        %v1583 = vadd.f32 %v625, %v1582
        %1584 = vmatmul.bf16.gmra.mxu0 %v872
        %v1585 = vpop.f32.mrf.mxu0
        %v1586 = vadd.f32 %v625, %v1585
        %v1587 = vpop.f32.mrf.mxu0
        %v1588 = vadd.f32 %v625, %v1587
        %1589 = vmatmul.bf16.gmra.mxu0 %v874
        %v1590 = vpop.f32.mrf.mxu0
        %v1591 = vadd.f32 %v625, %v1590
        %v1592 = vpop.f32.mrf.mxu0
        %v1593 = vadd.f32 %v625, %v1592
        %1594 = vmatmul.bf16.gmra.mxu0 %v876
        %v1595 = vpop.f32.mrf.mxu0
        %v1596 = vadd.f32 %v625, %v1595
        %v1597 = vpop.f32.mrf.mxu0
        %v1598 = vadd.f32 %v625, %v1597
        %1599 = vmatmul.bf16.gmra.mxu0 %v878
        %v1600 = vpop.f32.mrf.mxu0
        %v1601 = vadd.f32 %v625, %v1600
        %v1602 = vpop.f32.mrf.mxu0
        %v1603 = vadd.f32 %v625, %v1602
        %1604 = vmatmul.bf16.gmra.mxu0 %v880
        %v1605 = vpop.f32.mrf.mxu0
        %v1606 = vadd.f32 %v625, %v1605
        %v1607 = vpop.f32.mrf.mxu0
        %v1608 = vadd.f32 %v625, %v1607
        %1609 = vmatmul.bf16.gmra.mxu0 %v882
        %v1610 = vpop.f32.mrf.mxu0
        %v1611 = vadd.f32 %v625, %v1610
        %v1612 = vpop.f32.mrf.mxu0
        %v1613 = vadd.f32 %v625, %v1612
        %1614 = vdwg.mxu0
        %1615 = vmatpush.bf16.msra.mxu0 %v1075
        %1616 = vmatpush.bf16.msra.mxu0 %v1073
        %1617 = vmatpush.bf16.msra.mxu0 %v1071
        %1618 = vmatpush.bf16.msra.mxu0 %v1069
        %1619 = vmatpush.bf16.msra.mxu0 %v1067
        %1620 = vmatpush.bf16.msra.mxu0 %v1065
        %1621 = vmatpush.bf16.msra.mxu0 %v1063
        %1622 = vmatpush.bf16.msra.mxu0 %v1061
        %1623 = vmatmul.bf16.gmra.mxu0 %v821
        %v1624 = vpop.f32.mrf.mxu0
        %v1625 = vadd.f32 %v1456, %v1624
        %v1626 = vpop.f32.mrf.mxu0
        %v1627 = vadd.f32 %v1458, %v1626
        %1628 = vmatmul.bf16.gmra.mxu0 %v823
        %v1629 = vpop.f32.mrf.mxu0
        %v1630 = vadd.f32 %v1461, %v1629
        %v1631 = vpop.f32.mrf.mxu0
        %v1632 = vadd.f32 %v1463, %v1631
        %1633 = vmatmul.bf16.gmra.mxu0 %v825
        %v1634 = vpop.f32.mrf.mxu0
        %v1635 = vadd.f32 %v1466, %v1634
        %v1636 = vpop.f32.mrf.mxu0
        %v1637 = vadd.f32 %v1468, %v1636
        %1638 = vmatmul.bf16.gmra.mxu0 %v827
        %v1639 = vpop.f32.mrf.mxu0
        %v1640 = vadd.f32 %v1471, %v1639
        %v1641 = vpop.f32.mrf.mxu0
        %v1642 = vadd.f32 %v1473, %v1641
        %1643 = vmatmul.bf16.gmra.mxu0 %v829
        %v1644 = vpop.f32.mrf.mxu0
        %v1645 = vadd.f32 %v1476, %v1644
        %v1646 = vpop.f32.mrf.mxu0
        %v1647 = vadd.f32 %v1478, %v1646
        %1648 = vmatmul.bf16.gmra.mxu0 %v831
        %v1649 = vpop.f32.mrf.mxu0
        %v1650 = vadd.f32 %v1481, %v1649
        %v1651 = vpop.f32.mrf.mxu0
        %v1652 = vadd.f32 %v1483, %v1651
        %1653 = vmatmul.bf16.gmra.mxu0 %v833
        %v1654 = vpop.f32.mrf.mxu0
        %v1655 = vadd.f32 %v1486, %v1654
        %v1656 = vpop.f32.mrf.mxu0
        %v1657 = vadd.f32 %v1488, %v1656
        %1658 = vmatmul.bf16.gmra.mxu0 %v835
        %v1659 = vpop.f32.mrf.mxu0
        %v1660 = vadd.f32 %v1491, %v1659
        %v1661 = vpop.f32.mrf.mxu0
        %v1662 = vadd.f32 %v1493, %v1661
        %1663 = vmatmul.bf16.gmra.mxu0 %v837
        %v1664 = vpop.f32.mrf.mxu0
        %v1665 = vadd.f32 %v1496, %v1664
        %v1666 = vpop.f32.mrf.mxu0
        %v1667 = vadd.f32 %v1498, %v1666
        %1668 = vmatmul.bf16.gmra.mxu0 %v839
        %v1669 = vpop.f32.mrf.mxu0
        %v1670 = vadd.f32 %v1501, %v1669
        %v1671 = vpop.f32.mrf.mxu0
        %v1672 = vadd.f32 %v1503, %v1671
        %1673 = vmatmul.bf16.gmra.mxu0 %v841
        %v1674 = vpop.f32.mrf.mxu0
        %v1675 = vadd.f32 %v1506, %v1674
        %v1676 = vpop.f32.mrf.mxu0
        %v1677 = vadd.f32 %v1508, %v1676
        %1678 = vmatmul.bf16.gmra.mxu0 %v843
        %v1679 = vpop.f32.mrf.mxu0
        %v1680 = vadd.f32 %v1511, %v1679
        %v1681 = vpop.f32.mrf.mxu0
        %v1682 = vadd.f32 %v1513, %v1681
        %1683 = vmatmul.bf16.gmra.mxu0 %v845
        %v1684 = vpop.f32.mrf.mxu0
        %v1685 = vadd.f32 %v1516, %v1684
        %v1686 = vpop.f32.mrf.mxu0
        %v1687 = vadd.f32 %v1518, %v1686
        %1688 = vmatmul.bf16.gmra.mxu0 %v847
        %v1689 = vpop.f32.mrf.mxu0
        %v1690 = vadd.f32 %v1521, %v1689
        %v1691 = vpop.f32.mrf.mxu0
        %v1692 = vadd.f32 %v1523, %v1691
        %1693 = vmatmul.bf16.gmra.mxu0 %v849
        %v1694 = vpop.f32.mrf.mxu0
        %v1695 = vadd.f32 %v1526, %v1694
        %v1696 = vpop.f32.mrf.mxu0
        %v1697 = vadd.f32 %v1528, %v1696
        %1698 = vmatmul.bf16.gmra.mxu0 %v851
        %v1699 = vpop.f32.mrf.mxu0
        %v1700 = vadd.f32 %v1531, %v1699
        %v1701 = vpop.f32.mrf.mxu0
        %v1702 = vadd.f32 %v1533, %v1701
        %1703 = vmatmul.bf16.gmra.mxu0 %v853
        %v1704 = vpop.f32.mrf.mxu0
        %v1705 = vadd.f32 %v1536, %v1704
        %v1706 = vpop.f32.mrf.mxu0
        %v1707 = vadd.f32 %v1538, %v1706
        %1708 = vmatmul.bf16.gmra.mxu0 %v855
        %v1709 = vpop.f32.mrf.mxu0
        %v1710 = vadd.f32 %v1541, %v1709
        %v1711 = vpop.f32.mrf.mxu0
        %v1712 = vadd.f32 %v1543, %v1711
        %1713 = vmatmul.bf16.gmra.mxu0 %v857
        %v1714 = vpop.f32.mrf.mxu0
        %v1715 = vadd.f32 %v1546, %v1714
        %v1716 = vpop.f32.mrf.mxu0
        %v1717 = vadd.f32 %v1548, %v1716
        %1718 = vmatmul.bf16.gmra.mxu0 %v859
        %v1719 = vpop.f32.mrf.mxu0
        %v1720 = vadd.f32 %v1551, %v1719
        %v1721 = vpop.f32.mrf.mxu0
        %v1722 = vadd.f32 %v1553, %v1721
        %1723 = vmatmul.bf16.gmra.mxu0 %v861
        %v1724 = vpop.f32.mrf.mxu0
        %v1725 = vadd.f32 %v1556, %v1724
        %v1726 = vpop.f32.mrf.mxu0
        %v1727 = vadd.f32 %v1558, %v1726
        %1728 = vmatmul.bf16.gmra.mxu0 %v863
        %v1729 = vpop.f32.mrf.mxu0
        %v1730 = vadd.f32 %v1561, %v1729
        %v1731 = vpop.f32.mrf.mxu0
        %v1732 = vadd.f32 %v1563, %v1731
        %1733 = vmatmul.bf16.gmra.mxu0 %v865
        %v1734 = vpop.f32.mrf.mxu0
        %v1735 = vadd.f32 %v1566, %v1734
        %v1736 = vpop.f32.mrf.mxu0
        %v1737 = vadd.f32 %v1568, %v1736
        %1738 = vmatmul.bf16.gmra.mxu0 %v867
        %v1739 = vpop.f32.mrf.mxu0
        %v1740 = vadd.f32 %v1571, %v1739
        %v1741 = vpop.f32.mrf.mxu0
        %v1742 = vadd.f32 %v1573, %v1741
        %1743 = vmatmul.bf16.gmra.mxu0 %v869
        %v1744 = vpop.f32.mrf.mxu0
        %v1745 = vadd.f32 %v1576, %v1744
        %v1746 = vpop.f32.mrf.mxu0
        %v1747 = vadd.f32 %v1578, %v1746
        %1748 = vmatmul.bf16.gmra.mxu0 %v871
        %v1749 = vpop.f32.mrf.mxu0
        %v1750 = vadd.f32 %v1581, %v1749
        %v1751 = vpop.f32.mrf.mxu0
        %v1752 = vadd.f32 %v1583, %v1751
        %1753 = vmatmul.bf16.gmra.mxu0 %v873
        %v1754 = vpop.f32.mrf.mxu0
        %v1755 = vadd.f32 %v1586, %v1754
        %v1756 = vpop.f32.mrf.mxu0
        %v1757 = vadd.f32 %v1588, %v1756
        %1758 = vmatmul.bf16.gmra.mxu0 %v875
        %v1759 = vpop.f32.mrf.mxu0
        %v1760 = vadd.f32 %v1591, %v1759
        %v1761 = vpop.f32.mrf.mxu0
        %v1762 = vadd.f32 %v1593, %v1761
        %1763 = vmatmul.bf16.gmra.mxu0 %v877
        %v1764 = vpop.f32.mrf.mxu0
        %v1765 = vadd.f32 %v1596, %v1764
        %v1766 = vpop.f32.mrf.mxu0
        %v1767 = vadd.f32 %v1598, %v1766
        %1768 = vmatmul.bf16.gmra.mxu0 %v879
        %v1769 = vpop.f32.mrf.mxu0
        %v1770 = vadd.f32 %v1601, %v1769
        %v1771 = vpop.f32.mrf.mxu0
        %v1772 = vadd.f32 %v1603, %v1771
        %1773 = vmatmul.bf16.gmra.mxu0 %v881
        %v1774 = vpop.f32.mrf.mxu0
        %v1775 = vadd.f32 %v1606, %v1774
        %v1776 = vpop.f32.mrf.mxu0
        %v1777 = vadd.f32 %v1608, %v1776
        %1778 = vmatmul.bf16.gmra.mxu0 %v883
        %v1779 = vpop.f32.mrf.mxu0
        %v1780 = vadd.f32 %v1611, %v1779
        %v1781 = vpop.f32.mrf.mxu0
        %v1782 = vadd.f32 %v1613, %v1781
        %1783 = vdwg.mxu0
        %v1784 = vmax.f32 %v1287, 0.0
        %v1785 = vmax.f32 %v1625, 0.0
        %v1786 = vmax.f32 %v1289, 0.0
        %v1787 = vmax.f32 %v1627, 0.0
        %v1788 = vmax.f32 %v1292, 0.0
        %v1789 = vmax.f32 %v1630, 0.0
        %v1790 = vmax.f32 %v1294, 0.0
        %v1791 = vmax.f32 %v1632, 0.0
        %v1792 = vmax.f32 %v1297, 0.0
        %v1793 = vmax.f32 %v1635, 0.0
        %v1794 = vmax.f32 %v1299, 0.0
        %v1795 = vmax.f32 %v1637, 0.0
        %v1796 = vmax.f32 %v1302, 0.0
        %v1797 = vmax.f32 %v1640, 0.0
        %v1798 = vmax.f32 %v1304, 0.0
        %v1799 = vmax.f32 %v1642, 0.0
        %v1800 = vmax.f32 %v1307, 0.0
        %v1801 = vmax.f32 %v1645, 0.0
        %v1802 = vmax.f32 %v1309, 0.0
        %v1803 = vmax.f32 %v1647, 0.0
        %v1804 = vmax.f32 %v1312, 0.0
        %v1805 = vmax.f32 %v1650, 0.0
        %v1806 = vmax.f32 %v1314, 0.0
        %v1807 = vmax.f32 %v1652, 0.0
        %v1808 = vmax.f32 %v1317, 0.0
        %v1809 = vmax.f32 %v1655, 0.0
        %v1810 = vmax.f32 %v1319, 0.0
        %v1811 = vmax.f32 %v1657, 0.0
        %v1812 = vmax.f32 %v1322, 0.0
        %v1813 = vmax.f32 %v1660, 0.0
        %v1814 = vmax.f32 %v1324, 0.0
        %v1815 = vmax.f32 %v1662, 0.0
        %v1816 = vmax.f32 %v1327, 0.0
        %v1817 = vmax.f32 %v1665, 0.0
        %v1818 = vmax.f32 %v1329, 0.0
        %v1819 = vmax.f32 %v1667, 0.0
        %v1820 = vmax.f32 %v1332, 0.0
        %v1821 = vmax.f32 %v1670, 0.0
        %v1822 = vmax.f32 %v1334, 0.0
        %v1823 = vmax.f32 %v1672, 0.0
        %v1824 = vmax.f32 %v1337, 0.0
        %v1825 = vmax.f32 %v1675, 0.0
        %v1826 = vmax.f32 %v1339, 0.0
        %v1827 = vmax.f32 %v1677, 0.0
        %v1828 = vmax.f32 %v1342, 0.0
        %v1829 = vmax.f32 %v1680, 0.0
        %v1830 = vmax.f32 %v1344, 0.0
        %v1831 = vmax.f32 %v1682, 0.0
        %v1832 = vmax.f32 %v1347, 0.0
        %v1833 = vmax.f32 %v1685, 0.0
        %v1834 = vmax.f32 %v1349, 0.0
        %v1835 = vmax.f32 %v1687, 0.0
        %v1836 = vmax.f32 %v1352, 0.0
        %v1837 = vmax.f32 %v1690, 0.0
        %v1838 = vmax.f32 %v1354, 0.0
        %v1839 = vmax.f32 %v1692, 0.0
        %v1840 = vmax.f32 %v1357, 0.0
        %v1841 = vmax.f32 %v1695, 0.0
        %v1842 = vmax.f32 %v1359, 0.0
        %v1843 = vmax.f32 %v1697, 0.0
        %v1844 = vmax.f32 %v1362, 0.0
        %v1845 = vmax.f32 %v1700, 0.0
        %v1846 = vmax.f32 %v1364, 0.0
        %v1847 = vmax.f32 %v1702, 0.0
        %v1848 = vmax.f32 %v1367, 0.0
        %v1849 = vmax.f32 %v1705, 0.0
        %v1850 = vmax.f32 %v1369, 0.0
        %v1851 = vmax.f32 %v1707, 0.0
        %v1852 = vmax.f32 %v1372, 0.0
        %v1853 = vmax.f32 %v1710, 0.0
        %v1854 = vmax.f32 %v1374, 0.0
        %v1855 = vmax.f32 %v1712, 0.0
        %v1856 = vmax.f32 %v1377, 0.0
        %v1857 = vmax.f32 %v1715, 0.0
        %v1858 = vmax.f32 %v1379, 0.0
        %v1859 = vmax.f32 %v1717, 0.0
        %v1860 = vmax.f32 %v1382, 0.0
        %v1861 = vmax.f32 %v1720, 0.0
        %v1862 = vmax.f32 %v1384, 0.0
        %v1863 = vmax.f32 %v1722, 0.0
        %v1864 = vmax.f32 %v1387, 0.0
        %v1865 = vmax.f32 %v1725, 0.0
        %v1866 = vmax.f32 %v1389, 0.0
        %v1867 = vmax.f32 %v1727, 0.0
        %v1868 = vmax.f32 %v1392, 0.0
        %v1869 = vmax.f32 %v1730, 0.0
        %v1870 = vmax.f32 %v1394, 0.0
        %v1871 = vmax.f32 %v1732, 0.0
        %v1872 = vmax.f32 %v1397, 0.0
        %v1873 = vmax.f32 %v1735, 0.0
        %v1874 = vmax.f32 %v1399, 0.0
        %v1875 = vmax.f32 %v1737, 0.0
        %v1876 = vmax.f32 %v1402, 0.0
        %v1877 = vmax.f32 %v1740, 0.0
        %v1878 = vmax.f32 %v1404, 0.0
        %v1879 = vmax.f32 %v1742, 0.0
        %v1880 = vmax.f32 %v1407, 0.0
        %v1881 = vmax.f32 %v1745, 0.0
        %v1882 = vmax.f32 %v1409, 0.0
        %v1883 = vmax.f32 %v1747, 0.0
        %v1884 = vmax.f32 %v1412, 0.0
        %v1885 = vmax.f32 %v1750, 0.0
        %v1886 = vmax.f32 %v1414, 0.0
        %v1887 = vmax.f32 %v1752, 0.0
        %v1888 = vmax.f32 %v1417, 0.0
        %v1889 = vmax.f32 %v1755, 0.0
        %v1890 = vmax.f32 %v1419, 0.0
        %v1891 = vmax.f32 %v1757, 0.0
        %v1892 = vmax.f32 %v1422, 0.0
        %v1893 = vmax.f32 %v1760, 0.0
        %v1894 = vmax.f32 %v1424, 0.0
        %v1895 = vmax.f32 %v1762, 0.0
        %v1896 = vmax.f32 %v1427, 0.0
        %v1897 = vmax.f32 %v1765, 0.0
        %v1898 = vmax.f32 %v1429, 0.0
        %v1899 = vmax.f32 %v1767, 0.0
        %v1900 = vmax.f32 %v1432, 0.0
        %v1901 = vmax.f32 %v1770, 0.0
        %v1902 = vmax.f32 %v1434, 0.0
        %v1903 = vmax.f32 %v1772, 0.0
        %v1904 = vmax.f32 %v1437, 0.0
        %v1905 = vmax.f32 %v1775, 0.0
        %v1906 = vmax.f32 %v1439, 0.0
        %v1907 = vmax.f32 %v1777, 0.0
        %v1908 = vmax.f32 %v1442, 0.0
        %v1909 = vmax.f32 %v1780, 0.0
        %v1910 = vmax.f32 %v1444, 0.0
        %v1911 = vmax.f32 %v1782, 0.0
        %v1912 = vld [vmem:[#allocation2] sm:$0xff]
        %v1913 = vld [vmem:[#allocation2 + $0x8] sm:$0xff]
        %v1914 = vld [vmem:[#allocation2 + $0x10] sm:$0xff]
        %v1915 = vld [vmem:[#allocation2 + $0x18] sm:$0xff]
        %v1916 = vld [vmem:[#allocation2 + $0x20] sm:$0xff]
        %v1917 = vld [vmem:[#allocation2 + $0x28] sm:$0xff]
        %v1918 = vld [vmem:[#allocation2 + $0x30] sm:$0xff]
        %v1919 = vld [vmem:[#allocation2 + $0x38] sm:$0xff]
        %v1920 = vld [vmem:[#allocation2 + $0x40] sm:$0xff]
        %v1921 = vld [vmem:[#allocation2 + $0x48] sm:$0xff]
        %v1922 = vld [vmem:[#allocation2 + $0x50] sm:$0xff]
        %v1923 = vld [vmem:[#allocation2 + $0x58] sm:$0xff]
        %v1924 = vld [vmem:[#allocation2 + $0x60] sm:$0xff]
        %v1925 = vld [vmem:[#allocation2 + $0x68] sm:$0xff]
        %v1926 = vld [vmem:[#allocation2 + $0x70] sm:$0xff]
        %v1927 = vld [vmem:[#allocation2 + $0x78] sm:$0xff]
        %v1928 = vld [vmem:[#allocation2 + $0x80] sm:$0xff]
        %v1929 = vld [vmem:[#allocation2 + $0x88] sm:$0xff]
        %v1930 = vld [vmem:[#allocation2 + $0x90] sm:$0xff]
        %v1931 = vld [vmem:[#allocation2 + $0x98] sm:$0xff]
        %v1932 = vld [vmem:[#allocation2 + $0xa0] sm:$0xff]
        %v1933 = vld [vmem:[#allocation2 + $0xa8] sm:$0xff]
        %v1934 = vld [vmem:[#allocation2 + $0xb0] sm:$0xff]
        %v1935 = vld [vmem:[#allocation2 + $0xb8] sm:$0xff]
        %v1936 = vld [vmem:[#allocation2 + $0xc0] sm:$0xff]
        %v1937 = vld [vmem:[#allocation2 + $0xc8] sm:$0xff]
        %v1938 = vld [vmem:[#allocation2 + $0xd0] sm:$0xff]
        %v1939 = vld [vmem:[#allocation2 + $0xd8] sm:$0xff]
        %v1940 = vld [vmem:[#allocation2 + $0xe0] sm:$0xff]
        %v1941 = vld [vmem:[#allocation2 + $0xe8] sm:$0xff]
        %v1942 = vld [vmem:[#allocation2 + $0xf0] sm:$0xff]
        %v1943 = vld [vmem:[#allocation2 + $0xf8] sm:$0xff]
        %v1944 = vld [vmem:[#allocation2 + $0x100] sm:$0xff]
        %v1945 = vld [vmem:[#allocation2 + $0x108] sm:$0xff]
        %v1946 = vld [vmem:[#allocation2 + $0x110] sm:$0xff]
        %v1947 = vld [vmem:[#allocation2 + $0x118] sm:$0xff]
        %v1948 = vld [vmem:[#allocation2 + $0x120] sm:$0xff]
        %v1949 = vld [vmem:[#allocation2 + $0x128] sm:$0xff]
        %v1950 = vld [vmem:[#allocation2 + $0x130] sm:$0xff]
        %v1951 = vld [vmem:[#allocation2 + $0x138] sm:$0xff]
        %v1952 = vld [vmem:[#allocation2 + $0x140] sm:$0xff]
        %v1953 = vld [vmem:[#allocation2 + $0x148] sm:$0xff]
        %v1954 = vld [vmem:[#allocation2 + $0x150] sm:$0xff]
        %v1955 = vld [vmem:[#allocation2 + $0x158] sm:$0xff]
        %v1956 = vld [vmem:[#allocation2 + $0x160] sm:$0xff]
        %v1957 = vld [vmem:[#allocation2 + $0x168] sm:$0xff]
        %v1958 = vld [vmem:[#allocation2 + $0x170] sm:$0xff]
        %v1959 = vld [vmem:[#allocation2 + $0x178] sm:$0xff]
        %v1960 = vld [vmem:[#allocation2 + $0x180] sm:$0xff]
        %v1961 = vld [vmem:[#allocation2 + $0x188] sm:$0xff]
        %v1962 = vld [vmem:[#allocation2 + $0x190] sm:$0xff]
        %v1963 = vld [vmem:[#allocation2 + $0x198] sm:$0xff]
        %v1964 = vld [vmem:[#allocation2 + $0x1a0] sm:$0xff]
        %v1965 = vld [vmem:[#allocation2 + $0x1a8] sm:$0xff]
        %v1966 = vld [vmem:[#allocation2 + $0x1b0] sm:$0xff]
        %v1967 = vld [vmem:[#allocation2 + $0x1b8] sm:$0xff]
        %v1968 = vld [vmem:[#allocation2 + $0x1c0] sm:$0xff]
        %v1969 = vld [vmem:[#allocation2 + $0x1c8] sm:$0xff]
        %v1970 = vld [vmem:[#allocation2 + $0x1d0] sm:$0xff]
        %v1971 = vld [vmem:[#allocation2 + $0x1d8] sm:$0xff]
        %v1972 = vld [vmem:[#allocation2 + $0x1e0] sm:$0xff]
        %v1973 = vld [vmem:[#allocation2 + $0x1e8] sm:$0xff]
        %v1974 = vld [vmem:[#allocation2 + $0x1f0] sm:$0xff]
        %v1975 = vld [vmem:[#allocation2 + $0x1f8] sm:$0xff]
        %v1976 = vld [vmem:[#allocation2 + $0x200] sm:$0xff]
        %v1977 = vld [vmem:[#allocation2 + $0x208] sm:$0xff]
        %v1978 = vld [vmem:[#allocation2 + $0x210] sm:$0xff]
        %v1979 = vld [vmem:[#allocation2 + $0x218] sm:$0xff]
        %v1980 = vld [vmem:[#allocation2 + $0x220] sm:$0xff]
        %v1981 = vld [vmem:[#allocation2 + $0x228] sm:$0xff]
        %v1982 = vld [vmem:[#allocation2 + $0x230] sm:$0xff]
        %v1983 = vld [vmem:[#allocation2 + $0x238] sm:$0xff]
        %v1984 = vld [vmem:[#allocation2 + $0x240] sm:$0xff]
        %v1985 = vld [vmem:[#allocation2 + $0x248] sm:$0xff]
        %v1986 = vld [vmem:[#allocation2 + $0x250] sm:$0xff]
        %v1987 = vld [vmem:[#allocation2 + $0x258] sm:$0xff]
        %v1988 = vld [vmem:[#allocation2 + $0x260] sm:$0xff]
        %v1989 = vld [vmem:[#allocation2 + $0x268] sm:$0xff]
        %v1990 = vld [vmem:[#allocation2 + $0x270] sm:$0xff]
        %v1991 = vld [vmem:[#allocation2 + $0x278] sm:$0xff]
        %v1992 = vld [vmem:[#allocation2 + $0x280] sm:$0xff]
        %v1993 = vld [vmem:[#allocation2 + $0x288] sm:$0xff]
        %v1994 = vld [vmem:[#allocation2 + $0x290] sm:$0xff]
        %v1995 = vld [vmem:[#allocation2 + $0x298] sm:$0xff]
        %v1996 = vld [vmem:[#allocation2 + $0x2a0] sm:$0xff]
        %v1997 = vld [vmem:[#allocation2 + $0x2a8] sm:$0xff]
        %v1998 = vld [vmem:[#allocation2 + $0x2b0] sm:$0xff]
        %v1999 = vld [vmem:[#allocation2 + $0x2b8] sm:$0xff]
        %v2000 = vld [vmem:[#allocation2 + $0x2c0] sm:$0xff]
        %v2001 = vld [vmem:[#allocation2 + $0x2c8] sm:$0xff]
        %v2002 = vld [vmem:[#allocation2 + $0x2d0] sm:$0xff]
        %v2003 = vld [vmem:[#allocation2 + $0x2d8] sm:$0xff]
        %v2004 = vld [vmem:[#allocation2 + $0x2e0] sm:$0xff]
        %v2005 = vld [vmem:[#allocation2 + $0x2e8] sm:$0xff]
        %v2006 = vld [vmem:[#allocation2 + $0x2f0] sm:$0xff]
        %v2007 = vld [vmem:[#allocation2 + $0x2f8] sm:$0xff]
        %v2008 = vld [vmem:[#allocation2 + $0x300] sm:$0xff]
        %v2009 = vld [vmem:[#allocation2 + $0x308] sm:$0xff]
        %v2010 = vld [vmem:[#allocation2 + $0x310] sm:$0xff]
        %v2011 = vld [vmem:[#allocation2 + $0x318] sm:$0xff]
        %v2012 = vld [vmem:[#allocation2 + $0x320] sm:$0xff]
        %v2013 = vld [vmem:[#allocation2 + $0x328] sm:$0xff]
        %v2014 = vld [vmem:[#allocation2 + $0x330] sm:$0xff]
        %v2015 = vld [vmem:[#allocation2 + $0x338] sm:$0xff]
        %v2016 = vld [vmem:[#allocation2 + $0x340] sm:$0xff]
        %v2017 = vld [vmem:[#allocation2 + $0x348] sm:$0xff]
        %v2018 = vld [vmem:[#allocation2 + $0x350] sm:$0xff]
        %v2019 = vld [vmem:[#allocation2 + $0x358] sm:$0xff]
        %v2020 = vld [vmem:[#allocation2 + $0x360] sm:$0xff]
        %v2021 = vld [vmem:[#allocation2 + $0x368] sm:$0xff]
        %v2022 = vld [vmem:[#allocation2 + $0x370] sm:$0xff]
        %v2023 = vld [vmem:[#allocation2 + $0x378] sm:$0xff]
        %v2024 = vld [vmem:[#allocation2 + $0x380] sm:$0xff]
        %v2025 = vld [vmem:[#allocation2 + $0x388] sm:$0xff]
        %v2026 = vld [vmem:[#allocation2 + $0x390] sm:$0xff]
        %v2027 = vld [vmem:[#allocation2 + $0x398] sm:$0xff]
        %v2028 = vld [vmem:[#allocation2 + $0x3a0] sm:$0xff]
        %v2029 = vld [vmem:[#allocation2 + $0x3a8] sm:$0xff]
        %v2030 = vld [vmem:[#allocation2 + $0x3b0] sm:$0xff]
        %v2031 = vld [vmem:[#allocation2 + $0x3b8] sm:$0xff]
        %v2032 = vld [vmem:[#allocation2 + $0x3c0] sm:$0xff]
        %v2033 = vld [vmem:[#allocation2 + $0x3c8] sm:$0xff]
        %v2034 = vld [vmem:[#allocation2 + $0x3d0] sm:$0xff]
        %v2035 = vld [vmem:[#allocation2 + $0x3d8] sm:$0xff]
        %v2036 = vld [vmem:[#allocation2 + $0x3e0] sm:$0xff]
        %v2037 = vld [vmem:[#allocation2 + $0x3e8] sm:$0xff]
        %v2038 = vld [vmem:[#allocation2 + $0x3f0] sm:$0xff]
        %v2039 = vld [vmem:[#allocation2 + $0x3f8] sm:$0xff]
        %v2040 = vpack.c.bf16 %v1786, %v1784
        %v2041 = vpack.c.bf16 %v1787, %v1785
        %v2042 = vpack.c.bf16 %v1790, %v1788
        %v2043 = vpack.c.bf16 %v1791, %v1789
        %v2044 = vpack.c.bf16 %v1794, %v1792
        %v2045 = vpack.c.bf16 %v1795, %v1793
        %v2046 = vpack.c.bf16 %v1798, %v1796
        %v2047 = vpack.c.bf16 %v1799, %v1797
        %v2048 = vpack.c.bf16 %v1802, %v1800
        %v2049 = vpack.c.bf16 %v1803, %v1801
        %v2050 = vpack.c.bf16 %v1806, %v1804
        %v2051 = vpack.c.bf16 %v1807, %v1805
        %v2052 = vpack.c.bf16 %v1810, %v1808
        %v2053 = vpack.c.bf16 %v1811, %v1809
        %v2054 = vpack.c.bf16 %v1814, %v1812
        %v2055 = vpack.c.bf16 %v1815, %v1813
        %v2056 = vpack.c.bf16 %v1818, %v1816
        %v2057 = vpack.c.bf16 %v1819, %v1817
        %v2058 = vpack.c.bf16 %v1822, %v1820
        %v2059 = vpack.c.bf16 %v1823, %v1821
        %v2060 = vpack.c.bf16 %v1826, %v1824
        %v2061 = vpack.c.bf16 %v1827, %v1825
        %v2062 = vpack.c.bf16 %v1830, %v1828
        %v2063 = vpack.c.bf16 %v1831, %v1829
        %v2064 = vpack.c.bf16 %v1834, %v1832
        %v2065 = vpack.c.bf16 %v1835, %v1833
        %v2066 = vpack.c.bf16 %v1838, %v1836
        %v2067 = vpack.c.bf16 %v1839, %v1837
        %v2068 = vpack.c.bf16 %v1842, %v1840
        %v2069 = vpack.c.bf16 %v1843, %v1841
        %v2070 = vpack.c.bf16 %v1846, %v1844
        %v2071 = vpack.c.bf16 %v1847, %v1845
        %v2072 = vpack.c.bf16 %v1850, %v1848
        %v2073 = vpack.c.bf16 %v1851, %v1849
        %v2074 = vpack.c.bf16 %v1854, %v1852
        %v2075 = vpack.c.bf16 %v1855, %v1853
        %v2076 = vpack.c.bf16 %v1858, %v1856
        %v2077 = vpack.c.bf16 %v1859, %v1857
        %v2078 = vpack.c.bf16 %v1862, %v1860
        %v2079 = vpack.c.bf16 %v1863, %v1861
        %v2080 = vpack.c.bf16 %v1866, %v1864
        %v2081 = vpack.c.bf16 %v1867, %v1865
        %v2082 = vpack.c.bf16 %v1870, %v1868
        %v2083 = vpack.c.bf16 %v1871, %v1869
        %v2084 = vpack.c.bf16 %v1874, %v1872
        %v2085 = vpack.c.bf16 %v1875, %v1873
        %v2086 = vpack.c.bf16 %v1878, %v1876
        %v2087 = vpack.c.bf16 %v1879, %v1877
        %v2088 = vpack.c.bf16 %v1882, %v1880
        %v2089 = vpack.c.bf16 %v1883, %v1881
        %v2090 = vpack.c.bf16 %v1886, %v1884
        %v2091 = vpack.c.bf16 %v1887, %v1885
        %v2092 = vpack.c.bf16 %v1890, %v1888
        %v2093 = vpack.c.bf16 %v1891, %v1889
        %v2094 = vpack.c.bf16 %v1894, %v1892
        %v2095 = vpack.c.bf16 %v1895, %v1893
        %v2096 = vpack.c.bf16 %v1898, %v1896
        %v2097 = vpack.c.bf16 %v1899, %v1897
        %v2098 = vpack.c.bf16 %v1902, %v1900
        %v2099 = vpack.c.bf16 %v1903, %v1901
        %v2100 = vpack.c.bf16 %v1906, %v1904
        %v2101 = vpack.c.bf16 %v1907, %v1905
        %v2102 = vpack.c.bf16 %v1910, %v1908
        %v2103 = vpack.c.bf16 %v1911, %v1909
        %v2104 = vld [vmem:[%s345] sm:$0xff]
        %v2105 = vld [vmem:[%s345 + $0x8] sm:$0xff]
        %v2106 = vld [vmem:[%s345 + $0x10] sm:$0xff]
        %v2107 = vld [vmem:[%s345 + $0x18] sm:$0xff]
        %v2108 = vld [vmem:[%s345 + $0x20] sm:$0xff]
        %v2109 = vld [vmem:[%s345 + $0x28] sm:$0xff]
        %v2110 = vld [vmem:[%s345 + $0x30] sm:$0xff]
        %v2111 = vld [vmem:[%s345 + $0x38] sm:$0xff]
        %v2112 = vld [vmem:[%s345 + $0x40] sm:$0xff]
        %v2113 = vld [vmem:[%s345 + $0x48] sm:$0xff]
        %v2114 = vld [vmem:[%s345 + $0x50] sm:$0xff]
        %v2115 = vld [vmem:[%s345 + $0x58] sm:$0xff]
        %v2116 = vld [vmem:[%s345 + $0x60] sm:$0xff]
        %v2117 = vld [vmem:[%s345 + $0x68] sm:$0xff]
        %v2118 = vld [vmem:[%s345 + $0x70] sm:$0xff]
        %v2119 = vld [vmem:[%s345 + $0x78] sm:$0xff]
        %v2120 = vld [vmem:[%s345 + $0x80] sm:$0xff]
        %v2121 = vld [vmem:[%s345 + $0x88] sm:$0xff]
        %v2122 = vld [vmem:[%s345 + $0x90] sm:$0xff]
        %v2123 = vld [vmem:[%s345 + $0x98] sm:$0xff]
        %v2124 = vld [vmem:[%s345 + $0xa0] sm:$0xff]
        %v2125 = vld [vmem:[%s345 + $0xa8] sm:$0xff]
        %v2126 = vld [vmem:[%s345 + $0xb0] sm:$0xff]
        %v2127 = vld [vmem:[%s345 + $0xb8] sm:$0xff]
        %v2128 = vld [vmem:[%s345 + $0xc0] sm:$0xff]
        %v2129 = vld [vmem:[%s345 + $0xc8] sm:$0xff]
        %v2130 = vld [vmem:[%s345 + $0xd0] sm:$0xff]
        %v2131 = vld [vmem:[%s345 + $0xd8] sm:$0xff]
        %v2132 = vld [vmem:[%s345 + $0xe0] sm:$0xff]
        %v2133 = vld [vmem:[%s345 + $0xe8] sm:$0xff]
        %v2134 = vld [vmem:[%s345 + $0xf0] sm:$0xff]
        %v2135 = vld [vmem:[%s345 + $0xf8] sm:$0xff]
        %v2168 = vunpack.c.l.b16 %v2104
        %v2169 = vunpack.c.h.b16 %v2104
        %v2170 = vunpack.c.l.b16 %v2105
        %v2171 = vunpack.c.h.b16 %v2105
        %v2172 = vunpack.c.l.b16 %v2106
        %v2173 = vunpack.c.h.b16 %v2106
        %v2174 = vunpack.c.l.b16 %v2107
        %v2175 = vunpack.c.h.b16 %v2107
        %v2176 = vunpack.c.l.b16 %v2108
        %v2177 = vunpack.c.h.b16 %v2108
        %v2178 = vunpack.c.l.b16 %v2109
        %v2179 = vunpack.c.h.b16 %v2109
        %v2180 = vunpack.c.l.b16 %v2110
        %v2181 = vunpack.c.h.b16 %v2110
        %v2182 = vunpack.c.l.b16 %v2111
        %v2183 = vunpack.c.h.b16 %v2111
        %v2184 = vunpack.c.l.b16 %v2112
        %v2185 = vunpack.c.h.b16 %v2112
        %v2186 = vunpack.c.l.b16 %v2113
        %v2187 = vunpack.c.h.b16 %v2113
        %v2188 = vunpack.c.l.b16 %v2114
        %v2189 = vunpack.c.h.b16 %v2114
        %v2190 = vunpack.c.l.b16 %v2115
        %v2191 = vunpack.c.h.b16 %v2115
        %v2192 = vunpack.c.l.b16 %v2116
        %v2193 = vunpack.c.h.b16 %v2116
        %v2194 = vunpack.c.l.b16 %v2117
        %v2195 = vunpack.c.h.b16 %v2117
        %v2196 = vunpack.c.l.b16 %v2118
        %v2197 = vunpack.c.h.b16 %v2118
        %v2198 = vunpack.c.l.b16 %v2119
        %v2199 = vunpack.c.h.b16 %v2119
        %v2200 = vunpack.c.l.b16 %v2120
        %v2201 = vunpack.c.h.b16 %v2120
        %v2202 = vunpack.c.l.b16 %v2121
        %v2203 = vunpack.c.h.b16 %v2121
        %v2204 = vunpack.c.l.b16 %v2122
        %v2205 = vunpack.c.h.b16 %v2122
        %v2206 = vunpack.c.l.b16 %v2123
        %v2207 = vunpack.c.h.b16 %v2123
        %v2208 = vunpack.c.l.b16 %v2124
        %v2209 = vunpack.c.h.b16 %v2124
        %v2210 = vunpack.c.l.b16 %v2125
        %v2211 = vunpack.c.h.b16 %v2125
        %v2212 = vunpack.c.l.b16 %v2126
        %v2213 = vunpack.c.h.b16 %v2126
        %v2214 = vunpack.c.l.b16 %v2127
        %v2215 = vunpack.c.h.b16 %v2127
        %v2216 = vunpack.c.l.b16 %v2128
        %v2217 = vunpack.c.h.b16 %v2128
        %v2218 = vunpack.c.l.b16 %v2129
        %v2219 = vunpack.c.h.b16 %v2129
        %v2220 = vunpack.c.l.b16 %v2130
        %v2221 = vunpack.c.h.b16 %v2130
        %v2222 = vunpack.c.l.b16 %v2131
        %v2223 = vunpack.c.h.b16 %v2131
        %v2224 = vunpack.c.l.b16 %v2132
        %v2225 = vunpack.c.h.b16 %v2132
        %v2226 = vunpack.c.l.b16 %v2133
        %v2227 = vunpack.c.h.b16 %v2133
        %v2228 = vunpack.c.l.b16 %v2134
        %v2229 = vunpack.c.h.b16 %v2134
        %v2230 = vunpack.c.l.b16 %v2135
        %v2231 = vunpack.c.h.b16 %v2135
        %v2232 = vpack.c.b16 %v2170, %v2168
        %v2233 = vpack.c.b16 %v2171, %v2169
        %v2234 = vpack.c.b16 %v2174, %v2172
        %v2235 = vpack.c.b16 %v2175, %v2173
        %v2236 = vpack.c.b16 %v2178, %v2176
        %v2237 = vpack.c.b16 %v2179, %v2177
        %v2238 = vpack.c.b16 %v2182, %v2180
        %v2239 = vpack.c.b16 %v2183, %v2181
        %v2240 = vpack.c.b16 %v2186, %v2184
        %v2241 = vpack.c.b16 %v2187, %v2185
        %v2242 = vpack.c.b16 %v2190, %v2188
        %v2243 = vpack.c.b16 %v2191, %v2189
        %v2244 = vpack.c.b16 %v2194, %v2192
        %v2245 = vpack.c.b16 %v2195, %v2193
        %v2246 = vpack.c.b16 %v2198, %v2196
        %v2247 = vpack.c.b16 %v2199, %v2197
        %v2248 = vpack.c.b16 %v2202, %v2200
        %v2249 = vpack.c.b16 %v2203, %v2201
        %v2250 = vpack.c.b16 %v2206, %v2204
        %v2251 = vpack.c.b16 %v2207, %v2205
        %v2252 = vpack.c.b16 %v2210, %v2208
        %v2253 = vpack.c.b16 %v2211, %v2209
        %v2254 = vpack.c.b16 %v2214, %v2212
        %v2255 = vpack.c.b16 %v2215, %v2213
        %v2256 = vpack.c.b16 %v2218, %v2216
        %v2257 = vpack.c.b16 %v2219, %v2217
        %v2258 = vpack.c.b16 %v2222, %v2220
        %v2259 = vpack.c.b16 %v2223, %v2221
        %v2260 = vpack.c.b16 %v2226, %v2224
        %v2261 = vpack.c.b16 %v2227, %v2225
        %v2262 = vpack.c.b16 %v2230, %v2228
        %v2263 = vpack.c.b16 %v2231, %v2229
        %2296 = vmatpush.bf16.msra.mxu0 %v2246
        %2297 = vmatpush.bf16.msra.mxu0 %v2244
        %2298 = vmatpush.bf16.msra.mxu0 %v2242
        %2299 = vmatpush.bf16.msra.mxu0 %v2240
        %2300 = vmatpush.bf16.msra.mxu0 %v2238
        %2301 = vmatpush.bf16.msra.mxu0 %v2236
        %2302 = vmatpush.bf16.msra.mxu0 %v2234
        %2303 = vmatpush.bf16.msra.mxu0 %v2232
        %2304 = vmatmul.bf16.gmra.mxu0 %v2040
        %v2305 = vpop.f32.mrf.mxu0
        %v2306 = vadd.f32 0.0, %v2305
        %v2307 = vpop.f32.mrf.mxu0
        %v2308 = vadd.f32 0.0, %v2307
        %2309 = vmatmul.bf16.gmra.mxu0 %v2042
        %v2310 = vpop.f32.mrf.mxu0
        %v2311 = vadd.f32 0.0, %v2310
        %v2312 = vpop.f32.mrf.mxu0
        %v2313 = vadd.f32 0.0, %v2312
        %2314 = vmatmul.bf16.gmra.mxu0 %v2044
        %v2315 = vpop.f32.mrf.mxu0
        %v2316 = vadd.f32 0.0, %v2315
        %v2317 = vpop.f32.mrf.mxu0
        %v2318 = vadd.f32 0.0, %v2317
        %2319 = vmatmul.bf16.gmra.mxu0 %v2046
        %v2320 = vpop.f32.mrf.mxu0
        %v2321 = vadd.f32 0.0, %v2320
        %v2322 = vpop.f32.mrf.mxu0
        %v2323 = vadd.f32 0.0, %v2322
        %2324 = vmatmul.bf16.gmra.mxu0 %v2048
        %v2325 = vpop.f32.mrf.mxu0
        %v2326 = vadd.f32 0.0, %v2325
        %v2327 = vpop.f32.mrf.mxu0
        %v2328 = vadd.f32 0.0, %v2327
        %2329 = vmatmul.bf16.gmra.mxu0 %v2050
        %v2330 = vpop.f32.mrf.mxu0
        %v2331 = vadd.f32 0.0, %v2330
        %v2332 = vpop.f32.mrf.mxu0
        %v2333 = vadd.f32 0.0, %v2332
        %2334 = vmatmul.bf16.gmra.mxu0 %v2052
        %v2335 = vpop.f32.mrf.mxu0
        %v2336 = vadd.f32 0.0, %v2335
        %v2337 = vpop.f32.mrf.mxu0
        %v2338 = vadd.f32 0.0, %v2337
        %2339 = vmatmul.bf16.gmra.mxu0 %v2054
        %v2340 = vpop.f32.mrf.mxu0
        %v2341 = vadd.f32 0.0, %v2340
        %v2342 = vpop.f32.mrf.mxu0
        %v2343 = vadd.f32 0.0, %v2342
        %2344 = vmatmul.bf16.gmra.mxu0 %v2056
        %v2345 = vpop.f32.mrf.mxu0
        %v2346 = vadd.f32 0.0, %v2345
        %v2347 = vpop.f32.mrf.mxu0
        %v2348 = vadd.f32 0.0, %v2347
        %2349 = vmatmul.bf16.gmra.mxu0 %v2058
        %v2350 = vpop.f32.mrf.mxu0
        %v2351 = vadd.f32 0.0, %v2350
        %v2352 = vpop.f32.mrf.mxu0
        %v2353 = vadd.f32 0.0, %v2352
        %2354 = vmatmul.bf16.gmra.mxu0 %v2060
        %v2355 = vpop.f32.mrf.mxu0
        %v2356 = vadd.f32 0.0, %v2355
        %v2357 = vpop.f32.mrf.mxu0
        %v2358 = vadd.f32 0.0, %v2357
        %2359 = vmatmul.bf16.gmra.mxu0 %v2062
        %v2360 = vpop.f32.mrf.mxu0
        %v2361 = vadd.f32 0.0, %v2360
        %v2362 = vpop.f32.mrf.mxu0
        %v2363 = vadd.f32 0.0, %v2362
        %2364 = vmatmul.bf16.gmra.mxu0 %v2064
        %v2365 = vpop.f32.mrf.mxu0
        %v2366 = vadd.f32 0.0, %v2365
        %v2367 = vpop.f32.mrf.mxu0
        %v2368 = vadd.f32 0.0, %v2367
        %2369 = vmatmul.bf16.gmra.mxu0 %v2066
        %v2370 = vpop.f32.mrf.mxu0
        %v2371 = vadd.f32 0.0, %v2370
        %v2372 = vpop.f32.mrf.mxu0
        %v2373 = vadd.f32 0.0, %v2372
        %2374 = vmatmul.bf16.gmra.mxu0 %v2068
        %v2375 = vpop.f32.mrf.mxu0
        %v2376 = vadd.f32 0.0, %v2375
        %v2377 = vpop.f32.mrf.mxu0
        %v2378 = vadd.f32 0.0, %v2377
        %2379 = vmatmul.bf16.gmra.mxu0 %v2070
        %v2380 = vpop.f32.mrf.mxu0
        %v2381 = vadd.f32 0.0, %v2380
        %v2382 = vpop.f32.mrf.mxu0
        %v2383 = vadd.f32 0.0, %v2382
        %2384 = vmatmul.bf16.gmra.mxu0 %v2072
        %v2385 = vpop.f32.mrf.mxu0
        %v2386 = vadd.f32 0.0, %v2385
        %v2387 = vpop.f32.mrf.mxu0
        %v2388 = vadd.f32 0.0, %v2387
        %2389 = vmatmul.bf16.gmra.mxu0 %v2074
        %v2390 = vpop.f32.mrf.mxu0
        %v2391 = vadd.f32 0.0, %v2390
        %v2392 = vpop.f32.mrf.mxu0
        %v2393 = vadd.f32 0.0, %v2392
        %2394 = vmatmul.bf16.gmra.mxu0 %v2076
        %v2395 = vpop.f32.mrf.mxu0
        %v2396 = vadd.f32 0.0, %v2395
        %v2397 = vpop.f32.mrf.mxu0
        %v2398 = vadd.f32 0.0, %v2397
        %2399 = vmatmul.bf16.gmra.mxu0 %v2078
        %v2400 = vpop.f32.mrf.mxu0
        %v2401 = vadd.f32 0.0, %v2400
        %v2402 = vpop.f32.mrf.mxu0
        %v2403 = vadd.f32 0.0, %v2402
        %2404 = vmatmul.bf16.gmra.mxu0 %v2080
        %v2405 = vpop.f32.mrf.mxu0
        %v2406 = vadd.f32 0.0, %v2405
        %v2407 = vpop.f32.mrf.mxu0
        %v2408 = vadd.f32 0.0, %v2407
        %2409 = vmatmul.bf16.gmra.mxu0 %v2082
        %v2410 = vpop.f32.mrf.mxu0
        %v2411 = vadd.f32 0.0, %v2410
        %v2412 = vpop.f32.mrf.mxu0
        %v2413 = vadd.f32 0.0, %v2412
        %2414 = vmatmul.bf16.gmra.mxu0 %v2084
        %v2415 = vpop.f32.mrf.mxu0
        %v2416 = vadd.f32 0.0, %v2415
        %v2417 = vpop.f32.mrf.mxu0
        %v2418 = vadd.f32 0.0, %v2417
        %2419 = vmatmul.bf16.gmra.mxu0 %v2086
        %v2420 = vpop.f32.mrf.mxu0
        %v2421 = vadd.f32 0.0, %v2420
        %v2422 = vpop.f32.mrf.mxu0
        %v2423 = vadd.f32 0.0, %v2422
        %2424 = vmatmul.bf16.gmra.mxu0 %v2088
        %v2425 = vpop.f32.mrf.mxu0
        %v2426 = vadd.f32 0.0, %v2425
        %v2427 = vpop.f32.mrf.mxu0
        %v2428 = vadd.f32 0.0, %v2427
        %2429 = vmatmul.bf16.gmra.mxu0 %v2090
        %v2430 = vpop.f32.mrf.mxu0
        %v2431 = vadd.f32 0.0, %v2430
        %v2432 = vpop.f32.mrf.mxu0
        %v2433 = vadd.f32 0.0, %v2432
        %2434 = vmatmul.bf16.gmra.mxu0 %v2092
        %v2435 = vpop.f32.mrf.mxu0
        %v2436 = vadd.f32 0.0, %v2435
        %v2437 = vpop.f32.mrf.mxu0
        %v2438 = vadd.f32 0.0, %v2437
        %2439 = vmatmul.bf16.gmra.mxu0 %v2094
        %v2440 = vpop.f32.mrf.mxu0
        %v2441 = vadd.f32 0.0, %v2440
        %v2442 = vpop.f32.mrf.mxu0
        %v2443 = vadd.f32 0.0, %v2442
        %2444 = vmatmul.bf16.gmra.mxu0 %v2096
        %v2445 = vpop.f32.mrf.mxu0
        %v2446 = vadd.f32 0.0, %v2445
        %v2447 = vpop.f32.mrf.mxu0
        %v2448 = vadd.f32 0.0, %v2447
        %2449 = vmatmul.bf16.gmra.mxu0 %v2098
        %v2450 = vpop.f32.mrf.mxu0
        %v2451 = vadd.f32 0.0, %v2450
        %v2452 = vpop.f32.mrf.mxu0
        %v2453 = vadd.f32 0.0, %v2452
        %2454 = vmatmul.bf16.gmra.mxu0 %v2100
        %v2455 = vpop.f32.mrf.mxu0
        %v2456 = vadd.f32 0.0, %v2455
        %v2457 = vpop.f32.mrf.mxu0
        %v2458 = vadd.f32 0.0, %v2457
        %2459 = vmatmul.bf16.gmra.mxu0 %v2102
        %v2460 = vpop.f32.mrf.mxu0
        %v2461 = vadd.f32 0.0, %v2460
        %v2462 = vpop.f32.mrf.mxu0
        %v2463 = vadd.f32 0.0, %v2462
        %2464 = vdwg.mxu0
        %2465 = vmatpush.bf16.msra.mxu0 %v2262
        %2466 = vmatpush.bf16.msra.mxu0 %v2260
        %2467 = vmatpush.bf16.msra.mxu0 %v2258
        %2468 = vmatpush.bf16.msra.mxu0 %v2256
        %2469 = vmatpush.bf16.msra.mxu0 %v2254
        %2470 = vmatpush.bf16.msra.mxu0 %v2252
        %2471 = vmatpush.bf16.msra.mxu0 %v2250
        %2472 = vmatpush.bf16.msra.mxu0 %v2248
        %2473 = vmatmul.bf16.gmra.mxu0 %v2041
        %v2474 = vpop.f32.mrf.mxu0
        %v2475 = vadd.f32 %v2306, %v2474
        %v2476 = vpop.f32.mrf.mxu0
        %v2477 = vadd.f32 %v2308, %v2476
        %2478 = vmatmul.bf16.gmra.mxu0 %v2043
        %v2479 = vpop.f32.mrf.mxu0
        %v2480 = vadd.f32 %v2311, %v2479
        %v2481 = vpop.f32.mrf.mxu0
        %v2482 = vadd.f32 %v2313, %v2481
        %2483 = vmatmul.bf16.gmra.mxu0 %v2045
        %v2484 = vpop.f32.mrf.mxu0
        %v2485 = vadd.f32 %v2316, %v2484
        %v2486 = vpop.f32.mrf.mxu0
        %v2487 = vadd.f32 %v2318, %v2486
        %2488 = vmatmul.bf16.gmra.mxu0 %v2047
        %v2489 = vpop.f32.mrf.mxu0
        %v2490 = vadd.f32 %v2321, %v2489
        %v2491 = vpop.f32.mrf.mxu0
        %v2492 = vadd.f32 %v2323, %v2491
        %2493 = vmatmul.bf16.gmra.mxu0 %v2049
        %v2494 = vpop.f32.mrf.mxu0
        %v2495 = vadd.f32 %v2326, %v2494
        %v2496 = vpop.f32.mrf.mxu0
        %v2497 = vadd.f32 %v2328, %v2496
        %2498 = vmatmul.bf16.gmra.mxu0 %v2051
        %v2499 = vpop.f32.mrf.mxu0
        %v2500 = vadd.f32 %v2331, %v2499
        %v2501 = vpop.f32.mrf.mxu0
        %v2502 = vadd.f32 %v2333, %v2501
        %2503 = vmatmul.bf16.gmra.mxu0 %v2053
        %v2504 = vpop.f32.mrf.mxu0
        %v2505 = vadd.f32 %v2336, %v2504
        %v2506 = vpop.f32.mrf.mxu0
        %v2507 = vadd.f32 %v2338, %v2506
        %2508 = vmatmul.bf16.gmra.mxu0 %v2055
        %v2509 = vpop.f32.mrf.mxu0
        %v2510 = vadd.f32 %v2341, %v2509
        %v2511 = vpop.f32.mrf.mxu0
        %v2512 = vadd.f32 %v2343, %v2511
        %2513 = vmatmul.bf16.gmra.mxu0 %v2057
        %v2514 = vpop.f32.mrf.mxu0
        %v2515 = vadd.f32 %v2346, %v2514
        %v2516 = vpop.f32.mrf.mxu0
        %v2517 = vadd.f32 %v2348, %v2516
        %2518 = vmatmul.bf16.gmra.mxu0 %v2059
        %v2519 = vpop.f32.mrf.mxu0
        %v2520 = vadd.f32 %v2351, %v2519
        %v2521 = vpop.f32.mrf.mxu0
        %v2522 = vadd.f32 %v2353, %v2521
        %2523 = vmatmul.bf16.gmra.mxu0 %v2061
        %v2524 = vpop.f32.mrf.mxu0
        %v2525 = vadd.f32 %v2356, %v2524
        %v2526 = vpop.f32.mrf.mxu0
        %v2527 = vadd.f32 %v2358, %v2526
        %2528 = vmatmul.bf16.gmra.mxu0 %v2063
        %v2529 = vpop.f32.mrf.mxu0
        %v2530 = vadd.f32 %v2361, %v2529
        %v2531 = vpop.f32.mrf.mxu0
        %v2532 = vadd.f32 %v2363, %v2531
        %2533 = vmatmul.bf16.gmra.mxu0 %v2065
        %v2534 = vpop.f32.mrf.mxu0
        %v2535 = vadd.f32 %v2366, %v2534
        %v2536 = vpop.f32.mrf.mxu0
        %v2537 = vadd.f32 %v2368, %v2536
        %2538 = vmatmul.bf16.gmra.mxu0 %v2067
        %v2539 = vpop.f32.mrf.mxu0
        %v2540 = vadd.f32 %v2371, %v2539
        %v2541 = vpop.f32.mrf.mxu0
        %v2542 = vadd.f32 %v2373, %v2541
        %2543 = vmatmul.bf16.gmra.mxu0 %v2069
        %v2544 = vpop.f32.mrf.mxu0
        %v2545 = vadd.f32 %v2376, %v2544
        %v2546 = vpop.f32.mrf.mxu0
        %v2547 = vadd.f32 %v2378, %v2546
        %2548 = vmatmul.bf16.gmra.mxu0 %v2071
        %v2549 = vpop.f32.mrf.mxu0
        %v2550 = vadd.f32 %v2381, %v2549
        %v2551 = vpop.f32.mrf.mxu0
        %v2552 = vadd.f32 %v2383, %v2551
        %2553 = vmatmul.bf16.gmra.mxu0 %v2073
        %v2554 = vpop.f32.mrf.mxu0
        %v2555 = vadd.f32 %v2386, %v2554
        %v2556 = vpop.f32.mrf.mxu0
        %v2557 = vadd.f32 %v2388, %v2556
        %2558 = vmatmul.bf16.gmra.mxu0 %v2075
        %v2559 = vpop.f32.mrf.mxu0
        %v2560 = vadd.f32 %v2391, %v2559
        %v2561 = vpop.f32.mrf.mxu0
        %v2562 = vadd.f32 %v2393, %v2561
        %2563 = vmatmul.bf16.gmra.mxu0 %v2077
        %v2564 = vpop.f32.mrf.mxu0
        %v2565 = vadd.f32 %v2396, %v2564
        %v2566 = vpop.f32.mrf.mxu0
        %v2567 = vadd.f32 %v2398, %v2566
        %2568 = vmatmul.bf16.gmra.mxu0 %v2079
        %v2569 = vpop.f32.mrf.mxu0
        %v2570 = vadd.f32 %v2401, %v2569
        %v2571 = vpop.f32.mrf.mxu0
        %v2572 = vadd.f32 %v2403, %v2571
        %2573 = vmatmul.bf16.gmra.mxu0 %v2081
        %v2574 = vpop.f32.mrf.mxu0
        %v2575 = vadd.f32 %v2406, %v2574
        %v2576 = vpop.f32.mrf.mxu0
        %v2577 = vadd.f32 %v2408, %v2576
        %2578 = vmatmul.bf16.gmra.mxu0 %v2083
        %v2579 = vpop.f32.mrf.mxu0
        %v2580 = vadd.f32 %v2411, %v2579
        %v2581 = vpop.f32.mrf.mxu0
        %v2582 = vadd.f32 %v2413, %v2581
        %2583 = vmatmul.bf16.gmra.mxu0 %v2085
        %v2584 = vpop.f32.mrf.mxu0
        %v2585 = vadd.f32 %v2416, %v2584
        %v2586 = vpop.f32.mrf.mxu0
        %v2587 = vadd.f32 %v2418, %v2586
        %2588 = vmatmul.bf16.gmra.mxu0 %v2087
        %v2589 = vpop.f32.mrf.mxu0
        %v2590 = vadd.f32 %v2421, %v2589
        %v2591 = vpop.f32.mrf.mxu0
        %v2592 = vadd.f32 %v2423, %v2591
        %2593 = vmatmul.bf16.gmra.mxu0 %v2089
        %v2594 = vpop.f32.mrf.mxu0
        %v2595 = vadd.f32 %v2426, %v2594
        %v2596 = vpop.f32.mrf.mxu0
        %v2597 = vadd.f32 %v2428, %v2596
        %2598 = vmatmul.bf16.gmra.mxu0 %v2091
        %v2599 = vpop.f32.mrf.mxu0
        %v2600 = vadd.f32 %v2431, %v2599
        %v2601 = vpop.f32.mrf.mxu0
        %v2602 = vadd.f32 %v2433, %v2601
        %2603 = vmatmul.bf16.gmra.mxu0 %v2093
        %v2604 = vpop.f32.mrf.mxu0
        %v2605 = vadd.f32 %v2436, %v2604
        %v2606 = vpop.f32.mrf.mxu0
        %v2607 = vadd.f32 %v2438, %v2606
        %2608 = vmatmul.bf16.gmra.mxu0 %v2095
        %v2609 = vpop.f32.mrf.mxu0
        %v2610 = vadd.f32 %v2441, %v2609
        %v2611 = vpop.f32.mrf.mxu0
        %v2612 = vadd.f32 %v2443, %v2611
        %2613 = vmatmul.bf16.gmra.mxu0 %v2097
        %v2614 = vpop.f32.mrf.mxu0
        %v2615 = vadd.f32 %v2446, %v2614
        %v2616 = vpop.f32.mrf.mxu0
        %v2617 = vadd.f32 %v2448, %v2616
        %2618 = vmatmul.bf16.gmra.mxu0 %v2099
        %v2619 = vpop.f32.mrf.mxu0
        %v2620 = vadd.f32 %v2451, %v2619
        %v2621 = vpop.f32.mrf.mxu0
        %v2622 = vadd.f32 %v2453, %v2621
        %2623 = vmatmul.bf16.gmra.mxu0 %v2101
        %v2624 = vpop.f32.mrf.mxu0
        %v2625 = vadd.f32 %v2456, %v2624
        %v2626 = vpop.f32.mrf.mxu0
        %v2627 = vadd.f32 %v2458, %v2626
        %2628 = vmatmul.bf16.gmra.mxu0 %v2103
        %v2629 = vpop.f32.mrf.mxu0
        %v2630 = vadd.f32 %v2461, %v2629
        %v2631 = vpop.f32.mrf.mxu0
        %v2632 = vadd.f32 %v2463, %v2631
        %2633 = vdwg.mxu0
        %2634 = vmatpush.bf16.msra.mxu0 %v2247
        %2635 = vmatpush.bf16.msra.mxu0 %v2245
        %2636 = vmatpush.bf16.msra.mxu0 %v2243
        %2637 = vmatpush.bf16.msra.mxu0 %v2241
        %2638 = vmatpush.bf16.msra.mxu0 %v2239
        %2639 = vmatpush.bf16.msra.mxu0 %v2237
        %2640 = vmatpush.bf16.msra.mxu0 %v2235
        %2641 = vmatpush.bf16.msra.mxu0 %v2233
        %2642 = vmatmul.bf16.gmra.mxu0 %v2040
        %v2643 = vpop.f32.mrf.mxu0
        %v2644 = vadd.f32 0.0, %v2643
        %v2645 = vpop.f32.mrf.mxu0
        %v2646 = vadd.f32 0.0, %v2645
        %2647 = vmatmul.bf16.gmra.mxu0 %v2042
        %v2648 = vpop.f32.mrf.mxu0
        %v2649 = vadd.f32 0.0, %v2648
        %v2650 = vpop.f32.mrf.mxu0
        %v2651 = vadd.f32 0.0, %v2650
        %2652 = vmatmul.bf16.gmra.mxu0 %v2044
        %v2653 = vpop.f32.mrf.mxu0
        %v2654 = vadd.f32 0.0, %v2653
        %v2655 = vpop.f32.mrf.mxu0
        %v2656 = vadd.f32 0.0, %v2655
        %2657 = vmatmul.bf16.gmra.mxu0 %v2046
        %v2658 = vpop.f32.mrf.mxu0
        %v2659 = vadd.f32 0.0, %v2658
        %v2660 = vpop.f32.mrf.mxu0
        %v2661 = vadd.f32 0.0, %v2660
        %2662 = vmatmul.bf16.gmra.mxu0 %v2048
        %v2663 = vpop.f32.mrf.mxu0
        %v2664 = vadd.f32 0.0, %v2663
        %v2665 = vpop.f32.mrf.mxu0
        %v2666 = vadd.f32 0.0, %v2665
        %2667 = vmatmul.bf16.gmra.mxu0 %v2050
        %v2668 = vpop.f32.mrf.mxu0
        %v2669 = vadd.f32 0.0, %v2668
        %v2670 = vpop.f32.mrf.mxu0
        %v2671 = vadd.f32 0.0, %v2670
        %2672 = vmatmul.bf16.gmra.mxu0 %v2052
        %v2673 = vpop.f32.mrf.mxu0
        %v2674 = vadd.f32 0.0, %v2673
        %v2675 = vpop.f32.mrf.mxu0
        %v2676 = vadd.f32 0.0, %v2675
        %2677 = vmatmul.bf16.gmra.mxu0 %v2054
        %v2678 = vpop.f32.mrf.mxu0
        %v2679 = vadd.f32 0.0, %v2678
        %v2680 = vpop.f32.mrf.mxu0
        %v2681 = vadd.f32 0.0, %v2680
        %2682 = vmatmul.bf16.gmra.mxu0 %v2056
        %v2683 = vpop.f32.mrf.mxu0
        %v2684 = vadd.f32 0.0, %v2683
        %v2685 = vpop.f32.mrf.mxu0
        %v2686 = vadd.f32 0.0, %v2685
        %2687 = vmatmul.bf16.gmra.mxu0 %v2058
        %v2688 = vpop.f32.mrf.mxu0
        %v2689 = vadd.f32 0.0, %v2688
        %v2690 = vpop.f32.mrf.mxu0
        %v2691 = vadd.f32 0.0, %v2690
        %2692 = vmatmul.bf16.gmra.mxu0 %v2060
        %v2693 = vpop.f32.mrf.mxu0
        %v2694 = vadd.f32 0.0, %v2693
        %v2695 = vpop.f32.mrf.mxu0
        %v2696 = vadd.f32 0.0, %v2695
        %2697 = vmatmul.bf16.gmra.mxu0 %v2062
        %v2698 = vpop.f32.mrf.mxu0
        %v2699 = vadd.f32 0.0, %v2698
        %v2700 = vpop.f32.mrf.mxu0
        %v2701 = vadd.f32 0.0, %v2700
        %2702 = vmatmul.bf16.gmra.mxu0 %v2064
        %v2703 = vpop.f32.mrf.mxu0
        %v2704 = vadd.f32 0.0, %v2703
        %v2705 = vpop.f32.mrf.mxu0
        %v2706 = vadd.f32 0.0, %v2705
        %2707 = vmatmul.bf16.gmra.mxu0 %v2066
        %v2708 = vpop.f32.mrf.mxu0
        %v2709 = vadd.f32 0.0, %v2708
        %v2710 = vpop.f32.mrf.mxu0
        %v2711 = vadd.f32 0.0, %v2710
        %2712 = vmatmul.bf16.gmra.mxu0 %v2068
        %v2713 = vpop.f32.mrf.mxu0
        %v2714 = vadd.f32 0.0, %v2713
        %v2715 = vpop.f32.mrf.mxu0
        %v2716 = vadd.f32 0.0, %v2715
        %2717 = vmatmul.bf16.gmra.mxu0 %v2070
        %v2718 = vpop.f32.mrf.mxu0
        %v2719 = vadd.f32 0.0, %v2718
        %v2720 = vpop.f32.mrf.mxu0
        %v2721 = vadd.f32 0.0, %v2720
        %2722 = vmatmul.bf16.gmra.mxu0 %v2072
        %v2723 = vpop.f32.mrf.mxu0
        %v2724 = vadd.f32 0.0, %v2723
        %v2725 = vpop.f32.mrf.mxu0
        %v2726 = vadd.f32 0.0, %v2725
        %2727 = vmatmul.bf16.gmra.mxu0 %v2074
        %v2728 = vpop.f32.mrf.mxu0
        %v2729 = vadd.f32 0.0, %v2728
        %v2730 = vpop.f32.mrf.mxu0
        %v2731 = vadd.f32 0.0, %v2730
        %2732 = vmatmul.bf16.gmra.mxu0 %v2076
        %v2733 = vpop.f32.mrf.mxu0
        %v2734 = vadd.f32 0.0, %v2733
        %v2735 = vpop.f32.mrf.mxu0
        %v2736 = vadd.f32 0.0, %v2735
        %2737 = vmatmul.bf16.gmra.mxu0 %v2078
        %v2738 = vpop.f32.mrf.mxu0
        %v2739 = vadd.f32 0.0, %v2738
        %v2740 = vpop.f32.mrf.mxu0
        %v2741 = vadd.f32 0.0, %v2740
        %2742 = vmatmul.bf16.gmra.mxu0 %v2080
        %v2743 = vpop.f32.mrf.mxu0
        %v2744 = vadd.f32 0.0, %v2743
        %v2745 = vpop.f32.mrf.mxu0
        %v2746 = vadd.f32 0.0, %v2745
        %2747 = vmatmul.bf16.gmra.mxu0 %v2082
        %v2748 = vpop.f32.mrf.mxu0
        %v2749 = vadd.f32 0.0, %v2748
        %v2750 = vpop.f32.mrf.mxu0
        %v2751 = vadd.f32 0.0, %v2750
        %2752 = vmatmul.bf16.gmra.mxu0 %v2084
        %v2753 = vpop.f32.mrf.mxu0
        %v2754 = vadd.f32 0.0, %v2753
        %v2755 = vpop.f32.mrf.mxu0
        %v2756 = vadd.f32 0.0, %v2755
        %2757 = vmatmul.bf16.gmra.mxu0 %v2086
        %v2758 = vpop.f32.mrf.mxu0
        %v2759 = vadd.f32 0.0, %v2758
        %v2760 = vpop.f32.mrf.mxu0
        %v2761 = vadd.f32 0.0, %v2760
        %2762 = vmatmul.bf16.gmra.mxu0 %v2088
        %v2763 = vpop.f32.mrf.mxu0
        %v2764 = vadd.f32 0.0, %v2763
        %v2765 = vpop.f32.mrf.mxu0
        %v2766 = vadd.f32 0.0, %v2765
        %2767 = vmatmul.bf16.gmra.mxu0 %v2090
        %v2768 = vpop.f32.mrf.mxu0
        %v2769 = vadd.f32 0.0, %v2768
        %v2770 = vpop.f32.mrf.mxu0
        %v2771 = vadd.f32 0.0, %v2770
        %2772 = vmatmul.bf16.gmra.mxu0 %v2092
        %v2773 = vpop.f32.mrf.mxu0
        %v2774 = vadd.f32 0.0, %v2773
        %v2775 = vpop.f32.mrf.mxu0
        %v2776 = vadd.f32 0.0, %v2775
        %2777 = vmatmul.bf16.gmra.mxu0 %v2094
        %v2778 = vpop.f32.mrf.mxu0
        %v2779 = vadd.f32 0.0, %v2778
        %v2780 = vpop.f32.mrf.mxu0
        %v2781 = vadd.f32 0.0, %v2780
        %2782 = vmatmul.bf16.gmra.mxu0 %v2096
        %v2783 = vpop.f32.mrf.mxu0
        %v2784 = vadd.f32 0.0, %v2783
        %v2785 = vpop.f32.mrf.mxu0
        %v2786 = vadd.f32 0.0, %v2785
        %2787 = vmatmul.bf16.gmra.mxu0 %v2098
        %v2788 = vpop.f32.mrf.mxu0
        %v2789 = vadd.f32 0.0, %v2788
        %v2790 = vpop.f32.mrf.mxu0
        %v2791 = vadd.f32 0.0, %v2790
        %2792 = vmatmul.bf16.gmra.mxu0 %v2100
        %v2793 = vpop.f32.mrf.mxu0
        %v2794 = vadd.f32 0.0, %v2793
        %v2795 = vpop.f32.mrf.mxu0
        %v2796 = vadd.f32 0.0, %v2795
        %2797 = vmatmul.bf16.gmra.mxu0 %v2102
        %v2798 = vpop.f32.mrf.mxu0
        %v2799 = vadd.f32 0.0, %v2798
        %v2800 = vpop.f32.mrf.mxu0
        %v2801 = vadd.f32 0.0, %v2800
        %2802 = vdwg.mxu0
        %2803 = vmatpush.bf16.msra.mxu0 %v2263
        %2804 = vmatpush.bf16.msra.mxu0 %v2261
        %2805 = vmatpush.bf16.msra.mxu0 %v2259
        %2806 = vmatpush.bf16.msra.mxu0 %v2257
        %2807 = vmatpush.bf16.msra.mxu0 %v2255
        %2808 = vmatpush.bf16.msra.mxu0 %v2253
        %2809 = vmatpush.bf16.msra.mxu0 %v2251
        %2810 = vmatpush.bf16.msra.mxu0 %v2249
        %2811 = vmatmul.bf16.gmra.mxu0 %v2041
        %v2812 = vpop.f32.mrf.mxu0
        %v2813 = vadd.f32 %v2644, %v2812
        %v2814 = vpop.f32.mrf.mxu0
        %v2815 = vadd.f32 %v2646, %v2814
        %2816 = vmatmul.bf16.gmra.mxu0 %v2043
        %v2817 = vpop.f32.mrf.mxu0
        %v2818 = vadd.f32 %v2649, %v2817
        %v2819 = vpop.f32.mrf.mxu0
        %v2820 = vadd.f32 %v2651, %v2819
        %2821 = vmatmul.bf16.gmra.mxu0 %v2045
        %v2822 = vpop.f32.mrf.mxu0
        %v2823 = vadd.f32 %v2654, %v2822
        %v2824 = vpop.f32.mrf.mxu0
        %v2825 = vadd.f32 %v2656, %v2824
        %2826 = vmatmul.bf16.gmra.mxu0 %v2047
        %v2827 = vpop.f32.mrf.mxu0
        %v2828 = vadd.f32 %v2659, %v2827
        %v2829 = vpop.f32.mrf.mxu0
        %v2830 = vadd.f32 %v2661, %v2829
        %2831 = vmatmul.bf16.gmra.mxu0 %v2049
        %v2832 = vpop.f32.mrf.mxu0
        %v2833 = vadd.f32 %v2664, %v2832
        %v2834 = vpop.f32.mrf.mxu0
        %v2835 = vadd.f32 %v2666, %v2834
        %2836 = vmatmul.bf16.gmra.mxu0 %v2051
        %v2837 = vpop.f32.mrf.mxu0
        %v2838 = vadd.f32 %v2669, %v2837
        %v2839 = vpop.f32.mrf.mxu0
        %v2840 = vadd.f32 %v2671, %v2839
        %2841 = vmatmul.bf16.gmra.mxu0 %v2053
        %v2842 = vpop.f32.mrf.mxu0
        %v2843 = vadd.f32 %v2674, %v2842
        %v2844 = vpop.f32.mrf.mxu0
        %v2845 = vadd.f32 %v2676, %v2844
        %2846 = vmatmul.bf16.gmra.mxu0 %v2055
        %v2847 = vpop.f32.mrf.mxu0
        %v2848 = vadd.f32 %v2679, %v2847
        %v2849 = vpop.f32.mrf.mxu0
        %v2850 = vadd.f32 %v2681, %v2849
        %2851 = vmatmul.bf16.gmra.mxu0 %v2057
        %v2852 = vpop.f32.mrf.mxu0
        %v2853 = vadd.f32 %v2684, %v2852
        %v2854 = vpop.f32.mrf.mxu0
        %v2855 = vadd.f32 %v2686, %v2854
        %2856 = vmatmul.bf16.gmra.mxu0 %v2059
        %v2857 = vpop.f32.mrf.mxu0
        %v2858 = vadd.f32 %v2689, %v2857
        %v2859 = vpop.f32.mrf.mxu0
        %v2860 = vadd.f32 %v2691, %v2859
        %2861 = vmatmul.bf16.gmra.mxu0 %v2061
        %v2862 = vpop.f32.mrf.mxu0
        %v2863 = vadd.f32 %v2694, %v2862
        %v2864 = vpop.f32.mrf.mxu0
        %v2865 = vadd.f32 %v2696, %v2864
        %2866 = vmatmul.bf16.gmra.mxu0 %v2063
        %v2867 = vpop.f32.mrf.mxu0
        %v2868 = vadd.f32 %v2699, %v2867
        %v2869 = vpop.f32.mrf.mxu0
        %v2870 = vadd.f32 %v2701, %v2869
        %2871 = vmatmul.bf16.gmra.mxu0 %v2065
        %v2872 = vpop.f32.mrf.mxu0
        %v2873 = vadd.f32 %v2704, %v2872
        %v2874 = vpop.f32.mrf.mxu0
        %v2875 = vadd.f32 %v2706, %v2874
        %2876 = vmatmul.bf16.gmra.mxu0 %v2067
        %v2877 = vpop.f32.mrf.mxu0
        %v2878 = vadd.f32 %v2709, %v2877
        %v2879 = vpop.f32.mrf.mxu0
        %v2880 = vadd.f32 %v2711, %v2879
        %2881 = vmatmul.bf16.gmra.mxu0 %v2069
        %v2882 = vpop.f32.mrf.mxu0
        %v2883 = vadd.f32 %v2714, %v2882
        %v2884 = vpop.f32.mrf.mxu0
        %v2885 = vadd.f32 %v2716, %v2884
        %2886 = vmatmul.bf16.gmra.mxu0 %v2071
        %v2887 = vpop.f32.mrf.mxu0
        %v2888 = vadd.f32 %v2719, %v2887
        %v2889 = vpop.f32.mrf.mxu0
        %v2890 = vadd.f32 %v2721, %v2889
        %2891 = vmatmul.bf16.gmra.mxu0 %v2073
        %v2892 = vpop.f32.mrf.mxu0
        %v2893 = vadd.f32 %v2724, %v2892
        %v2894 = vpop.f32.mrf.mxu0
        %v2895 = vadd.f32 %v2726, %v2894
        %2896 = vmatmul.bf16.gmra.mxu0 %v2075
        %v2897 = vpop.f32.mrf.mxu0
        %v2898 = vadd.f32 %v2729, %v2897
        %v2899 = vpop.f32.mrf.mxu0
        %v2900 = vadd.f32 %v2731, %v2899
        %2901 = vmatmul.bf16.gmra.mxu0 %v2077
        %v2902 = vpop.f32.mrf.mxu0
        %v2903 = vadd.f32 %v2734, %v2902
        %v2904 = vpop.f32.mrf.mxu0
        %v2905 = vadd.f32 %v2736, %v2904
        %2906 = vmatmul.bf16.gmra.mxu0 %v2079
        %v2907 = vpop.f32.mrf.mxu0
        %v2908 = vadd.f32 %v2739, %v2907
        %v2909 = vpop.f32.mrf.mxu0
        %v2910 = vadd.f32 %v2741, %v2909
        %2911 = vmatmul.bf16.gmra.mxu0 %v2081
        %v2912 = vpop.f32.mrf.mxu0
        %v2913 = vadd.f32 %v2744, %v2912
        %v2914 = vpop.f32.mrf.mxu0
        %v2915 = vadd.f32 %v2746, %v2914
        %2916 = vmatmul.bf16.gmra.mxu0 %v2083
        %v2917 = vpop.f32.mrf.mxu0
        %v2918 = vadd.f32 %v2749, %v2917
        %v2919 = vpop.f32.mrf.mxu0
        %v2920 = vadd.f32 %v2751, %v2919
        %2921 = vmatmul.bf16.gmra.mxu0 %v2085
        %v2922 = vpop.f32.mrf.mxu0
        %v2923 = vadd.f32 %v2754, %v2922
        %v2924 = vpop.f32.mrf.mxu0
        %v2925 = vadd.f32 %v2756, %v2924
        %2926 = vmatmul.bf16.gmra.mxu0 %v2087
        %v2927 = vpop.f32.mrf.mxu0
        %v2928 = vadd.f32 %v2759, %v2927
        %v2929 = vpop.f32.mrf.mxu0
        %v2930 = vadd.f32 %v2761, %v2929
        %2931 = vmatmul.bf16.gmra.mxu0 %v2089
        %v2932 = vpop.f32.mrf.mxu0
        %v2933 = vadd.f32 %v2764, %v2932
        %v2934 = vpop.f32.mrf.mxu0
        %v2935 = vadd.f32 %v2766, %v2934
        %2936 = vmatmul.bf16.gmra.mxu0 %v2091
        %v2937 = vpop.f32.mrf.mxu0
        %v2938 = vadd.f32 %v2769, %v2937
        %v2939 = vpop.f32.mrf.mxu0
        %v2940 = vadd.f32 %v2771, %v2939
        %2941 = vmatmul.bf16.gmra.mxu0 %v2093
        %v2942 = vpop.f32.mrf.mxu0
        %v2943 = vadd.f32 %v2774, %v2942
        %v2944 = vpop.f32.mrf.mxu0
        %v2945 = vadd.f32 %v2776, %v2944
        %2946 = vmatmul.bf16.gmra.mxu0 %v2095
        %v2947 = vpop.f32.mrf.mxu0
        %v2948 = vadd.f32 %v2779, %v2947
        %v2949 = vpop.f32.mrf.mxu0
        %v2950 = vadd.f32 %v2781, %v2949
        %2951 = vmatmul.bf16.gmra.mxu0 %v2097
        %v2952 = vpop.f32.mrf.mxu0
        %v2953 = vadd.f32 %v2784, %v2952
        %v2954 = vpop.f32.mrf.mxu0
        %v2955 = vadd.f32 %v2786, %v2954
        %2956 = vmatmul.bf16.gmra.mxu0 %v2099
        %v2957 = vpop.f32.mrf.mxu0
        %v2958 = vadd.f32 %v2789, %v2957
        %v2959 = vpop.f32.mrf.mxu0
        %v2960 = vadd.f32 %v2791, %v2959
        %2961 = vmatmul.bf16.gmra.mxu0 %v2101
        %v2962 = vpop.f32.mrf.mxu0
        %v2963 = vadd.f32 %v2794, %v2962
        %v2964 = vpop.f32.mrf.mxu0
        %v2965 = vadd.f32 %v2796, %v2964
        %2966 = vmatmul.bf16.gmra.mxu0 %v2103
        %v2967 = vpop.f32.mrf.mxu0
        %v2968 = vadd.f32 %v2799, %v2967
        %v2969 = vpop.f32.mrf.mxu0
        %v2970 = vadd.f32 %v2801, %v2969
        %2971 = vdwg.mxu0
        %v2972 = vadd.f32 %v1912, %v2475
        %v2973 = vadd.f32 %v1913, %v2813
        %v2974 = vadd.f32 %v1914, %v2477
        %v2975 = vadd.f32 %v1915, %v2815
        %v2976 = vadd.f32 %v1916, %v2480
        %v2977 = vadd.f32 %v1917, %v2818
        %v2978 = vadd.f32 %v1918, %v2482
        %v2979 = vadd.f32 %v1919, %v2820
        %v2980 = vadd.f32 %v1920, %v2485
        %v2981 = vadd.f32 %v1921, %v2823
        %v2982 = vadd.f32 %v1922, %v2487
        %v2983 = vadd.f32 %v1923, %v2825
        %v2984 = vadd.f32 %v1924, %v2490
        %v2985 = vadd.f32 %v1925, %v2828
        %v2986 = vadd.f32 %v1926, %v2492
        %v2987 = vadd.f32 %v1927, %v2830
        %v2988 = vadd.f32 %v1928, %v2495
        %v2989 = vadd.f32 %v1929, %v2833
        %v2990 = vadd.f32 %v1930, %v2497
        %v2991 = vadd.f32 %v1931, %v2835
        %v2992 = vadd.f32 %v1932, %v2500
        %v2993 = vadd.f32 %v1933, %v2838
        %v2994 = vadd.f32 %v1934, %v2502
        %v2995 = vadd.f32 %v1935, %v2840
        %v2996 = vadd.f32 %v1936, %v2505
        %v2997 = vadd.f32 %v1937, %v2843
        %v2998 = vadd.f32 %v1938, %v2507
        %v2999 = vadd.f32 %v1939, %v2845
        %v3000 = vadd.f32 %v1940, %v2510
        %v3001 = vadd.f32 %v1941, %v2848
        %v3002 = vadd.f32 %v1942, %v2512
        %v3003 = vadd.f32 %v1943, %v2850
        %v3004 = vadd.f32 %v1944, %v2515
        %v3005 = vadd.f32 %v1945, %v2853
        %v3006 = vadd.f32 %v1946, %v2517
        %v3007 = vadd.f32 %v1947, %v2855
        %v3008 = vadd.f32 %v1948, %v2520
        %v3009 = vadd.f32 %v1949, %v2858
        %v3010 = vadd.f32 %v1950, %v2522
        %v3011 = vadd.f32 %v1951, %v2860
        %v3012 = vadd.f32 %v1952, %v2525
        %v3013 = vadd.f32 %v1953, %v2863
        %v3014 = vadd.f32 %v1954, %v2527
        %v3015 = vadd.f32 %v1955, %v2865
        %v3016 = vadd.f32 %v1956, %v2530
        %v3017 = vadd.f32 %v1957, %v2868
        %v3018 = vadd.f32 %v1958, %v2532
        %v3019 = vadd.f32 %v1959, %v2870
        %v3020 = vadd.f32 %v1960, %v2535
        %v3021 = vadd.f32 %v1961, %v2873
        %v3022 = vadd.f32 %v1962, %v2537
        %v3023 = vadd.f32 %v1963, %v2875
        %v3024 = vadd.f32 %v1964, %v2540
        %v3025 = vadd.f32 %v1965, %v2878
        %v3026 = vadd.f32 %v1966, %v2542
        %v3027 = vadd.f32 %v1967, %v2880
        %v3028 = vadd.f32 %v1968, %v2545
        %v3029 = vadd.f32 %v1969, %v2883
        %v3030 = vadd.f32 %v1970, %v2547
        %v3031 = vadd.f32 %v1971, %v2885
        %v3032 = vadd.f32 %v1972, %v2550
        %v3033 = vadd.f32 %v1973, %v2888
        %v3034 = vadd.f32 %v1974, %v2552
        %v3035 = vadd.f32 %v1975, %v2890
        %v3036 = vadd.f32 %v1976, %v2555
        %v3037 = vadd.f32 %v1977, %v2893
        %v3038 = vadd.f32 %v1978, %v2557
        %v3039 = vadd.f32 %v1979, %v2895
        %v3040 = vadd.f32 %v1980, %v2560
        %v3041 = vadd.f32 %v1981, %v2898
        %v3042 = vadd.f32 %v1982, %v2562
        %v3043 = vadd.f32 %v1983, %v2900
        %v3044 = vadd.f32 %v1984, %v2565
        %v3045 = vadd.f32 %v1985, %v2903
        %v3046 = vadd.f32 %v1986, %v2567
        %v3047 = vadd.f32 %v1987, %v2905
        %v3048 = vadd.f32 %v1988, %v2570
        %v3049 = vadd.f32 %v1989, %v2908
        %v3050 = vadd.f32 %v1990, %v2572
        %v3051 = vadd.f32 %v1991, %v2910
        %v3052 = vadd.f32 %v1992, %v2575
        %v3053 = vadd.f32 %v1993, %v2913
        %v3054 = vadd.f32 %v1994, %v2577
        %v3055 = vadd.f32 %v1995, %v2915
        %v3056 = vadd.f32 %v1996, %v2580
        %v3057 = vadd.f32 %v1997, %v2918
        %v3058 = vadd.f32 %v1998, %v2582
        %v3059 = vadd.f32 %v1999, %v2920
        %v3060 = vadd.f32 %v2000, %v2585
        %v3061 = vadd.f32 %v2001, %v2923
        %v3062 = vadd.f32 %v2002, %v2587
        %v3063 = vadd.f32 %v2003, %v2925
        %v3064 = vadd.f32 %v2004, %v2590
        %v3065 = vadd.f32 %v2005, %v2928
        %v3066 = vadd.f32 %v2006, %v2592
        %v3067 = vadd.f32 %v2007, %v2930
        %v3068 = vadd.f32 %v2008, %v2595
        %v3069 = vadd.f32 %v2009, %v2933
        %v3070 = vadd.f32 %v2010, %v2597
        %v3071 = vadd.f32 %v2011, %v2935
        %v3072 = vadd.f32 %v2012, %v2600
        %v3073 = vadd.f32 %v2013, %v2938
        %v3074 = vadd.f32 %v2014, %v2602
        %v3075 = vadd.f32 %v2015, %v2940
        %v3076 = vadd.f32 %v2016, %v2605
        %v3077 = vadd.f32 %v2017, %v2943
        %v3078 = vadd.f32 %v2018, %v2607
        %v3079 = vadd.f32 %v2019, %v2945
        %v3080 = vadd.f32 %v2020, %v2610
        %v3081 = vadd.f32 %v2021, %v2948
        %v3082 = vadd.f32 %v2022, %v2612
        %v3083 = vadd.f32 %v2023, %v2950
        %v3084 = vadd.f32 %v2024, %v2615
        %v3085 = vadd.f32 %v2025, %v2953
        %v3086 = vadd.f32 %v2026, %v2617
        %v3087 = vadd.f32 %v2027, %v2955
        %v3088 = vadd.f32 %v2028, %v2620
        %v3089 = vadd.f32 %v2029, %v2958
        %v3090 = vadd.f32 %v2030, %v2622
        %v3091 = vadd.f32 %v2031, %v2960
        %v3092 = vadd.f32 %v2032, %v2625
        %v3093 = vadd.f32 %v2033, %v2963
        %v3094 = vadd.f32 %v2034, %v2627
        %v3095 = vadd.f32 %v2035, %v2965
        %v3096 = vadd.f32 %v2036, %v2630
        %v3097 = vadd.f32 %v2037, %v2968
        %v3098 = vadd.f32 %v2038, %v2632
        %v3099 = vadd.f32 %v2039, %v2970
        %3100 = vst [vmem:[#allocation2] sm:$0xff] %v2972
        %3101 = vst [vmem:[#allocation2 + $0x8] sm:$0xff] %v2973
        %3102 = vst [vmem:[#allocation2 + $0x10] sm:$0xff] %v2974
        %3103 = vst [vmem:[#allocation2 + $0x18] sm:$0xff] %v2975
        %3104 = vst [vmem:[#allocation2 + $0x20] sm:$0xff] %v2976
        %3105 = vst [vmem:[#allocation2 + $0x28] sm:$0xff] %v2977
        %3106 = vst [vmem:[#allocation2 + $0x30] sm:$0xff] %v2978
        %3107 = vst [vmem:[#allocation2 + $0x38] sm:$0xff] %v2979
        %3108 = vst [vmem:[#allocation2 + $0x40] sm:$0xff] %v2980
        %3109 = vst [vmem:[#allocation2 + $0x48] sm:$0xff] %v2981
        %3110 = vst [vmem:[#allocation2 + $0x50] sm:$0xff] %v2982
        %3111 = vst [vmem:[#allocation2 + $0x58] sm:$0xff] %v2983
        %3112 = vst [vmem:[#allocation2 + $0x60] sm:$0xff] %v2984
        %3113 = vst [vmem:[#allocation2 + $0x68] sm:$0xff] %v2985
        %3114 = vst [vmem:[#allocation2 + $0x70] sm:$0xff] %v2986
        %3115 = vst [vmem:[#allocation2 + $0x78] sm:$0xff] %v2987
        %3116 = vst [vmem:[#allocation2 + $0x80] sm:$0xff] %v2988
        %3117 = vst [vmem:[#allocation2 + $0x88] sm:$0xff] %v2989
        %3118 = vst [vmem:[#allocation2 + $0x90] sm:$0xff] %v2990
        %3119 = vst [vmem:[#allocation2 + $0x98] sm:$0xff] %v2991
        %3120 = vst [vmem:[#allocation2 + $0xa0] sm:$0xff] %v2992
        %3121 = vst [vmem:[#allocation2 + $0xa8] sm:$0xff] %v2993
        %3122 = vst [vmem:[#allocation2 + $0xb0] sm:$0xff] %v2994
        %3123 = vst [vmem:[#allocation2 + $0xb8] sm:$0xff] %v2995
        %3124 = vst [vmem:[#allocation2 + $0xc0] sm:$0xff] %v2996
        %3125 = vst [vmem:[#allocation2 + $0xc8] sm:$0xff] %v2997
        %3126 = vst [vmem:[#allocation2 + $0xd0] sm:$0xff] %v2998
        %3127 = vst [vmem:[#allocation2 + $0xd8] sm:$0xff] %v2999
        %3128 = vst [vmem:[#allocation2 + $0xe0] sm:$0xff] %v3000
        %3129 = vst [vmem:[#allocation2 + $0xe8] sm:$0xff] %v3001
        %3130 = vst [vmem:[#allocation2 + $0xf0] sm:$0xff] %v3002
        %3131 = vst [vmem:[#allocation2 + $0xf8] sm:$0xff] %v3003
        %3132 = vst [vmem:[#allocation2 + $0x100] sm:$0xff] %v3004
        %3133 = vst [vmem:[#allocation2 + $0x108] sm:$0xff] %v3005
        %3134 = vst [vmem:[#allocation2 + $0x110] sm:$0xff] %v3006
        %3135 = vst [vmem:[#allocation2 + $0x118] sm:$0xff] %v3007
        %3136 = vst [vmem:[#allocation2 + $0x120] sm:$0xff] %v3008
        %3137 = vst [vmem:[#allocation2 + $0x128] sm:$0xff] %v3009
        %3138 = vst [vmem:[#allocation2 + $0x130] sm:$0xff] %v3010
        %3139 = vst [vmem:[#allocation2 + $0x138] sm:$0xff] %v3011
        %3140 = vst [vmem:[#allocation2 + $0x140] sm:$0xff] %v3012
        %3141 = vst [vmem:[#allocation2 + $0x148] sm:$0xff] %v3013
        %3142 = vst [vmem:[#allocation2 + $0x150] sm:$0xff] %v3014
        %3143 = vst [vmem:[#allocation2 + $0x158] sm:$0xff] %v3015
        %3144 = vst [vmem:[#allocation2 + $0x160] sm:$0xff] %v3016
        %3145 = vst [vmem:[#allocation2 + $0x168] sm:$0xff] %v3017
        %3146 = vst [vmem:[#allocation2 + $0x170] sm:$0xff] %v3018
        %3147 = vst [vmem:[#allocation2 + $0x178] sm:$0xff] %v3019
        %3148 = vst [vmem:[#allocation2 + $0x180] sm:$0xff] %v3020
        %3149 = vst [vmem:[#allocation2 + $0x188] sm:$0xff] %v3021
        %3150 = vst [vmem:[#allocation2 + $0x190] sm:$0xff] %v3022
        %3151 = vst [vmem:[#allocation2 + $0x198] sm:$0xff] %v3023
        %3152 = vst [vmem:[#allocation2 + $0x1a0] sm:$0xff] %v3024
        %3153 = vst [vmem:[#allocation2 + $0x1a8] sm:$0xff] %v3025
        %3154 = vst [vmem:[#allocation2 + $0x1b0] sm:$0xff] %v3026
        %3155 = vst [vmem:[#allocation2 + $0x1b8] sm:$0xff] %v3027
        %3156 = vst [vmem:[#allocation2 + $0x1c0] sm:$0xff] %v3028
        %3157 = vst [vmem:[#allocation2 + $0x1c8] sm:$0xff] %v3029
        %3158 = vst [vmem:[#allocation2 + $0x1d0] sm:$0xff] %v3030
        %3159 = vst [vmem:[#allocation2 + $0x1d8] sm:$0xff] %v3031
        %3160 = vst [vmem:[#allocation2 + $0x1e0] sm:$0xff] %v3032
        %3161 = vst [vmem:[#allocation2 + $0x1e8] sm:$0xff] %v3033
        %3162 = vst [vmem:[#allocation2 + $0x1f0] sm:$0xff] %v3034
        %3163 = vst [vmem:[#allocation2 + $0x1f8] sm:$0xff] %v3035
        %3164 = vst [vmem:[#allocation2 + $0x200] sm:$0xff] %v3036
        %3165 = vst [vmem:[#allocation2 + $0x208] sm:$0xff] %v3037
        %3166 = vst [vmem:[#allocation2 + $0x210] sm:$0xff] %v3038
        %3167 = vst [vmem:[#allocation2 + $0x218] sm:$0xff] %v3039
        %3168 = vst [vmem:[#allocation2 + $0x220] sm:$0xff] %v3040
        %3169 = vst [vmem:[#allocation2 + $0x228] sm:$0xff] %v3041
        %3170 = vst [vmem:[#allocation2 + $0x230] sm:$0xff] %v3042
        %3171 = vst [vmem:[#allocation2 + $0x238] sm:$0xff] %v3043
        %3172 = vst [vmem:[#allocation2 + $0x240] sm:$0xff] %v3044
        %3173 = vst [vmem:[#allocation2 + $0x248] sm:$0xff] %v3045
        %3174 = vst [vmem:[#allocation2 + $0x250] sm:$0xff] %v3046
        %3175 = vst [vmem:[#allocation2 + $0x258] sm:$0xff] %v3047
        %3176 = vst [vmem:[#allocation2 + $0x260] sm:$0xff] %v3048
        %3177 = vst [vmem:[#allocation2 + $0x268] sm:$0xff] %v3049
        %3178 = vst [vmem:[#allocation2 + $0x270] sm:$0xff] %v3050
        %3179 = vst [vmem:[#allocation2 + $0x278] sm:$0xff] %v3051
        %3180 = vst [vmem:[#allocation2 + $0x280] sm:$0xff] %v3052
        %3181 = vst [vmem:[#allocation2 + $0x288] sm:$0xff] %v3053
        %3182 = vst [vmem:[#allocation2 + $0x290] sm:$0xff] %v3054
        %3183 = vst [vmem:[#allocation2 + $0x298] sm:$0xff] %v3055
        %3184 = vst [vmem:[#allocation2 + $0x2a0] sm:$0xff] %v3056
        %3185 = vst [vmem:[#allocation2 + $0x2a8] sm:$0xff] %v3057
        %3186 = vst [vmem:[#allocation2 + $0x2b0] sm:$0xff] %v3058
        %3187 = vst [vmem:[#allocation2 + $0x2b8] sm:$0xff] %v3059
        %3188 = vst [vmem:[#allocation2 + $0x2c0] sm:$0xff] %v3060
        %3189 = vst [vmem:[#allocation2 + $0x2c8] sm:$0xff] %v3061
        %3190 = vst [vmem:[#allocation2 + $0x2d0] sm:$0xff] %v3062
        %3191 = vst [vmem:[#allocation2 + $0x2d8] sm:$0xff] %v3063
        %3192 = vst [vmem:[#allocation2 + $0x2e0] sm:$0xff] %v3064
        %3193 = vst [vmem:[#allocation2 + $0x2e8] sm:$0xff] %v3065
        %3194 = vst [vmem:[#allocation2 + $0x2f0] sm:$0xff] %v3066
        %3195 = vst [vmem:[#allocation2 + $0x2f8] sm:$0xff] %v3067
        %3196 = vst [vmem:[#allocation2 + $0x300] sm:$0xff] %v3068
        %3197 = vst [vmem:[#allocation2 + $0x308] sm:$0xff] %v3069
        %3198 = vst [vmem:[#allocation2 + $0x310] sm:$0xff] %v3070
        %3199 = vst [vmem:[#allocation2 + $0x318] sm:$0xff] %v3071
        %3200 = vst [vmem:[#allocation2 + $0x320] sm:$0xff] %v3072
        %3201 = vst [vmem:[#allocation2 + $0x328] sm:$0xff] %v3073
        %3202 = vst [vmem:[#allocation2 + $0x330] sm:$0xff] %v3074
        %3203 = vst [vmem:[#allocation2 + $0x338] sm:$0xff] %v3075
        %3204 = vst [vmem:[#allocation2 + $0x340] sm:$0xff] %v3076
        %3205 = vst [vmem:[#allocation2 + $0x348] sm:$0xff] %v3077
        %3206 = vst [vmem:[#allocation2 + $0x350] sm:$0xff] %v3078
        %3207 = vst [vmem:[#allocation2 + $0x358] sm:$0xff] %v3079
        %3208 = vst [vmem:[#allocation2 + $0x360] sm:$0xff] %v3080
        %3209 = vst [vmem:[#allocation2 + $0x368] sm:$0xff] %v3081
        %3210 = vst [vmem:[#allocation2 + $0x370] sm:$0xff] %v3082
        %3211 = vst [vmem:[#allocation2 + $0x378] sm:$0xff] %v3083
        %3212 = vst [vmem:[#allocation2 + $0x380] sm:$0xff] %v3084
        %3213 = vst [vmem:[#allocation2 + $0x388] sm:$0xff] %v3085
        %3214 = vst [vmem:[#allocation2 + $0x390] sm:$0xff] %v3086
        %3215 = vst [vmem:[#allocation2 + $0x398] sm:$0xff] %v3087
        %3216 = vst [vmem:[#allocation2 + $0x3a0] sm:$0xff] %v3088
        %3217 = vst [vmem:[#allocation2 + $0x3a8] sm:$0xff] %v3089
        %3218 = vst [vmem:[#allocation2 + $0x3b0] sm:$0xff] %v3090
        %3219 = vst [vmem:[#allocation2 + $0x3b8] sm:$0xff] %v3091
        %3220 = vst [vmem:[#allocation2 + $0x3c0] sm:$0xff] %v3092
        %3221 = vst [vmem:[#allocation2 + $0x3c8] sm:$0xff] %v3093
        %3222 = vst [vmem:[#allocation2 + $0x3d0] sm:$0xff] %v3094
        %3223 = vst [vmem:[#allocation2 + $0x3d8] sm:$0xff] %v3095
        %3224 = vst [vmem:[#allocation2 + $0x3e0] sm:$0xff] %v3096
        %3225 = vst [vmem:[#allocation2 + $0x3e8] sm:$0xff] %v3097
        %3226 = vst [vmem:[#allocation2 + $0x3f0] sm:$0xff] %v3098
        %3227 = vst [vmem:[#allocation2 + $0x3f8] sm:$0xff] %v3099
        %p3228 = scmp.eq.s32.totalorder %s31, 3
        // Predicated region
        $region61: #{tpu_custom_call.1} parent=39 // pred_check
          %p3229 = pneg %p3228
        $region62: #{tpu_custom_call.1} parent=39 // pred_check_branch
          %3231 = sbr.rel (%p3229) target = $region64
        $region63: #{tpu_custom_call.1} parent=39 // pred_region
          %v3232 = vld [vmem:[#allocation2] sm:$0xff]
          %v3233 = vld [vmem:[#allocation2 + $0x8] sm:$0xff]
          %v3234 = vld [vmem:[#allocation2 + $0x10] sm:$0xff]
          %v3235 = vld [vmem:[#allocation2 + $0x18] sm:$0xff]
          %v3236 = vld [vmem:[#allocation2 + $0x20] sm:$0xff]
          %v3237 = vld [vmem:[#allocation2 + $0x28] sm:$0xff]
          %v3238 = vld [vmem:[#allocation2 + $0x30] sm:$0xff]
          %v3239 = vld [vmem:[#allocation2 + $0x38] sm:$0xff]
          %v3240 = vld [vmem:[#allocation2 + $0x40] sm:$0xff]
          %v3241 = vld [vmem:[#allocation2 + $0x48] sm:$0xff]
          %v3242 = vld [vmem:[#allocation2 + $0x50] sm:$0xff]
          %v3243 = vld [vmem:[#allocation2 + $0x58] sm:$0xff]
          %v3244 = vld [vmem:[#allocation2 + $0x60] sm:$0xff]
          %v3245 = vld [vmem:[#allocation2 + $0x68] sm:$0xff]
          %v3246 = vld [vmem:[#allocation2 + $0x70] sm:$0xff]
          %v3247 = vld [vmem:[#allocation2 + $0x78] sm:$0xff]
          %v3248 = vld [vmem:[#allocation2 + $0x80] sm:$0xff]
          %v3249 = vld [vmem:[#allocation2 + $0x88] sm:$0xff]
          %v3250 = vld [vmem:[#allocation2 + $0x90] sm:$0xff]
          %v3251 = vld [vmem:[#allocation2 + $0x98] sm:$0xff]
          %v3252 = vld [vmem:[#allocation2 + $0xa0] sm:$0xff]
          %v3253 = vld [vmem:[#allocation2 + $0xa8] sm:$0xff]
          %v3254 = vld [vmem:[#allocation2 + $0xb0] sm:$0xff]
          %v3255 = vld [vmem:[#allocation2 + $0xb8] sm:$0xff]
          %v3256 = vld [vmem:[#allocation2 + $0xc0] sm:$0xff]
          %v3257 = vld [vmem:[#allocation2 + $0xc8] sm:$0xff]
          %v3258 = vld [vmem:[#allocation2 + $0xd0] sm:$0xff]
          %v3259 = vld [vmem:[#allocation2 + $0xd8] sm:$0xff]
          %v3260 = vld [vmem:[#allocation2 + $0xe0] sm:$0xff]
          %v3261 = vld [vmem:[#allocation2 + $0xe8] sm:$0xff]
          %v3262 = vld [vmem:[#allocation2 + $0xf0] sm:$0xff]
          %v3263 = vld [vmem:[#allocation2 + $0xf8] sm:$0xff]
          %v3264 = vld [vmem:[#allocation2 + $0x100] sm:$0xff]
          %v3265 = vld [vmem:[#allocation2 + $0x108] sm:$0xff]
          %v3266 = vld [vmem:[#allocation2 + $0x110] sm:$0xff]
          %v3267 = vld [vmem:[#allocation2 + $0x118] sm:$0xff]
          %v3268 = vld [vmem:[#allocation2 + $0x120] sm:$0xff]
          %v3269 = vld [vmem:[#allocation2 + $0x128] sm:$0xff]
          %v3270 = vld [vmem:[#allocation2 + $0x130] sm:$0xff]
          %v3271 = vld [vmem:[#allocation2 + $0x138] sm:$0xff]
          %v3272 = vld [vmem:[#allocation2 + $0x140] sm:$0xff]
          %v3273 = vld [vmem:[#allocation2 + $0x148] sm:$0xff]
          %v3274 = vld [vmem:[#allocation2 + $0x150] sm:$0xff]
          %v3275 = vld [vmem:[#allocation2 + $0x158] sm:$0xff]
          %v3276 = vld [vmem:[#allocation2 + $0x160] sm:$0xff]
          %v3277 = vld [vmem:[#allocation2 + $0x168] sm:$0xff]
          %v3278 = vld [vmem:[#allocation2 + $0x170] sm:$0xff]
          %v3279 = vld [vmem:[#allocation2 + $0x178] sm:$0xff]
          %v3280 = vld [vmem:[#allocation2 + $0x180] sm:$0xff]
          %v3281 = vld [vmem:[#allocation2 + $0x188] sm:$0xff]
          %v3282 = vld [vmem:[#allocation2 + $0x190] sm:$0xff]
          %v3283 = vld [vmem:[#allocation2 + $0x198] sm:$0xff]
          %v3284 = vld [vmem:[#allocation2 + $0x1a0] sm:$0xff]
          %v3285 = vld [vmem:[#allocation2 + $0x1a8] sm:$0xff]
          %v3286 = vld [vmem:[#allocation2 + $0x1b0] sm:$0xff]
          %v3287 = vld [vmem:[#allocation2 + $0x1b8] sm:$0xff]
          %v3288 = vld [vmem:[#allocation2 + $0x1c0] sm:$0xff]
          %v3289 = vld [vmem:[#allocation2 + $0x1c8] sm:$0xff]
          %v3290 = vld [vmem:[#allocation2 + $0x1d0] sm:$0xff]
          %v3291 = vld [vmem:[#allocation2 + $0x1d8] sm:$0xff]
          %v3292 = vld [vmem:[#allocation2 + $0x1e0] sm:$0xff]
          %v3293 = vld [vmem:[#allocation2 + $0x1e8] sm:$0xff]
          %v3294 = vld [vmem:[#allocation2 + $0x1f0] sm:$0xff]
          %v3295 = vld [vmem:[#allocation2 + $0x1f8] sm:$0xff]
          %v3296 = vld [vmem:[#allocation2 + $0x200] sm:$0xff]
          %v3297 = vld [vmem:[#allocation2 + $0x208] sm:$0xff]
          %v3298 = vld [vmem:[#allocation2 + $0x210] sm:$0xff]
          %v3299 = vld [vmem:[#allocation2 + $0x218] sm:$0xff]
          %v3300 = vld [vmem:[#allocation2 + $0x220] sm:$0xff]
          %v3301 = vld [vmem:[#allocation2 + $0x228] sm:$0xff]
          %v3302 = vld [vmem:[#allocation2 + $0x230] sm:$0xff]
          %v3303 = vld [vmem:[#allocation2 + $0x238] sm:$0xff]
          %v3304 = vld [vmem:[#allocation2 + $0x240] sm:$0xff]
          %v3305 = vld [vmem:[#allocation2 + $0x248] sm:$0xff]
          %v3306 = vld [vmem:[#allocation2 + $0x250] sm:$0xff]
          %v3307 = vld [vmem:[#allocation2 + $0x258] sm:$0xff]
          %v3308 = vld [vmem:[#allocation2 + $0x260] sm:$0xff]
          %v3309 = vld [vmem:[#allocation2 + $0x268] sm:$0xff]
          %v3310 = vld [vmem:[#allocation2 + $0x270] sm:$0xff]
          %v3311 = vld [vmem:[#allocation2 + $0x278] sm:$0xff]
          %v3312 = vld [vmem:[#allocation2 + $0x280] sm:$0xff]
          %v3313 = vld [vmem:[#allocation2 + $0x288] sm:$0xff]
          %v3314 = vld [vmem:[#allocation2 + $0x290] sm:$0xff]
          %v3315 = vld [vmem:[#allocation2 + $0x298] sm:$0xff]
          %v3316 = vld [vmem:[#allocation2 + $0x2a0] sm:$0xff]
          %v3317 = vld [vmem:[#allocation2 + $0x2a8] sm:$0xff]
          %v3318 = vld [vmem:[#allocation2 + $0x2b0] sm:$0xff]
          %v3319 = vld [vmem:[#allocation2 + $0x2b8] sm:$0xff]
          %v3320 = vld [vmem:[#allocation2 + $0x2c0] sm:$0xff]
          %v3321 = vld [vmem:[#allocation2 + $0x2c8] sm:$0xff]
          %v3322 = vld [vmem:[#allocation2 + $0x2d0] sm:$0xff]
          %v3323 = vld [vmem:[#allocation2 + $0x2d8] sm:$0xff]
          %v3324 = vld [vmem:[#allocation2 + $0x2e0] sm:$0xff]
          %v3325 = vld [vmem:[#allocation2 + $0x2e8] sm:$0xff]
          %v3326 = vld [vmem:[#allocation2 + $0x2f0] sm:$0xff]
          %v3327 = vld [vmem:[#allocation2 + $0x2f8] sm:$0xff]
          %v3328 = vld [vmem:[#allocation2 + $0x300] sm:$0xff]
          %v3329 = vld [vmem:[#allocation2 + $0x308] sm:$0xff]
          %v3330 = vld [vmem:[#allocation2 + $0x310] sm:$0xff]
          %v3331 = vld [vmem:[#allocation2 + $0x318] sm:$0xff]
          %v3332 = vld [vmem:[#allocation2 + $0x320] sm:$0xff]
          %v3333 = vld [vmem:[#allocation2 + $0x328] sm:$0xff]
          %v3334 = vld [vmem:[#allocation2 + $0x330] sm:$0xff]
          %v3335 = vld [vmem:[#allocation2 + $0x338] sm:$0xff]
          %v3336 = vld [vmem:[#allocation2 + $0x340] sm:$0xff]
          %v3337 = vld [vmem:[#allocation2 + $0x348] sm:$0xff]
          %v3338 = vld [vmem:[#allocation2 + $0x350] sm:$0xff]
          %v3339 = vld [vmem:[#allocation2 + $0x358] sm:$0xff]
          %v3340 = vld [vmem:[#allocation2 + $0x360] sm:$0xff]
          %v3341 = vld [vmem:[#allocation2 + $0x368] sm:$0xff]
          %v3342 = vld [vmem:[#allocation2 + $0x370] sm:$0xff]
          %v3343 = vld [vmem:[#allocation2 + $0x378] sm:$0xff]
          %v3344 = vld [vmem:[#allocation2 + $0x380] sm:$0xff]
          %v3345 = vld [vmem:[#allocation2 + $0x388] sm:$0xff]
          %v3346 = vld [vmem:[#allocation2 + $0x390] sm:$0xff]
          %v3347 = vld [vmem:[#allocation2 + $0x398] sm:$0xff]
          %v3348 = vld [vmem:[#allocation2 + $0x3a0] sm:$0xff]
          %v3349 = vld [vmem:[#allocation2 + $0x3a8] sm:$0xff]
          %v3350 = vld [vmem:[#allocation2 + $0x3b0] sm:$0xff]
          %v3351 = vld [vmem:[#allocation2 + $0x3b8] sm:$0xff]
          %v3352 = vld [vmem:[#allocation2 + $0x3c0] sm:$0xff]
          %v3353 = vld [vmem:[#allocation2 + $0x3c8] sm:$0xff]
          %v3354 = vld [vmem:[#allocation2 + $0x3d0] sm:$0xff]
          %v3355 = vld [vmem:[#allocation2 + $0x3d8] sm:$0xff]
          %v3356 = vld [vmem:[#allocation2 + $0x3e0] sm:$0xff]
          %v3357 = vld [vmem:[#allocation2 + $0x3e8] sm:$0xff]
          %v3358 = vld [vmem:[#allocation2 + $0x3f0] sm:$0xff]
          %v3359 = vld [vmem:[#allocation2 + $0x3f8] sm:$0xff]
          %v3360 = vld [vmem:[%s390] sm:$0x3]
          %v3362 = vperm.slane %v3360, 0
          %v3363 = vperm.slane %v3360, 1
          %v3366 = vadd.f32 %v3232, %v3362
          %v3367 = vadd.f32 %v3233, %v3363
          %v3368 = vadd.f32 %v3234, %v3362
          %v3369 = vadd.f32 %v3235, %v3363
          %v3370 = vadd.f32 %v3236, %v3362
          %v3371 = vadd.f32 %v3237, %v3363
          %v3372 = vadd.f32 %v3238, %v3362
          %v3373 = vadd.f32 %v3239, %v3363
          %v3374 = vadd.f32 %v3240, %v3362
          %v3375 = vadd.f32 %v3241, %v3363
          %v3376 = vadd.f32 %v3242, %v3362
          %v3377 = vadd.f32 %v3243, %v3363
          %v3378 = vadd.f32 %v3244, %v3362
          %v3379 = vadd.f32 %v3245, %v3363
          %v3380 = vadd.f32 %v3246, %v3362
          %v3381 = vadd.f32 %v3247, %v3363
          %v3382 = vadd.f32 %v3248, %v3362
          %v3383 = vadd.f32 %v3249, %v3363
          %v3384 = vadd.f32 %v3250, %v3362
          %v3385 = vadd.f32 %v3251, %v3363
          %v3386 = vadd.f32 %v3252, %v3362
          %v3387 = vadd.f32 %v3253, %v3363
          %v3388 = vadd.f32 %v3254, %v3362
          %v3389 = vadd.f32 %v3255, %v3363
          %v3390 = vadd.f32 %v3256, %v3362
          %v3391 = vadd.f32 %v3257, %v3363
          %v3392 = vadd.f32 %v3258, %v3362
          %v3393 = vadd.f32 %v3259, %v3363
          %v3394 = vadd.f32 %v3260, %v3362
          %v3395 = vadd.f32 %v3261, %v3363
          %v3396 = vadd.f32 %v3262, %v3362
          %v3397 = vadd.f32 %v3263, %v3363
          %v3398 = vadd.f32 %v3264, %v3362
          %v3399 = vadd.f32 %v3265, %v3363
          %v3400 = vadd.f32 %v3266, %v3362
          %v3401 = vadd.f32 %v3267, %v3363
          %v3402 = vadd.f32 %v3268, %v3362
          %v3403 = vadd.f32 %v3269, %v3363
          %v3404 = vadd.f32 %v3270, %v3362
          %v3405 = vadd.f32 %v3271, %v3363
          %v3406 = vadd.f32 %v3272, %v3362
          %v3407 = vadd.f32 %v3273, %v3363
          %v3408 = vadd.f32 %v3274, %v3362
          %v3409 = vadd.f32 %v3275, %v3363
          %v3410 = vadd.f32 %v3276, %v3362
          %v3411 = vadd.f32 %v3277, %v3363
          %v3412 = vadd.f32 %v3278, %v3362
          %v3413 = vadd.f32 %v3279, %v3363
          %v3414 = vadd.f32 %v3280, %v3362
          %v3415 = vadd.f32 %v3281, %v3363
          %v3416 = vadd.f32 %v3282, %v3362
          %v3417 = vadd.f32 %v3283, %v3363
          %v3418 = vadd.f32 %v3284, %v3362
          %v3419 = vadd.f32 %v3285, %v3363
          %v3420 = vadd.f32 %v3286, %v3362
          %v3421 = vadd.f32 %v3287, %v3363
          %v3422 = vadd.f32 %v3288, %v3362
          %v3423 = vadd.f32 %v3289, %v3363
          %v3424 = vadd.f32 %v3290, %v3362
          %v3425 = vadd.f32 %v3291, %v3363
          %v3426 = vadd.f32 %v3292, %v3362
          %v3427 = vadd.f32 %v3293, %v3363
          %v3428 = vadd.f32 %v3294, %v3362
          %v3429 = vadd.f32 %v3295, %v3363
          %v3430 = vadd.f32 %v3296, %v3362
          %v3431 = vadd.f32 %v3297, %v3363
          %v3432 = vadd.f32 %v3298, %v3362
          %v3433 = vadd.f32 %v3299, %v3363
          %v3434 = vadd.f32 %v3300, %v3362
          %v3435 = vadd.f32 %v3301, %v3363
          %v3436 = vadd.f32 %v3302, %v3362
          %v3437 = vadd.f32 %v3303, %v3363
          %v3438 = vadd.f32 %v3304, %v3362
          %v3439 = vadd.f32 %v3305, %v3363
          %v3440 = vadd.f32 %v3306, %v3362
          %v3441 = vadd.f32 %v3307, %v3363
          %v3442 = vadd.f32 %v3308, %v3362
          %v3443 = vadd.f32 %v3309, %v3363
          %v3444 = vadd.f32 %v3310, %v3362
          %v3445 = vadd.f32 %v3311, %v3363
          %v3446 = vadd.f32 %v3312, %v3362
          %v3447 = vadd.f32 %v3313, %v3363
          %v3448 = vadd.f32 %v3314, %v3362
          %v3449 = vadd.f32 %v3315, %v3363
          %v3450 = vadd.f32 %v3316, %v3362
          %v3451 = vadd.f32 %v3317, %v3363
          %v3452 = vadd.f32 %v3318, %v3362
          %v3453 = vadd.f32 %v3319, %v3363
          %v3454 = vadd.f32 %v3320, %v3362
          %v3455 = vadd.f32 %v3321, %v3363
          %v3456 = vadd.f32 %v3322, %v3362
          %v3457 = vadd.f32 %v3323, %v3363
          %v3458 = vadd.f32 %v3324, %v3362
          %v3459 = vadd.f32 %v3325, %v3363
          %v3460 = vadd.f32 %v3326, %v3362
          %v3461 = vadd.f32 %v3327, %v3363
          %v3462 = vadd.f32 %v3328, %v3362
          %v3463 = vadd.f32 %v3329, %v3363
          %v3464 = vadd.f32 %v3330, %v3362
          %v3465 = vadd.f32 %v3331, %v3363
          %v3466 = vadd.f32 %v3332, %v3362
          %v3467 = vadd.f32 %v3333, %v3363
          %v3468 = vadd.f32 %v3334, %v3362
          %v3469 = vadd.f32 %v3335, %v3363
          %v3470 = vadd.f32 %v3336, %v3362
          %v3471 = vadd.f32 %v3337, %v3363
          %v3472 = vadd.f32 %v3338, %v3362
          %v3473 = vadd.f32 %v3339, %v3363
          %v3474 = vadd.f32 %v3340, %v3362
          %v3475 = vadd.f32 %v3341, %v3363
          %v3476 = vadd.f32 %v3342, %v3362
          %v3477 = vadd.f32 %v3343, %v3363
          %v3478 = vadd.f32 %v3344, %v3362
          %v3479 = vadd.f32 %v3345, %v3363
          %v3480 = vadd.f32 %v3346, %v3362
          %v3481 = vadd.f32 %v3347, %v3363
          %v3482 = vadd.f32 %v3348, %v3362
          %v3483 = vadd.f32 %v3349, %v3363
          %v3484 = vadd.f32 %v3350, %v3362
          %v3485 = vadd.f32 %v3351, %v3363
          %v3486 = vadd.f32 %v3352, %v3362
          %v3487 = vadd.f32 %v3353, %v3363
          %v3488 = vadd.f32 %v3354, %v3362
          %v3489 = vadd.f32 %v3355, %v3363
          %v3490 = vadd.f32 %v3356, %v3362
          %v3491 = vadd.f32 %v3357, %v3363
          %v3492 = vadd.f32 %v3358, %v3362
          %v3493 = vadd.f32 %v3359, %v3363
          %3494 = vst [vmem:[#allocation11] sm:$0xff] %v3366
          %3495 = vst [vmem:[#allocation11 + $0x8] sm:$0xff] %v3367
          %3496 = vst [vmem:[#allocation11 + $0x10] sm:$0xff] %v3368
          %3497 = vst [vmem:[#allocation11 + $0x18] sm:$0xff] %v3369
          %3498 = vst [vmem:[#allocation11 + $0x20] sm:$0xff] %v3370
          %3499 = vst [vmem:[#allocation11 + $0x28] sm:$0xff] %v3371
          %3500 = vst [vmem:[#allocation11 + $0x30] sm:$0xff] %v3372
          %3501 = vst [vmem:[#allocation11 + $0x38] sm:$0xff] %v3373
          %3502 = vst [vmem:[#allocation11 + $0x40] sm:$0xff] %v3374
          %3503 = vst [vmem:[#allocation11 + $0x48] sm:$0xff] %v3375
          %3504 = vst [vmem:[#allocation11 + $0x50] sm:$0xff] %v3376
          %3505 = vst [vmem:[#allocation11 + $0x58] sm:$0xff] %v3377
          %3506 = vst [vmem:[#allocation11 + $0x60] sm:$0xff] %v3378
          %3507 = vst [vmem:[#allocation11 + $0x68] sm:$0xff] %v3379
          %3508 = vst [vmem:[#allocation11 + $0x70] sm:$0xff] %v3380
          %3509 = vst [vmem:[#allocation11 + $0x78] sm:$0xff] %v3381
          %3510 = vst [vmem:[#allocation11 + $0x80] sm:$0xff] %v3382
          %3511 = vst [vmem:[#allocation11 + $0x88] sm:$0xff] %v3383
          %3512 = vst [vmem:[#allocation11 + $0x90] sm:$0xff] %v3384
          %3513 = vst [vmem:[#allocation11 + $0x98] sm:$0xff] %v3385
          %3514 = vst [vmem:[#allocation11 + $0xa0] sm:$0xff] %v3386
          %3515 = vst [vmem:[#allocation11 + $0xa8] sm:$0xff] %v3387
          %3516 = vst [vmem:[#allocation11 + $0xb0] sm:$0xff] %v3388
          %3517 = vst [vmem:[#allocation11 + $0xb8] sm:$0xff] %v3389
          %3518 = vst [vmem:[#allocation11 + $0xc0] sm:$0xff] %v3390
          %3519 = vst [vmem:[#allocation11 + $0xc8] sm:$0xff] %v3391
          %3520 = vst [vmem:[#allocation11 + $0xd0] sm:$0xff] %v3392
          %3521 = vst [vmem:[#allocation11 + $0xd8] sm:$0xff] %v3393
          %3522 = vst [vmem:[#allocation11 + $0xe0] sm:$0xff] %v3394
          %3523 = vst [vmem:[#allocation11 + $0xe8] sm:$0xff] %v3395
          %3524 = vst [vmem:[#allocation11 + $0xf0] sm:$0xff] %v3396
          %3525 = vst [vmem:[#allocation11 + $0xf8] sm:$0xff] %v3397
          %3526 = vst [vmem:[#allocation11 + $0x100] sm:$0xff] %v3398
          %3527 = vst [vmem:[#allocation11 + $0x108] sm:$0xff] %v3399
          %3528 = vst [vmem:[#allocation11 + $0x110] sm:$0xff] %v3400
          %3529 = vst [vmem:[#allocation11 + $0x118] sm:$0xff] %v3401
          %3530 = vst [vmem:[#allocation11 + $0x120] sm:$0xff] %v3402
          %3531 = vst [vmem:[#allocation11 + $0x128] sm:$0xff] %v3403
          %3532 = vst [vmem:[#allocation11 + $0x130] sm:$0xff] %v3404
          %3533 = vst [vmem:[#allocation11 + $0x138] sm:$0xff] %v3405
          %3534 = vst [vmem:[#allocation11 + $0x140] sm:$0xff] %v3406
          %3535 = vst [vmem:[#allocation11 + $0x148] sm:$0xff] %v3407
          %3536 = vst [vmem:[#allocation11 + $0x150] sm:$0xff] %v3408
          %3537 = vst [vmem:[#allocation11 + $0x158] sm:$0xff] %v3409
          %3538 = vst [vmem:[#allocation11 + $0x160] sm:$0xff] %v3410
          %3539 = vst [vmem:[#allocation11 + $0x168] sm:$0xff] %v3411
          %3540 = vst [vmem:[#allocation11 + $0x170] sm:$0xff] %v3412
          %3541 = vst [vmem:[#allocation11 + $0x178] sm:$0xff] %v3413
          %3542 = vst [vmem:[#allocation11 + $0x180] sm:$0xff] %v3414
          %3543 = vst [vmem:[#allocation11 + $0x188] sm:$0xff] %v3415
          %3544 = vst [vmem:[#allocation11 + $0x190] sm:$0xff] %v3416
          %3545 = vst [vmem:[#allocation11 + $0x198] sm:$0xff] %v3417
          %3546 = vst [vmem:[#allocation11 + $0x1a0] sm:$0xff] %v3418
          %3547 = vst [vmem:[#allocation11 + $0x1a8] sm:$0xff] %v3419
          %3548 = vst [vmem:[#allocation11 + $0x1b0] sm:$0xff] %v3420
          %3549 = vst [vmem:[#allocation11 + $0x1b8] sm:$0xff] %v3421
          %3550 = vst [vmem:[#allocation11 + $0x1c0] sm:$0xff] %v3422
          %3551 = vst [vmem:[#allocation11 + $0x1c8] sm:$0xff] %v3423
          %3552 = vst [vmem:[#allocation11 + $0x1d0] sm:$0xff] %v3424
          %3553 = vst [vmem:[#allocation11 + $0x1d8] sm:$0xff] %v3425
          %3554 = vst [vmem:[#allocation11 + $0x1e0] sm:$0xff] %v3426
          %3555 = vst [vmem:[#allocation11 + $0x1e8] sm:$0xff] %v3427
          %3556 = vst [vmem:[#allocation11 + $0x1f0] sm:$0xff] %v3428
          %3557 = vst [vmem:[#allocation11 + $0x1f8] sm:$0xff] %v3429
          %3558 = vst [vmem:[#allocation11 + $0x200] sm:$0xff] %v3430
          %3559 = vst [vmem:[#allocation11 + $0x208] sm:$0xff] %v3431
          %3560 = vst [vmem:[#allocation11 + $0x210] sm:$0xff] %v3432
          %3561 = vst [vmem:[#allocation11 + $0x218] sm:$0xff] %v3433
          %3562 = vst [vmem:[#allocation11 + $0x220] sm:$0xff] %v3434
          %3563 = vst [vmem:[#allocation11 + $0x228] sm:$0xff] %v3435
          %3564 = vst [vmem:[#allocation11 + $0x230] sm:$0xff] %v3436
          %3565 = vst [vmem:[#allocation11 + $0x238] sm:$0xff] %v3437
          %3566 = vst [vmem:[#allocation11 + $0x240] sm:$0xff] %v3438
          %3567 = vst [vmem:[#allocation11 + $0x248] sm:$0xff] %v3439
          %3568 = vst [vmem:[#allocation11 + $0x250] sm:$0xff] %v3440
          %3569 = vst [vmem:[#allocation11 + $0x258] sm:$0xff] %v3441
          %3570 = vst [vmem:[#allocation11 + $0x260] sm:$0xff] %v3442
          %3571 = vst [vmem:[#allocation11 + $0x268] sm:$0xff] %v3443
          %3572 = vst [vmem:[#allocation11 + $0x270] sm:$0xff] %v3444
          %3573 = vst [vmem:[#allocation11 + $0x278] sm:$0xff] %v3445
          %3574 = vst [vmem:[#allocation11 + $0x280] sm:$0xff] %v3446
          %3575 = vst [vmem:[#allocation11 + $0x288] sm:$0xff] %v3447
          %3576 = vst [vmem:[#allocation11 + $0x290] sm:$0xff] %v3448
          %3577 = vst [vmem:[#allocation11 + $0x298] sm:$0xff] %v3449
          %3578 = vst [vmem:[#allocation11 + $0x2a0] sm:$0xff] %v3450
          %3579 = vst [vmem:[#allocation11 + $0x2a8] sm:$0xff] %v3451
          %3580 = vst [vmem:[#allocation11 + $0x2b0] sm:$0xff] %v3452
          %3581 = vst [vmem:[#allocation11 + $0x2b8] sm:$0xff] %v3453
          %3582 = vst [vmem:[#allocation11 + $0x2c0] sm:$0xff] %v3454
          %3583 = vst [vmem:[#allocation11 + $0x2c8] sm:$0xff] %v3455
          %3584 = vst [vmem:[#allocation11 + $0x2d0] sm:$0xff] %v3456
          %3585 = vst [vmem:[#allocation11 + $0x2d8] sm:$0xff] %v3457
          %3586 = vst [vmem:[#allocation11 + $0x2e0] sm:$0xff] %v3458
          %3587 = vst [vmem:[#allocation11 + $0x2e8] sm:$0xff] %v3459
          %3588 = vst [vmem:[#allocation11 + $0x2f0] sm:$0xff] %v3460
          %3589 = vst [vmem:[#allocation11 + $0x2f8] sm:$0xff] %v3461
          %3590 = vst [vmem:[#allocation11 + $0x300] sm:$0xff] %v3462
          %3591 = vst [vmem:[#allocation11 + $0x308] sm:$0xff] %v3463
          %3592 = vst [vmem:[#allocation11 + $0x310] sm:$0xff] %v3464
          %3593 = vst [vmem:[#allocation11 + $0x318] sm:$0xff] %v3465
          %3594 = vst [vmem:[#allocation11 + $0x320] sm:$0xff] %v3466
          %3595 = vst [vmem:[#allocation11 + $0x328] sm:$0xff] %v3467
          %3596 = vst [vmem:[#allocation11 + $0x330] sm:$0xff] %v3468
          %3597 = vst [vmem:[#allocation11 + $0x338] sm:$0xff] %v3469
          %3598 = vst [vmem:[#allocation11 + $0x340] sm:$0xff] %v3470
          %3599 = vst [vmem:[#allocation11 + $0x348] sm:$0xff] %v3471
          %3600 = vst [vmem:[#allocation11 + $0x350] sm:$0xff] %v3472
          %3601 = vst [vmem:[#allocation11 + $0x358] sm:$0xff] %v3473
          %3602 = vst [vmem:[#allocation11 + $0x360] sm:$0xff] %v3474
          %3603 = vst [vmem:[#allocation11 + $0x368] sm:$0xff] %v3475
          %3604 = vst [vmem:[#allocation11 + $0x370] sm:$0xff] %v3476
          %3605 = vst [vmem:[#allocation11 + $0x378] sm:$0xff] %v3477
          %3606 = vst [vmem:[#allocation11 + $0x380] sm:$0xff] %v3478
          %3607 = vst [vmem:[#allocation11 + $0x388] sm:$0xff] %v3479
          %3608 = vst [vmem:[#allocation11 + $0x390] sm:$0xff] %v3480
          %3609 = vst [vmem:[#allocation11 + $0x398] sm:$0xff] %v3481
          %3610 = vst [vmem:[#allocation11 + $0x3a0] sm:$0xff] %v3482
          %3611 = vst [vmem:[#allocation11 + $0x3a8] sm:$0xff] %v3483
          %3612 = vst [vmem:[#allocation11 + $0x3b0] sm:$0xff] %v3484
          %3613 = vst [vmem:[#allocation11 + $0x3b8] sm:$0xff] %v3485
          %3614 = vst [vmem:[#allocation11 + $0x3c0] sm:$0xff] %v3486
          %3615 = vst [vmem:[#allocation11 + $0x3c8] sm:$0xff] %v3487
          %3616 = vst [vmem:[#allocation11 + $0x3d0] sm:$0xff] %v3488
          %3617 = vst [vmem:[#allocation11 + $0x3d8] sm:$0xff] %v3489
          %3618 = vst [vmem:[#allocation11 + $0x3e0] sm:$0xff] %v3490
          %3619 = vst [vmem:[#allocation11 + $0x3e8] sm:$0xff] %v3491
          %3620 = vst [vmem:[#allocation11 + $0x3f0] sm:$0xff] %v3492
          %3621 = vst [vmem:[#allocation11 + $0x3f8] sm:$0xff] %v3493
        $region64: #{tpu_custom_call.1} parent=39 // pred_fallthru
          _
        // Predicated region
        $region65: #{tpu_custom_call.1} parent=39 // pred_check
          %p3622 = pneg %p195
        $region66: #{tpu_custom_call.1} parent=39 // pred_check_branch
          %3624 = sbr.rel (%p3622) target = $region68
        $region67: #{tpu_custom_call.1} parent=39 // pred_region
          %s3625 = smul.u32 64, %s29
          %s3626 = smul.u32 2, %s30
          %3628 = vsyncadd [#allocation5], 0
          %s3629 = smul.addr %s3625, 2
          %s3630 = sadd.s32 %s3626, %s3629
          %s3631 = smul.addr %s3630, 8
          %s3632 = scalar_lea.hbm %s5, %s3631
          %s3633 = sshll.u32 [#allocation11], 4
          %s3634 = int_to_ptr.vmem [resolvable:$true] %s3633
          %s3635 = sshll.u32 %s3632, 4
          %s3636 = int_to_ptr.hbm [resolvable:$true] %s3635
          %3641 = dma.vmem_to_hbm [thread:$0]  %s3634, 16384, %s3636, [#allocation5], 256, 256, 16
        $region68: #{tpu_custom_call.1} parent=39 // pred_fallthru
          _
        // Predicated region
        $region69: #{tpu_custom_call.1} parent=39 // pred_check
          %p3642 = pneg %p195
        $region70: #{tpu_custom_call.1} parent=39 // pred_check_branch
          %3644 = sbr.rel (%p3642) target = $region72
        $region71: #{tpu_custom_call.1} parent=39 // pred_region
          %3646 = dma.done [#allocation5], 16384
        $region72: #{tpu_custom_call.1} parent=39 // pred_fallthru
          _
      $region40: #{tpu_custom_call.1} parent=5 // pred_fallthru
        _
      %p3647 = scmp.le.s32.totalorder 2, %s19
      // Predicated region
      $region73: #{tpu_custom_call.1} parent=5 // pred_check
        %p3648 = pneg %p3647
      $region74: #{tpu_custom_call.1} parent=5 // pred_check_branch
        %3650 = sbr.rel (%p3648) target = $region76
      $region75: #{tpu_custom_call.1} parent=5 // pred_region
        %s3651 = ssub.s32 %s19, 2
      $region76: #{tpu_custom_call.1} parent=5 // pred_fallthru
        _
    $region6: #{tpu_custom_call.1} parent=1 // loop_footer
      %s23 = sadd.s32 1, %s19
    $region7: #{tpu_custom_call.1} parent=1 // loop_footer_branch
      %18 = sbr.rel target = $region3
    $region8: #{tpu_custom_call.1} parent=1 // loop_exit
      _
    %3652 = vsyncpa [#allocation4], 1
    %s3653 = scalar_lea.sflag [#allocation4], 1
    %3654 = vsyncpa %s3653, 1
    %3655 = vsyncpa [#allocation7], 1
    %s3656 = scalar_lea.sflag [#allocation7], 1
    %3657 = vsyncpa %s3656, 1
    %3658 = vsyncpa [#allocation10], 1
    %s3659 = scalar_lea.sflag [#allocation10], 1
    %3660 = vsyncpa %s3659, 1
    %3661 = vsyncpa [#allocation5], 1
    %s3662 = scalar_lea.sflag [#allocation5], 1
    %3663 = vsyncpa %s3662, 1

</llo_original>
